<compile_context>
chip_gen: v7x
topology: tpu7x:2x2x1
jax: 0.10.0
libtpu: 0.0.40
codegen_flags: <defaults>
</compile_context>

<pallas_src>
import functools

import jax
import jax.numpy as jnp
from jax.experimental import pallas as pl
from jax.experimental.pallas import tpu as pltpu


def _rvq_kernel(xt_ref, cba_ref, cbt_ref, xqt_ref, idx_ref, err_ref):
    """Quantize one token tile through every residual quantizer layer.

    xt_ref : (D, TN)             input tokens (tokens on lanes)
    cba_ref: (Q, n_e_pad, D_pad) augmented codebooks: [-2*cb | ||cb||^2 | 0]
    cbt_ref: (Q, D_pad, n_e_pad) codebooks^T (rows >= D are zero) for the gather
    xqt_ref: (D, TN)             sum over layers of quantized vectors
    idx_ref: (Q, TN)  int32      chosen codebook index per layer
    err_ref: (Q, TN)  f32        per-token sum_d (x_q - residual)^2 per layer
    """
    d_model, tn = xt_ref.shape
    num_q, n_e_pad, d_pad = cba_ref.shape

    x32 = xt_ref[...].astype(jnp.float32)                       # (D, TN)

    # Augmented residual [r ; 1 ; 0 ...].  The constant ones row makes the MXU
    # add the ||c||^2 bias for free; zero rows pad D+1 -> D_pad (multiple of 8).
    pad_rows = d_pad - d_model
    tail = (jax.lax.broadcasted_iota(jnp.int32, (pad_rows, tn), 0) == 0
            ).astype(jnp.float32)                               # [1; 0; ...]
    r = jnp.concatenate([x32, tail], axis=0)                    # (D_pad, TN)

    # Hoisted: identical iota reused by every layer (JAX does not CSE it).
    iota = jax.lax.broadcasted_iota(jnp.int32, (n_e_pad, tn), 0)

    for q in range(num_q):                                      # small static unroll
        cba = cba_ref[q]                                        # (n_e_pad, D_pad) f32
        cbt = cbt_ref[q]                                        # (D_pad, n_e_pad) f32

        # d[j, t] = ||c_j||^2 - 2 c_j . r_t   (bias folded into the matmul;
        # the per-token constant ||r_t||^2 is dropped — argmin-invariant).
        # Padded codebook rows carry ||c||^2 = 1e30 so they can never win.
        d = jnp.dot(cba, r, preferred_element_type=jnp.float32)  # (n_e_pad, TN)

        # argmin over the codebook (sublane) axis, first-match tie-break.
        d_min = jnp.min(d, axis=0, keepdims=True)                # (1, TN)
        idx = jnp.min(jnp.where(d == d_min, iota, n_e_pad),
                      axis=0, keepdims=True)                     # (1, TN) int32

        # Gather codebook rows via one-hot matmul (exact f32 values; rows >= D
        # of cbt are zero so the ones/zeros tail of r is preserved).
        one_hot = (iota == idx).astype(jnp.float32)              # (n_e_pad, TN)
        xq = jnp.dot(cbt, one_hot,
                     preferred_element_type=jnp.float32)         # (D_pad, TN)

        r = r - xq                                               # residual update
        diff = r[:d_model]                                       # == -(xq - old residual)
        err = jnp.sum(diff * diff, axis=0, keepdims=True)        # (1, TN)

        # Lane-dense per-layer row stores (no epilogue concatenate).
        idx_ref[q:q + 1, :] = idx
        err_ref[q:q + 1, :] = err

    # x_q_total = x - final residual (replaces a per-layer accumulator).
    xqt_ref[...] = (x32 - r[:d_model]).astype(xqt_ref.dtype)


@functools.partial(jax.jit, static_argnames=("beta", "tile_n"))
def rvq_forward(x, codebooks, *, beta=0.25, tile_n=1024):
    """Residual vector quantization forward pass.

    x         : (..., e_dim)
    codebooks : (num_quantizers, n_e, e_dim)
    Returns (x_q, mean_losses, all_indices) matching the PyTorch module.
    """
    orig_shape = x.shape
    d_model = x.shape[-1]
    xf = x.reshape(-1, d_model)
    n_tokens = xf.shape[0]
    num_q, n_e, _ = codebooks.shape

    # --- Codebook prep (grid-invariant, hoisted out of the kernel) ----------
    n_e_pad = ((n_e + 127) // 128) * 128        # full 128-lane codebook axis
    pad_e = n_e_pad - n_e
    cb = codebooks.astype(jnp.float32)
    cb_sq = jnp.sum(cb * cb, axis=-1)                            # (Q, n_e)
    if pad_e:
        cb = jnp.pad(cb, ((0, 0), (0, pad_e), (0, 0)))
        # Padded codes get a huge squared norm so they never win the argmin.
        cb_sq = jnp.pad(cb_sq, ((0, 0), (0, pad_e)), constant_values=1e30)

    d_pad = ((d_model + 1 + 7) // 8) * 8        # room for the ||c||^2 column
    cb_aug = jnp.concatenate(
        [-2.0 * cb,
         cb_sq[..., None],
         jnp.zeros((num_q, n_e_pad, d_pad - d_model - 1), jnp.float32)],
        axis=-1)                                                 # (Q, n_e_pad, d_pad)
    cbt_aug = jnp.concatenate(
        [jnp.transpose(cb, (0, 2, 1)),
         jnp.zeros((num_q, d_pad - d_model, n_e_pad), jnp.float32)],
        axis=1)                                                  # (Q, d_pad, n_e_pad)

    # --- Token prep: tokens-on-lanes, padded to a tile multiple -------------
    # Keep >= 2 grid steps whenever possible so v7x's two TCs both get work.
    if n_tokens <= 128:
        tn_eff = 128
    else:
        half_rounded = (((n_tokens + 1) // 2 + 127) // 128) * 128
        tn_eff = max(128, min(int(tile_n), half_rounded))
    n_pad_tokens = ((n_tokens + tn_eff - 1) // tn_eff) * tn_eff

    xt = xf.T                                                    # (D, N)
    if n_pad_tokens != n_tokens:
        xt = jnp.pad(xt, ((0, 0), (0, n_pad_tokens - n_tokens)))

    grid = (n_pad_tokens // tn_eff,)

    xqt, idx_qn, err_qn = pl.pallas_call(
        _rvq_kernel,
        out_shape=(
            jax.ShapeDtypeStruct((d_model, n_pad_tokens), xf.dtype),
            jax.ShapeDtypeStruct((num_q, n_pad_tokens), jnp.int32),
            jax.ShapeDtypeStruct((num_q, n_pad_tokens), jnp.float32),
        ),
        grid_spec=pltpu.PrefetchScalarGridSpec(
            num_scalar_prefetch=0,
            grid=grid,
            in_specs=[
                pl.BlockSpec((d_model, tn_eff), lambda i: (0, i)),
                pl.BlockSpec((num_q, n_e_pad, d_pad), lambda i: (0, 0, 0)),
                pl.BlockSpec((num_q, d_pad, n_e_pad), lambda i: (0, 0, 0)),
            ],
            out_specs=[
                pl.BlockSpec((d_model, tn_eff), lambda i: (0, i)),
                pl.BlockSpec((num_q, tn_eff), lambda i: (0, i)),
                pl.BlockSpec((num_q, tn_eff), lambda i: (0, i)),
            ],
        ),
        compiler_params=pltpu.CompilerParams(
            dimension_semantics=("parallel",)),
    )(xt, cb_aug, cbt_aug)

    # Per-layer loss = codebook_loss + beta * commitment_loss
    #                = (1 + beta) * mean((x_q - residual)^2)
    err_valid = err_qn[:, :n_tokens]                             # drop token padding
    mse_per_q = jnp.sum(err_valid, axis=1) / (n_tokens * d_model)
    losses = (1.0 + beta) * mse_per_q
    mean_losses = jnp.mean(losses)

    x_q = xqt[:, :n_tokens].T.reshape(orig_shape)
    all_indices = idx_qn[:, :n_tokens].T.reshape(orig_shape[:-1] + (num_q,))
    return x_q, mean_losses, all_indices


def _rvq_reference(x, codebooks, beta=0.25):
    """Pure-JAX reference of the RVQ forward (nearest-neighbour assignment)."""
    d_model = x.shape[-1]
    xf = x.reshape(-1, d_model).astype(jnp.float32)
    residual = xf
    x_q = jnp.zeros_like(xf)
    losses, indices = [], []
    for q in range(codebooks.shape[0]):
        cb = codebooks[q].astype(jnp.float32)
        d = (jnp.sum(residual**2, axis=1, keepdims=True)
             + jnp.sum(cb**2, axis=1)[None, :]
             - 2.0 * residual @ cb.T)
        idx = jnp.argmin(d, axis=-1)
        xq = cb[idx]
        losses.append((1.0 + beta) * jnp.mean((xq - residual) ** 2))
        indices.append(idx)
        x_q = x_q + xq
        residual = residual - xq
    return (x_q.reshape(x.shape), jnp.mean(jnp.stack(losses)),
            jnp.stack(indices, axis=-1).reshape(x.shape[:-1] + (codebooks.shape[0],)))


if __name__ == "__main__":
    # Module config: n_e_list = [64, 64, 64], e_dim = 32, sk_epsilons = [0, 0, 0]
    num_quantizers, n_e, e_dim, beta = 3, 64, 32, 0.25
    batch, seq = 8, 128                      # -> 1024 tokens = 2 parallel grid steps

    key = jax.random.PRNGKey(0)
    k_x, k_cb = jax.random.split(key)
    x = jax.random.normal(k_x, (batch, seq, e_dim), dtype=jnp.float32)
    # Deterministic codebook init (stands in for nn.Embedding weights).
    codebooks = jax.random.normal(
        k_cb, (num_quantizers, n_e, e_dim), dtype=jnp.float32) * 0.5

    x_q, mean_losses, all_indices = rvq_forward(x, codebooks, beta=beta)
    jax.block_until_ready((x_q, mean_losses, all_indices))

    # Validate against pure-JAX reference.
    x_q_ref, loss_ref, idx_ref_arr = _rvq_reference(x, codebooks, beta=beta)
    idx_ref_arr = idx_ref_arr.astype(jnp.int32)
    assert x_q.shape == x.shape
    assert all_indices.shape == (batch, seq, num_quantizers)

    # Indices may only differ on near-exact distance ties (the kernel's fused
    # distance rounds slightly differently from the expanded reference
    # formula); tolerate a vanishing fraction of such tie flips.
    tok_ok = jnp.all(all_indices == idx_ref_arr, axis=-1)        # (batch, seq)
    assert float(jnp.mean(tok_ok.astype(jnp.float32))) >= 0.999
    # Compare x_q elementwise on tokens whose indices match exactly.
    good = tok_ok[..., None]
    abs_err = jnp.where(good, jnp.abs(x_q - x_q_ref), 0.0)
    assert bool(jnp.all(abs_err <= 1e-4 + 1e-4 * jnp.abs(x_q_ref)))
    assert jnp.allclose(mean_losses, loss_ref, atol=1e-5, rtol=1e-5)

    print("KERNEL_OK")
</pallas_src>

<mosaic_0001>
module attributes {stable_mosaic.version = 11 : i64} {
  func.func @_rvq_kernel(%arg0: i32, %arg1: memref<32x512xf32, #tpu.memory_space<vmem>>, %arg2: memref<3x128x40xf32, #tpu.memory_space<vmem>>, %arg3: memref<3x40x128xf32, #tpu.memory_space<vmem>>, %arg4: memref<32x512xf32, #tpu.memory_space<vmem>>, %arg5: memref<3x512xi32, #tpu.memory_space<vmem>>, %arg6: memref<3x512xf32, #tpu.memory_space<vmem>>) attributes {dimension_semantics = [#tpu.dimension_semantics<parallel>], iteration_bounds = array<i64: 2>, scalar_prefetch = 0 : i64, scratch_operands = 0 : i64, tpu.core_type = #tpu.core_type<tc>, window_params = [{transform_indices = @transform_0, window_bounds = array<i64: 32, 512>}, {pipeline_mode = #tpu.pipeline_mode<synchronous>, transform_indices = @transform_1, window_bounds = array<i64: 3, 128, 40>}, {pipeline_mode = #tpu.pipeline_mode<synchronous>, transform_indices = @transform_2, window_bounds = array<i64: 3, 40, 128>}, {transform_indices = @transform_3, window_bounds = array<i64: 32, 512>}, {transform_indices = @transform_4, window_bounds = array<i64: 3, 512>}, {transform_indices = @transform_5, window_bounds = array<i64: 3, 512>}]} {
    %c0 = arith.constant 0 : index
    %c0_0 = arith.constant 0 : index
    %0 = vector.load %arg1[%c0, %c0_0] : memref<32x512xf32, #tpu.memory_space<vmem>>, vector<32x512xf32>
    %1 = tpu.iota {dimensions = array<i32: 0>} : vector<8x512xi32>
    %c0_i32 = arith.constant 0 : i32
    %2 = vector.broadcast %c0_i32 : i32 to vector<8x512xi32>
    %3 = arith.cmpi eq, %1, %2 : vector<8x512xi32>
    %4 = arith.extui %3 : vector<8x512xi1> to vector<8x512xi32>
    %5 = arith.sitofp %4 : vector<8x512xi32> to vector<8x512xf32>
    %6 = tpu.concatenate %0, %5 in 0 : vector<32x512xf32>, vector<8x512xf32> -> vector<40x512xf32>
    %7 = tpu.iota {dimensions = array<i32: 0>} : vector<128x512xi32>
    %c0_1 = arith.constant 0 : index
    %c0_2 = arith.constant 0 : index
    %c0_3 = arith.constant 0 : index
    %8 = vector.load %arg2[%c0_1, %c0_2, %c0_3] : memref<3x128x40xf32, #tpu.memory_space<vmem>>, vector<1x128x40xf32>
    %9 = vector.shape_cast %8 : vector<1x128x40xf32> to vector<128x40xf32>
    %c0_4 = arith.constant 0 : index
    %c0_5 = arith.constant 0 : index
    %c0_6 = arith.constant 0 : index
    %10 = vector.load %arg3[%c0_4, %c0_5, %c0_6] : memref<3x40x128xf32, #tpu.memory_space<vmem>>, vector<1x40x128xf32>
    %11 = vector.shape_cast %10 : vector<1x40x128xf32> to vector<40x128xf32>
    %cst = arith.constant dense<0.000000e+00> : vector<128x512xf32>
    %12 = tpu.matmul %9, %6, %cst {dimension_numbers = #tpu.dot_dimension_numbers<[1], [0], [0], [1], [0, 0, 1, 1], [], []>} : vector<128x40xf32>, vector<40x512xf32>, vector<128x512xf32> -> vector<128x512xf32>
    %cst_7 = arith.constant dense<0x7F800000> : vector<512xf32>
    %13 = vector.multi_reduction <minimumf>, %12, %cst_7 [0] : vector<128x512xf32> to vector<512xf32>
    %14 = vector.shape_cast %13 : vector<512xf32> to vector<1x512xf32>
    %15 = vector.broadcast %14 : vector<1x512xf32> to vector<128x512xf32>
    %16 = arith.cmpf oeq, %12, %15 : vector<128x512xf32>
    %c128_i32 = arith.constant 128 : i32
    %17 = vector.broadcast %c128_i32 : i32 to vector<128x512xi32>
    %18 = arith.select %16, %7, %17 : vector<128x512xi1>, vector<128x512xi32>
    %cst_8 = arith.constant dense<2147483647> : vector<512xi32>
    %19 = vector.multi_reduction <minsi>, %18, %cst_8 [0] : vector<128x512xi32> to vector<512xi32>
    %20 = vector.shape_cast %19 : vector<512xi32> to vector<1x512xi32>
    %21 = vector.broadcast %20 : vector<1x512xi32> to vector<128x512xi32>
    %22 = arith.cmpi eq, %7, %21 : vector<128x512xi32>
    %23 = arith.extui %22 : vector<128x512xi1> to vector<128x512xi32>
    %24 = arith.sitofp %23 : vector<128x512xi32> to vector<128x512xf32>
    %cst_9 = arith.constant dense<0.000000e+00> : vector<40x512xf32>
    %25 = tpu.matmul %11, %24, %cst_9 {dimension_numbers = #tpu.dot_dimension_numbers<[1], [0], [0], [1], [0, 0, 1, 1], [], []>} : vector<40x128xf32>, vector<128x512xf32>, vector<40x512xf32> -> vector<40x512xf32>
    %26 = arith.subf %6, %25 : vector<40x512xf32>
    %27 = vector.extract_strided_slice %26 {offsets = [0, 0], sizes = [32, 512], strides = [1, 1]} : vector<40x512xf32> to vector<32x512xf32>
    %28 = arith.mulf %27, %27 : vector<32x512xf32>
    %cst_10 = arith.constant dense<0.000000e+00> : vector<512xf32>
    %29 = vector.multi_reduction <add>, %28, %cst_10 [0] : vector<32x512xf32> to vector<512xf32>
    %30 = vector.shape_cast %29 : vector<512xf32> to vector<1x512xf32>
    %c0_11 = arith.constant 0 : index
    %c0_12 = arith.constant 0 : index
    %31 = vector.load %arg5[%c0_11, %c0_12] : memref<3x512xi32, #tpu.memory_space<vmem>>, vector<1x512xi32>
    tpu.vector_store %arg5[%c0_11, %c0_12], %20 {strides = array<i32>} : memref<3x512xi32, #tpu.memory_space<vmem>>, vector<1x512xi32>,
    %c0_13 = arith.constant 0 : index
    %c0_14 = arith.constant 0 : index
    %32 = vector.load %arg6[%c0_13, %c0_14] : memref<3x512xf32, #tpu.memory_space<vmem>>, vector<1x512xf32>
    tpu.vector_store %arg6[%c0_13, %c0_14], %30 {strides = array<i32>} : memref<3x512xf32, #tpu.memory_space<vmem>>, vector<1x512xf32>,
    %c1 = arith.constant 1 : index
    %c0_15 = arith.constant 0 : index
    %c0_16 = arith.constant 0 : index
    %33 = vector.load %arg2[%c1, %c0_15, %c0_16] : memref<3x128x40xf32, #tpu.memory_space<vmem>>, vector<1x128x40xf32>
    %34 = vector.shape_cast %33 : vector<1x128x40xf32> to vector<128x40xf32>
    %c1_17 = arith.constant 1 : index
    %c0_18 = arith.constant 0 : index
    %c0_19 = arith.constant 0 : index
    %35 = vector.load %arg3[%c1_17, %c0_18, %c0_19] : memref<3x40x128xf32, #tpu.memory_space<vmem>>, vector<1x40x128xf32>
    %36 = vector.shape_cast %35 : vector<1x40x128xf32> to vector<40x128xf32>
    %cst_20 = arith.constant dense<0.000000e+00> : vector<128x512xf32>
    %37 = tpu.matmul %34, %26, %cst_20 {dimension_numbers = #tpu.dot_dimension_numbers<[1], [0], [0], [1], [0, 0, 1, 1], [], []>} : vector<128x40xf32>, vector<40x512xf32>, vector<128x512xf32> -> vector<128x512xf32>
    %cst_21 = arith.constant dense<0x7F800000> : vector<512xf32>
    %38 = vector.multi_reduction <minimumf>, %37, %cst_21 [0] : vector<128x512xf32> to vector<512xf32>
    %39 = vector.shape_cast %38 : vector<512xf32> to vector<1x512xf32>
    %40 = vector.broadcast %39 : vector<1x512xf32> to vector<128x512xf32>
    %41 = arith.cmpf oeq, %37, %40 : vector<128x512xf32>
    %c128_i32_22 = arith.constant 128 : i32
    %42 = vector.broadcast %c128_i32_22 : i32 to vector<128x512xi32>
    %43 = arith.select %41, %7, %42 : vector<128x512xi1>, vector<128x512xi32>
    %cst_23 = arith.constant dense<2147483647> : vector<512xi32>
    %44 = vector.multi_reduction <minsi>, %43, %cst_23 [0] : vector<128x512xi32> to vector<512xi32>
    %45 = vector.shape_cast %44 : vector<512xi32> to vector<1x512xi32>
    %46 = vector.broadcast %45 : vector<1x512xi32> to vector<128x512xi32>
    %47 = arith.cmpi eq, %7, %46 : vector<128x512xi32>
    %48 = arith.extui %47 : vector<128x512xi1> to vector<128x512xi32>
    %49 = arith.sitofp %48 : vector<128x512xi32> to vector<128x512xf32>
    %cst_24 = arith.constant dense<0.000000e+00> : vector<40x512xf32>
    %50 = tpu.matmul %36, %49, %cst_24 {dimension_numbers = #tpu.dot_dimension_numbers<[1], [0], [0], [1], [0, 0, 1, 1], [], []>} : vector<40x128xf32>, vector<128x512xf32>, vector<40x512xf32> -> vector<40x512xf32>
    %51 = arith.subf %26, %50 : vector<40x512xf32>
    %52 = vector.extract_strided_slice %51 {offsets = [0, 0], sizes = [32, 512], strides = [1, 1]} : vector<40x512xf32> to vector<32x512xf32>
    %53 = arith.mulf %52, %52 : vector<32x512xf32>
    %cst_25 = arith.constant dense<0.000000e+00> : vector<512xf32>
    %54 = vector.multi_reduction <add>, %53, %cst_25 [0] : vector<32x512xf32> to vector<512xf32>
    %55 = vector.shape_cast %54 : vector<512xf32> to vector<1x512xf32>
    %c1_26 = arith.constant 1 : index
    %c0_27 = arith.constant 0 : index
    %56 = vector.load %arg5[%c1_26, %c0_27] : memref<3x512xi32, #tpu.memory_space<vmem>>, vector<1x512xi32>
    tpu.vector_store %arg5[%c1_26, %c0_27], %45 {strides = array<i32>} : memref<3x512xi32, #tpu.memory_space<vmem>>, vector<1x512xi32>,
    %c1_28 = arith.constant 1 : index
    %c0_29 = arith.constant 0 : index
    %57 = vector.load %arg6[%c1_28, %c0_29] : memref<3x512xf32, #tpu.memory_space<vmem>>, vector<1x512xf32>
    tpu.vector_store %arg6[%c1_28, %c0_29], %55 {strides = array<i32>} : memref<3x512xf32, #tpu.memory_space<vmem>>, vector<1x512xf32>,
    %c2 = arith.constant 2 : index
    %c0_30 = arith.constant 0 : index
    %c0_31 = arith.constant 0 : index
    %58 = vector.load %arg2[%c2, %c0_30, %c0_31] : memref<3x128x40xf32, #tpu.memory_space<vmem>>, vector<1x128x40xf32>
    %59 = vector.shape_cast %58 : vector<1x128x40xf32> to vector<128x40xf32>
    %c2_32 = arith.constant 2 : index
    %c0_33 = arith.constant 0 : index
    %c0_34 = arith.constant 0 : index
    %60 = vector.load %arg3[%c2_32, %c0_33, %c0_34] : memref<3x40x128xf32, #tpu.memory_space<vmem>>, vector<1x40x128xf32>
    %61 = vector.shape_cast %60 : vector<1x40x128xf32> to vector<40x128xf32>
    %cst_35 = arith.constant dense<0.000000e+00> : vector<128x512xf32>
    %62 = tpu.matmul %59, %51, %cst_35 {dimension_numbers = #tpu.dot_dimension_numbers<[1], [0], [0], [1], [0, 0, 1, 1], [], []>} : vector<128x40xf32>, vector<40x512xf32>, vector<128x512xf32> -> vector<128x512xf32>
    %cst_36 = arith.constant dense<0x7F800000> : vector<512xf32>
    %63 = vector.multi_reduction <minimumf>, %62, %cst_36 [0] : vector<128x512xf32> to vector<512xf32>
    %64 = vector.shape_cast %63 : vector<512xf32> to vector<1x512xf32>
    %65 = vector.broadcast %64 : vector<1x512xf32> to vector<128x512xf32>
    %66 = arith.cmpf oeq, %62, %65 : vector<128x512xf32>
    %c128_i32_37 = arith.constant 128 : i32
    %67 = vector.broadcast %c128_i32_37 : i32 to vector<128x512xi32>
    %68 = arith.select %66, %7, %67 : vector<128x512xi1>, vector<128x512xi32>
    %cst_38 = arith.constant dense<2147483647> : vector<512xi32>
    %69 = vector.multi_reduction <minsi>, %68, %cst_38 [0] : vector<128x512xi32> to vector<512xi32>
    %70 = vector.shape_cast %69 : vector<512xi32> to vector<1x512xi32>
    %71 = vector.broadcast %70 : vector<1x512xi32> to vector<128x512xi32>
    %72 = arith.cmpi eq, %7, %71 : vector<128x512xi32>
    %73 = arith.extui %72 : vector<128x512xi1> to vector<128x512xi32>
    %74 = arith.sitofp %73 : vector<128x512xi32> to vector<128x512xf32>
    %cst_39 = arith.constant dense<0.000000e+00> : vector<40x512xf32>
    %75 = tpu.matmul %61, %74, %cst_39 {dimension_numbers = #tpu.dot_dimension_numbers<[1], [0], [0], [1], [0, 0, 1, 1], [], []>} : vector<40x128xf32>, vector<128x512xf32>, vector<40x512xf32> -> vector<40x512xf32>
    %76 = arith.subf %51, %75 : vector<40x512xf32>
    %77 = vector.extract_strided_slice %76 {offsets = [0, 0], sizes = [32, 512], strides = [1, 1]} : vector<40x512xf32> to vector<32x512xf32>
    %78 = arith.mulf %77, %77 : vector<32x512xf32>
    %cst_40 = arith.constant dense<0.000000e+00> : vector<512xf32>
    %79 = vector.multi_reduction <add>, %78, %cst_40 [0] : vector<32x512xf32> to vector<512xf32>
    %80 = vector.shape_cast %79 : vector<512xf32> to vector<1x512xf32>
    %c2_41 = arith.constant 2 : index
    %c0_42 = arith.constant 0 : index
    %81 = vector.load %arg5[%c2_41, %c0_42] : memref<3x512xi32, #tpu.memory_space<vmem>>, vector<1x512xi32>
    tpu.vector_store %arg5[%c2_41, %c0_42], %70 {strides = array<i32>} : memref<3x512xi32, #tpu.memory_space<vmem>>, vector<1x512xi32>,
    %c2_43 = arith.constant 2 : index
    %c0_44 = arith.constant 0 : index
    %82 = vector.load %arg6[%c2_43, %c0_44] : memref<3x512xf32, #tpu.memory_space<vmem>>, vector<1x512xf32>
    tpu.vector_store %arg6[%c2_43, %c0_44], %80 {strides = array<i32>} : memref<3x512xf32, #tpu.memory_space<vmem>>, vector<1x512xf32>,
    %83 = vector.extract_strided_slice %76 {offsets = [0, 0], sizes = [32, 512], strides = [1, 1]} : vector<40x512xf32> to vector<32x512xf32>
    %84 = arith.subf %0, %83 : vector<32x512xf32>
    %c0_45 = arith.constant 0 : index
    %c0_46 = arith.constant 0 : index
    %85 = vector.load %arg4[%c0_45, %c0_46] : memref<32x512xf32, #tpu.memory_space<vmem>>, vector<32x512xf32>
    tpu.vector_store %arg4[%c0_45, %c0_46], %84 {strides = array<i32>} : memref<32x512xf32, #tpu.memory_space<vmem>>, vector<32x512xf32>,
    return
  }
  func.func @transform_0(%arg0: i32) -> (i32, i32) {
    %c0_i32 = arith.constant 0 : i32
    %c0_i32_0 = arith.constant 0 : i32
    return %c0_i32, %arg0 : i32, i32
  }
  func.func @transform_1(%arg0: i32) -> (i32, i32, i32) {
    %c0_i32 = arith.constant 0 : i32
    %c0_i32_0 = arith.constant 0 : i32
    %c0_i32_1 = arith.constant 0 : i32
    %c0_i32_2 = arith.constant 0 : i32
    return %c0_i32, %c0_i32_0, %c0_i32_1 : i32, i32, i32
  }
  func.func @transform_2(%arg0: i32) -> (i32, i32, i32) {
    %c0_i32 = arith.constant 0 : i32
    %c0_i32_0 = arith.constant 0 : i32
    %c0_i32_1 = arith.constant 0 : i32
    %c0_i32_2 = arith.constant 0 : i32
    return %c0_i32, %c0_i32_0, %c0_i32_1 : i32, i32, i32
  }
  func.func @transform_3(%arg0: i32) -> (i32, i32) {
    %c0_i32 = arith.constant 0 : i32
    %c0_i32_0 = arith.constant 0 : i32
    return %c0_i32, %arg0 : i32, i32
  }
  func.func @transform_4(%arg0: i32) -> (i32, i32) {
    %c0_i32 = arith.constant 0 : i32
    %c0_i32_0 = arith.constant 0 : i32
    return %c0_i32, %arg0 : i32, i32
  }
  func.func @transform_5(%arg0: i32) -> (i32, i32) {
    %c0_i32 = arith.constant 0 : i32
    %c0_i32_0 = arith.constant 0 : i32
    return %c0_i32, %arg0 : i32, i32
  }
}

</mosaic_0001>

<llo_original>
// kernel: rvq_forward.1
$region0: #{rvq_forward.1}
  #allocation0 [shape = 'u32[]', space=smem, size = 0x4, offset = 0x4, fixed_abs, tag = 'smem constant byte address 0x4 - core index']
  #allocation1 [shape = 'u32[144,128]{1,0:T(1,128)}', space=vmem, size = 0x12000, scoped, tag = 'internal scratch']
  %s0 = inlined_call_operand.vmem [shape: f32[32,1024], index: 0, kind: input, shape index: {}]
  %s1 = inlined_call_operand.vmem [shape: f32[3,128,40], index: 1, kind: input, shape index: {}]
  %s2 = inlined_call_operand.vmem [shape: f32[3,40,128], index: 2, kind: input, shape index: {}]
  %s3 = inlined_call_operand.vmem [shape: f32[32,1024], index: 3, kind: output, shape index: {0}]
  %s4 = inlined_call_operand.vmem [shape: s32[3,1024], index: 4, kind: output, shape index: {1}]
  %s5 = inlined_call_operand.vmem [shape: f32[3,1024], index: 5, kind: output, shape index: {2}]
  %6 = xla_tuple %s3, %s4, %s5
  %s7 = sld [smem:[#allocation0]]
  $region103: #{rvq_forward.1} parent=0
    _
  %s9 = ssub.s32 1, %s7
  %s10 = scalar_select 0, %s9, %s7
  $region1: #{rvq_forward.1} parent=0
    #allocation2 [shape = 'u8[131072]{0}', space=vmem, size = 0x20000, scoped, tag = 'input window, operand 0']
    #allocation3 [shape = 'u8[131072]{0}', space=vmem, size = 0x20000, scoped, tag = 'output window, operand 0']
    loop: start=0, step=1, limit=4
    $region2: #{rvq_forward.1} parent=1 // loop_pre_header
      _
    $region3: #{rvq_forward.1} parent=1 // loop_header
      %s12 = sphi 0, %s16
      %p13 = scmp.ge.s32.totalorder %s12, 4
      %s22 = sphi 0, %s24
      %s25 = sphi 0, %s22
      %s26 = sphi 0, %s25
      %s42 = sphi 0, %s26
      %s46 = sphi 0, %s46
      %s48 = sphi 0, %s46
      %s49 = sphi 0, %s48
      %s63 = sphi 0, %s49
      %s67 = sphi 0, %s67
      %s69 = sphi 0, %s67
      %s70 = sphi 0, %s69
      %s84 = sphi 0, %s70
      %s90 = sphi 0, %s92
      %s93 = sphi 0, %s90
      %s94 = sphi 0, %s93
      %s110 = sphi 0, %s94
      %s116 = sphi 0, %s118
      %s119 = sphi 0, %s116
      %s120 = sphi 0, %s119
      %s136 = sphi 0, %s120
      %s142 = sphi 0, %s144
      %s145 = sphi 0, %s142
      %s146 = sphi 0, %s145
      %s162 = sphi 0, %s146
    $region4: #{rvq_forward.1} parent=1 // loop_header_branch
      %15 = sbr.rel (%p13) target = $region8
    $region5: #{rvq_forward.1} parent=1 // loop_body
      %s17 = ssub.s32 %s12, 1
      %s18 = ssub.s32 %s12, 2
      %s19 = sadd.s32 %s12, 1
      %s20 = ssub.s32 %s12, %s19
      %p21 = scmp.eq.s32.totalorder %s20, 0
      %s23 = sadd.s32 %s22, 1
      %s24 = scalar_select %p21, %s22, %s23
      %p27 = pneg %p21
      %p28 = scmp.eq.s32.totalorder %s12, 1
      %p29 = por %p27, %p28
      %p30 = scmp.ne.s32.totalorder %s22, %s25
      %p31 = scmp.eq.s32.totalorder %s12, 0
      %p32 = por %p30, %p31
      %p33 = scmp.ne.s32.totalorder %s22, %s25
      %p34 = scmp.eq.s32.totalorder %s17, 1
      %p35 = por %p33, %p34
      %p36 = scmp.ne.s32.totalorder %s25, %s26
      %p37 = scmp.eq.s32.totalorder %s17, 0
      %p38 = por %p36, %p37
      %p39 = scmp.ne.s32.totalorder %s25, %s26
      %p40 = scmp.eq.s32.totalorder %s18, 1
      %p41 = por %p39, %p40
      %p43 = scmp.ne.s32.totalorder %s26, %s42
      %p44 = scmp.eq.s32.totalorder %s18, 0
      %p45 = por %p43, %p44
      %s47 = sadd.s32 %s46, 1
      %p50 = scmp.eq.s32.totalorder %s12, 1
      %p51 = scmp.ne.s32.totalorder %s46, %s48
      %p52 = scmp.eq.s32.totalorder %s12, 0
      %p53 = por %p51, %p52
      %p54 = scmp.ne.s32.totalorder %s46, %s48
      %p55 = scmp.eq.s32.totalorder %s17, 1
      %p56 = por %p54, %p55
      %p57 = scmp.ne.s32.totalorder %s48, %s49
      %p58 = scmp.eq.s32.totalorder %s17, 0
      %p59 = por %p57, %p58
      %p60 = scmp.ne.s32.totalorder %s48, %s49
      %p61 = scmp.eq.s32.totalorder %s18, 1
      %p62 = por %p60, %p61
      %p64 = scmp.ne.s32.totalorder %s49, %s63
      %p65 = scmp.eq.s32.totalorder %s18, 0
      %p66 = por %p64, %p65
      %s68 = sadd.s32 %s67, 1
      %p71 = scmp.eq.s32.totalorder %s12, 1
      %p72 = scmp.ne.s32.totalorder %s67, %s69
      %p73 = scmp.eq.s32.totalorder %s12, 0
      %p74 = por %p72, %p73
      %p75 = scmp.ne.s32.totalorder %s67, %s69
      %p76 = scmp.eq.s32.totalorder %s17, 1
      %p77 = por %p75, %p76
      %p78 = scmp.ne.s32.totalorder %s69, %s70
      %p79 = scmp.eq.s32.totalorder %s17, 0
      %p80 = por %p78, %p79
      %p81 = scmp.ne.s32.totalorder %s69, %s70
      %p82 = scmp.eq.s32.totalorder %s18, 1
      %p83 = por %p81, %p82
      %p85 = scmp.ne.s32.totalorder %s70, %s84
      %p86 = scmp.eq.s32.totalorder %s18, 0
      %p87 = por %p85, %p86
      %s88 = ssub.s32 %s12, %s19
      %p89 = scmp.eq.s32.totalorder %s88, 0
      %s91 = sadd.s32 %s90, 1
      %s92 = scalar_select %p89, %s90, %s91
      %p95 = pneg %p89
      %p96 = scmp.eq.s32.totalorder %s12, 1
      %p97 = por %p95, %p96
      %p98 = scmp.ne.s32.totalorder %s90, %s93
      %p99 = scmp.eq.s32.totalorder %s12, 0
      %p100 = por %p98, %p99
      %p101 = scmp.ne.s32.totalorder %s90, %s93
      %p102 = scmp.eq.s32.totalorder %s17, 1
      %p103 = por %p101, %p102
      %p104 = scmp.ne.s32.totalorder %s93, %s94
      %p105 = scmp.eq.s32.totalorder %s17, 0
      %p106 = por %p104, %p105
      %p107 = scmp.ne.s32.totalorder %s93, %s94
      %p108 = scmp.eq.s32.totalorder %s18, 1
      %p109 = por %p107, %p108
      %p111 = scmp.ne.s32.totalorder %s94, %s110
      %p112 = scmp.eq.s32.totalorder %s18, 0
      %p113 = por %p111, %p112
      %s114 = ssub.s32 %s12, %s19
      %p115 = scmp.eq.s32.totalorder %s114, 0
      %s117 = sadd.s32 %s116, 1
      %s118 = scalar_select %p115, %s116, %s117
      %p121 = pneg %p115
      %p122 = scmp.eq.s32.totalorder %s12, 1
      %p123 = por %p121, %p122
      %p124 = scmp.ne.s32.totalorder %s116, %s119
      %p125 = scmp.eq.s32.totalorder %s12, 0
      %p126 = por %p124, %p125
      %p127 = scmp.ne.s32.totalorder %s116, %s119
      %p128 = scmp.eq.s32.totalorder %s17, 1
      %p129 = por %p127, %p128
      %p130 = scmp.ne.s32.totalorder %s119, %s120
      %p131 = scmp.eq.s32.totalorder %s17, 0
      %p132 = por %p130, %p131
      %p133 = scmp.ne.s32.totalorder %s119, %s120
      %p134 = scmp.eq.s32.totalorder %s18, 1
      %p135 = por %p133, %p134
      %p137 = scmp.ne.s32.totalorder %s120, %s136
      %p138 = scmp.eq.s32.totalorder %s18, 0
      %p139 = por %p137, %p138
      %s140 = ssub.s32 %s12, %s19
      %p141 = scmp.eq.s32.totalorder %s140, 0
      %s143 = sadd.s32 %s142, 1
      %s144 = scalar_select %p141, %s142, %s143
      %p147 = pneg %p141
      %p148 = scmp.eq.s32.totalorder %s12, 1
      %p149 = por %p147, %p148
      %p150 = scmp.ne.s32.totalorder %s142, %s145
      %p151 = scmp.eq.s32.totalorder %s12, 0
      %p152 = por %p150, %p151
      %p153 = scmp.ne.s32.totalorder %s142, %s145
      %p154 = scmp.eq.s32.totalorder %s17, 1
      %p155 = por %p153, %p154
      %p156 = scmp.ne.s32.totalorder %s145, %s146
      %p157 = scmp.eq.s32.totalorder %s17, 0
      %p158 = por %p156, %p157
      %p159 = scmp.ne.s32.totalorder %s145, %s146
      %p160 = scmp.eq.s32.totalorder %s18, 1
      %p161 = por %p159, %p160
      %p163 = scmp.ne.s32.totalorder %s146, %s162
      %p164 = scmp.eq.s32.totalorder %s18, 0
      %p165 = por %p163, %p164
      %p166 = scmp.le.s32.totalorder 1, %s12
      %p167 = scmp.lt.s32.totalorder %s12, 3
      %p168 = pnand %p166, %p167
      %p169 = pneg %p168
      // Predicated region
      $region9: #{rvq_forward.1} parent=5 // pred_check
        _
      $region10: #{rvq_forward.1} parent=5 // pred_check_branch
        %171 = sbr.rel (%p168) target = $region12
      $region11: #{rvq_forward.1} parent=5 // pred_region
        %s172 = ssub.s32 %s12, 1
        // Predicated region
        $region13: #{rvq_forward.1} parent=11 // pred_check
          %p173 = pneg %p59
        $region14: #{rvq_forward.1} parent=11 // pred_check_branch
          %175 = sbr.rel (%p173) target = $region16
        $region15: #{rvq_forward.1} parent=11 // pred_region
          _
        $region16: #{rvq_forward.1} parent=11 // pred_fallthru
          _
        // Predicated region
        $region17: #{rvq_forward.1} parent=11 // pred_check
          %p176 = pneg %p80
        $region18: #{rvq_forward.1} parent=11 // pred_check_branch
          %178 = sbr.rel (%p176) target = $region20
        $region19: #{rvq_forward.1} parent=11 // pred_region
          _
        $region20: #{rvq_forward.1} parent=11 // pred_fallthru
          _
      $region12: #{rvq_forward.1} parent=5 // pred_fallthru
        _
      %p179 = scmp.lt.s32.totalorder %s12, 2
      // Predicated region
      $region21: #{rvq_forward.1} parent=5 // pred_check
        %p180 = pneg %p179
      $region22: #{rvq_forward.1} parent=5 // pred_check_branch
        %182 = sbr.rel (%p180) target = $region24
      $region23: #{rvq_forward.1} parent=5 // pred_region
        // Predicated region
        $region25: #{rvq_forward.1} parent=23 // pred_check
          %p183 = pneg %p32
        $region26: #{rvq_forward.1} parent=23 // pred_check_branch
          %185 = sbr.rel (%p183) target = $region28
        $region27: #{rvq_forward.1} parent=23 // pred_region
          %s186 = sand.u32 %s22, 1
          %s187 = sand.u32 %s22, 1
          %s188 = smul.addr %s187, 128
          %s189 = scalar_lea.vmem [#allocation2], %s188
          %s190 = smul.u32 4, %s12
          %s191 = smul.addr %s190, 8
          %s192 = scalar_lea.vmem %s0, %s191
          // Predicated region
          $region29: #{rvq_forward.1} parent=27 // pred_check
            _
          $region30: #{rvq_forward.1} parent=27 // pred_check_branch
            %194 = sbr.rel (0) target = $region32
          $region31: #{rvq_forward.1} parent=27 // pred_region
            // Predicated region
            $region33: #{rvq_forward.1} parent=31 // pred_check
              _
            $region34: #{rvq_forward.1} parent=31 // pred_check_branch
              %196 = sbr.rel (0) target = $region36
            $region35: #{rvq_forward.1} parent=31 // pred_region
              loop: start=0, step=1, limit=1
              $region37: #{rvq_forward.1} parent=35 // loop_pre_header
                _
              $region38: #{rvq_forward.1} parent=35 // loop_header
                %s198 = sphi 0, %s202
                %p199 = scmp.ge.s32.totalorder %s198, 1
                %s203 = sphi %s192, %s192
                %s204 = sphi %s189, %s189
              $region39: #{rvq_forward.1} parent=35 // loop_header_branch
                %201 = sbr.rel (%p199) target = $region43
              $region40: #{rvq_forward.1} parent=35 // loop_body
                %v205 = vld [vmem:[%s203] sm:$0xff]
                %206 = vst [vmem:[%s204] sm:$0xff] %v205
                %v207 = vld [vmem:[%s203 + $0x8] sm:$0xff]
                %208 = vst [vmem:[%s204 + $0x8] sm:$0xff] %v207
                %v209 = vld [vmem:[%s203 + $0x10] sm:$0xff]
                %210 = vst [vmem:[%s204 + $0x10] sm:$0xff] %v209
                %v211 = vld [vmem:[%s203 + $0x18] sm:$0xff]
                %212 = vst [vmem:[%s204 + $0x18] sm:$0xff] %v211
                %v213 = vld [vmem:[%s203 + $0x40] sm:$0xff]
                %214 = vst [vmem:[%s204 + $0x20] sm:$0xff] %v213
                %v215 = vld [vmem:[%s203 + $0x48] sm:$0xff]
                %216 = vst [vmem:[%s204 + $0x28] sm:$0xff] %v215
                %v217 = vld [vmem:[%s203 + $0x50] sm:$0xff]
                %218 = vst [vmem:[%s204 + $0x30] sm:$0xff] %v217
                %v219 = vld [vmem:[%s203 + $0x58] sm:$0xff]
                %220 = vst [vmem:[%s204 + $0x38] sm:$0xff] %v219
                %v221 = vld [vmem:[%s203 + $0x80] sm:$0xff]
                %222 = vst [vmem:[%s204 + $0x40] sm:$0xff] %v221
                %v223 = vld [vmem:[%s203 + $0x88] sm:$0xff]
                %224 = vst [vmem:[%s204 + $0x48] sm:$0xff] %v223
                %v225 = vld [vmem:[%s203 + $0x90] sm:$0xff]
                %226 = vst [vmem:[%s204 + $0x50] sm:$0xff] %v225
                %v227 = vld [vmem:[%s203 + $0x98] sm:$0xff]
                %228 = vst [vmem:[%s204 + $0x58] sm:$0xff] %v227
                %v229 = vld [vmem:[%s203 + $0xc0] sm:$0xff]
                %230 = vst [vmem:[%s204 + $0x60] sm:$0xff] %v229
                %v231 = vld [vmem:[%s203 + $0xc8] sm:$0xff]
                %232 = vst [vmem:[%s204 + $0x68] sm:$0xff] %v231
                %v233 = vld [vmem:[%s203 + $0xd0] sm:$0xff]
                %234 = vst [vmem:[%s204 + $0x70] sm:$0xff] %v233
                %v235 = vld [vmem:[%s203 + $0xd8] sm:$0xff]
                %236 = vst [vmem:[%s204 + $0x78] sm:$0xff] %v235
              $region41: #{rvq_forward.1} parent=35 // loop_footer
                %s202 = sadd.s32 1, %s198
              $region42: #{rvq_forward.1} parent=35 // loop_footer_branch
                %197 = sbr.rel target = $region38
              $region43: #{rvq_forward.1} parent=35 // loop_exit
                _
            $region36: #{rvq_forward.1} parent=31 // pred_fallthru
              _
            // Predicated region
            $region44: #{rvq_forward.1} parent=31 // pred_check
              _
            $region45: #{rvq_forward.1} parent=31 // pred_check_branch
              %238 = sbr.rel target = $region47
            $region46: #{rvq_forward.1} parent=31 // pred_region
              _
            $region47: #{rvq_forward.1} parent=31 // pred_fallthru
              _
          $region32: #{rvq_forward.1} parent=27 // pred_fallthru
            _
          %239 = vnop
        $region28: #{rvq_forward.1} parent=23 // pred_fallthru
          _
      $region24: #{rvq_forward.1} parent=5 // pred_fallthru
        _
      %p240 = scmp.le.s32.totalorder 1, %s12
      %p241 = scmp.lt.s32.totalorder %s12, 3
      %p242 = pnand %p240, %p241
      %p243 = pneg %p242
      // Predicated region
      $region48: #{rvq_forward.1} parent=5 // pred_check
        _
      $region49: #{rvq_forward.1} parent=5 // pred_check_branch
        %245 = sbr.rel (%p242) target = $region51
      $region50: #{rvq_forward.1} parent=5 // pred_region
        %s246 = ssub.s32 %s12, 1
        %s247 = sand.u32 %s25, 1
        %s248 = sand.u32 %s25, 1
        %s249 = smul.addr %s248, 128
        %s250 = scalar_lea.vmem [#allocation2], %s249
        // Predicated region
        $region52: #{rvq_forward.1} parent=50 // pred_check
          %p251 = pneg %p38
        $region53: #{rvq_forward.1} parent=50 // pred_check_branch
          %253 = sbr.rel (%p251) target = $region55
        $region54: #{rvq_forward.1} parent=50 // pred_region
          _
        $region55: #{rvq_forward.1} parent=50 // pred_fallthru
          _
        %s254 = sand.u32 %s25, 1
        %s255 = sand.u32 %s25, 1
        %s256 = smul.addr %s255, 128
        %s257 = scalar_lea.vmem [#allocation2], %s256
        %p258 = pneg %p38
        %p259 = pneg %p35
        %p260 = pneg %p59
        %p261 = pneg %p56
        %p262 = pneg %p80
        %p263 = pneg %p77
        %p264 = pneg %p106
        %p265 = pneg %p103
        %s266 = sand.u32 %s93, 1
        %s267 = sand.u32 %s93, 1
        %s268 = smul.addr %s267, 128
        %s269 = scalar_lea.vmem [#allocation3], %s268
        %p270 = pneg %p132
        %p271 = pneg %p129
        %s272 = smul.u32 4, %s17
        %p273 = scmp.lt.s32.totalorder %s272, 7
        %s274 = scalar_select %p273, %s272, 7
        %s275 = smul.addr %s274, 4
        %s276 = scalar_lea.vmem %s4, %s275
        %p277 = pneg %p158
        %p278 = pneg %p155
        %s279 = smul.u32 4, %s17
        %p280 = scmp.lt.s32.totalorder %s279, 7
        %s281 = scalar_select %p280, %s279, 7
        %s282 = smul.addr %s281, 4
        %s283 = scalar_lea.vmem %s5, %s282
        %s284 = smul.u32 4, %s17
        %s285 = smul.u32 4, %s17
        %s286 = smul.u32 4, %s17
        %p287 = scmp.lt.s32.totalorder %s286, 7
        %s288 = scalar_select %p287, %s286, 7
        %s289 = smul.addr %s288, 4
        %s290 = scalar_lea.vmem %s4, %s289
        %s291 = smul.u32 4, %s17
        %s292 = smul.u32 4, %s17
        %p293 = scmp.lt.s32.totalorder %s292, 7
        %s294 = scalar_select %p293, %s292, 7
        %s295 = smul.addr %s294, 4
        %s296 = scalar_lea.vmem %s5, %s295
        %s297 = smul.u32 4, %s17
        %v298 = vld [vmem:[%s250] sm:$0xff]
        %v299 = vld [vmem:[%s250 + $0x8] sm:$0xff]
        %v300 = vld [vmem:[%s250 + $0x10] sm:$0xff]
        %v301 = vld [vmem:[%s250 + $0x18] sm:$0xff]
        %v302 = vld [vmem:[%s250 + $0x20] sm:$0xff]
        %v303 = vld [vmem:[%s250 + $0x28] sm:$0xff]
        %v304 = vld [vmem:[%s250 + $0x30] sm:$0xff]
        %v305 = vld [vmem:[%s250 + $0x38] sm:$0xff]
        %v306 = vld [vmem:[%s250 + $0x40] sm:$0xff]
        %v307 = vld [vmem:[%s250 + $0x48] sm:$0xff]
        %v308 = vld [vmem:[%s250 + $0x50] sm:$0xff]
        %v309 = vld [vmem:[%s250 + $0x58] sm:$0xff]
        %v310 = vld [vmem:[%s250 + $0x60] sm:$0xff]
        %v311 = vld [vmem:[%s250 + $0x68] sm:$0xff]
        %v312 = vld [vmem:[%s250 + $0x70] sm:$0xff]
        %v313 = vld [vmem:[%s250 + $0x78] sm:$0xff]
        %v314 = vlaneseq
        %v315 = vshrl.u32 %v314, 7
        %vm316 = vcmp.eq.s32.totalorder %v315, 0
        %v317 = vsel %vm316, 1, 0
        %v318 = vcvt.s32.f32 %v317
        %v319 = vadd.s32 %v315, 8
        %v320 = vadd.s32 %v315, 16
        %v321 = vadd.s32 %v315, 24
        %v322 = vadd.s32 %v315, 32
        %v323 = vadd.s32 %v315, 40
        %v324 = vadd.s32 %v315, 48
        %v325 = vadd.s32 %v315, 56
        %v326 = vadd.s32 %v315, 64
        %v327 = vadd.s32 %v315, 72
        %v328 = vadd.s32 %v315, 80
        %v329 = vadd.s32 %v315, 88
        %v330 = vadd.s32 %v315, 96
        %v331 = vadd.s32 %v315, 104
        %v332 = vadd.s32 %v315, 112
        %v333 = vadd.s32 %v315, 120
        %v334 = vld [vmem:[%s1] sm:$0xff]
        %v335 = vld [vmem:[%s1 + $0x8] sm:$0xff]
        %v336 = vld [vmem:[%s1 + $0x10] sm:$0xff]
        %v337 = vld [vmem:[%s1 + $0x18] sm:$0xff]
        %v338 = vld [vmem:[%s1 + $0x20] sm:$0xff]
        %v339 = vld [vmem:[%s1 + $0x28] sm:$0xff]
        %v340 = vld [vmem:[%s1 + $0x30] sm:$0xff]
        %v341 = vld [vmem:[%s1 + $0x38] sm:$0xff]
        %v342 = vld [vmem:[%s1 + $0x40] sm:$0xff]
        %v343 = vld [vmem:[%s1 + $0x48] sm:$0xff]
        %v344 = vld [vmem:[%s1 + $0x50] sm:$0xff]
        %v345 = vld [vmem:[%s1 + $0x58] sm:$0xff]
        %v346 = vld [vmem:[%s1 + $0x60] sm:$0xff]
        %v347 = vld [vmem:[%s1 + $0x68] sm:$0xff]
        %v348 = vld [vmem:[%s1 + $0x70] sm:$0xff]
        %v349 = vld [vmem:[%s1 + $0x78] sm:$0xff]
        %v350 = vld [vmem:[%s2] sm:$0xff]
        %v351 = vld [vmem:[%s2 + $0x8] sm:$0xff]
        %v352 = vld [vmem:[%s2 + $0x10] sm:$0xff]
        %v353 = vld [vmem:[%s2 + $0x18] sm:$0xff]
        %v354 = vld [vmem:[%s2 + $0x20] sm:$0xff]
        %vm355 = vcmask 326656
        %v357 = vsel %vm355, %v334, 0
        %v360 = vsel %vm355, %v335, 0
        %v363 = vsel %vm355, %v336, 0
        %v366 = vsel %vm355, %v337, 0
        %v369 = vsel %vm355, %v338, 0
        %v372 = vsel %vm355, %v339, 0
        %v375 = vsel %vm355, %v340, 0
        %v378 = vsel %vm355, %v341, 0
        %v381 = vsel %vm355, %v342, 0
        %v384 = vsel %vm355, %v343, 0
        %v387 = vsel %vm355, %v344, 0
        %v390 = vsel %vm355, %v345, 0
        %v393 = vsel %vm355, %v346, 0
        %v396 = vsel %vm355, %v347, 0
        %v399 = vsel %vm355, %v348, 0
        %v402 = vsel %vm355, %v349, 0
        %404 = vmatprep.subr.mxu0 %v299
        %405 = vmatpush1.msra.mxu0 %v298
        %406 = vmatprep.subr.mxu0 %v303
        %407 = vmatpush1.msra.mxu0 %v302
        %408 = vmatprep.subr.mxu0 %v307
        %409 = vmatpush1.msra.mxu0 %v306
        %410 = vmatprep.subr.mxu0 %v311
        %411 = vmatpush1.msra.mxu0 %v310
        %412 = vmatprep.subr.mxu0 %v318
        %413 = vmatpush1.msra.mxu0 %v318
        %414 = vmatprep.subr.mxu0 0.0
        %415 = vmatpush1.msra.mxu0 0.0
        %416 = vmatprep.subr.mxu0 0.0
        %417 = vmatpush1.msra.mxu0 0.0
        %418 = vmatprep.subr.mxu0 0.0
        %419 = vmatpush1.msra.mxu0 0.0
        %420 = vmatprep.subr.mxu0 0.0
        %421 = vmatpush1.msra.mxu0 0.0
        %422 = vmatprep.subr.mxu0 0.0
        %423 = vmatpush1.msra.mxu0 0.0
        %424 = vmatprep.subr.mxu0 0.0
        %425 = vmatpush1.msra.mxu0 0.0
        %426 = vmatprep.subr.mxu0 0.0
        %427 = vmatpush1.msra.mxu0 0.0
        %428 = vmatprep.subr.mxu0 0.0
        %429 = vmatpush1.msra.mxu0 0.0
        %430 = vmatprep.subr.mxu0 0.0
        %431 = vmatpush1.msra.mxu0 0.0
        %432 = vmatprep.subr.mxu0 0.0
        %433 = vmatpush1.msra.mxu0 0.0
        %434 = vmatprep.subr.mxu0 0.0
        %435 = vmatpush1.msra.mxu0 0.0
        %436 = vmatprep.subr.mxu0 0.0
        %437 = vmatpush1.msra.mxu0 0.0
        %438 = vmatprep.subr.mxu0 0.0
        %439 = vmatpush1.msra.mxu0 0.0
        %440 = vmatprep.subr.mxu0 0.0
        %441 = vmatpush1.msra.mxu0 0.0
        %442 = vmatprep.subr.mxu0 0.0
        %443 = vmatpush1.msra.mxu0 0.0
        %444 = vmatprep.subr.mxu0 0.0
        %445 = vmatpush1.msra.mxu0 0.0
        %446 = vmatprep.subr.mxu0 0.0
        %447 = vmatpush1.msra.mxu0 0.0
        %448 = vmatprep.subr.mxu0 0.0
        %449 = vmatpush1.msra.mxu0 0.0
        %450 = vmatprep.subr.mxu0 0.0
        %451 = vmatpush1.msra.mxu0 0.0
        %452 = vmatprep.subr.mxu0 0.0
        %453 = vmatpush1.msra.mxu0 0.0
        %454 = vmatprep.subr.mxu0 0.0
        %455 = vmatpush1.msra.mxu0 0.0
        %456 = vmatprep.subr.mxu0 0.0
        %457 = vmatpush1.msra.mxu0 0.0
        %458 = vmatprep.subr.mxu0 0.0
        %459 = vmatpush1.msra.mxu0 0.0
        %460 = vmatprep.subr.mxu0 0.0
        %461 = vmatpush1.msra.mxu0 0.0
        %462 = vmatprep.subr.mxu0 0.0
        %463 = vmatpush1.msra.mxu0 0.0
        %464 = vmatprep.subr.mxu0 0.0
        %465 = vmatpush1.msra.mxu0 0.0
        %466 = vmatprep.subr.mxu0 0.0
        %467 = vmatpush1.msra.mxu0 0.0
        %468 = vmatprep.mubr.f32.mxu0 0.0
        %469 = vmatmul.mubr.f32.gmra.mrb[0].mxu0 %v357
        %v470 = vpop.f32.mrb[0].mxu0
        %v471 = vadd.f32 0.0, %v470
        %v472 = vpop.f32.mrb[0].mxu0
        %v473 = vadd.f32 0.0, %v472
        %474 = vmatprep.mubr.f32.mxu0 0.0
        %475 = vmatmul.mubr.f32.gmra.mrb[0].mxu0 %v360
        %v476 = vpop.f32.mrb[0].mxu0
        %v477 = vadd.f32 0.0, %v476
        %v478 = vpop.f32.mrb[0].mxu0
        %v479 = vadd.f32 0.0, %v478
        %480 = vmatprep.mubr.f32.mxu0 0.0
        %481 = vmatmul.mubr.f32.gmra.mrb[0].mxu0 %v363
        %v482 = vpop.f32.mrb[0].mxu0
        %v483 = vadd.f32 0.0, %v482
        %v484 = vpop.f32.mrb[0].mxu0
        %v485 = vadd.f32 0.0, %v484
        %486 = vmatprep.mubr.f32.mxu0 0.0
        %487 = vmatmul.mubr.f32.gmra.mrb[0].mxu0 %v366
        %v488 = vpop.f32.mrb[0].mxu0
        %v489 = vadd.f32 0.0, %v488
        %v490 = vpop.f32.mrb[0].mxu0
        %v491 = vadd.f32 0.0, %v490
        %492 = vmatprep.mubr.f32.mxu0 0.0
        %493 = vmatmul.mubr.f32.gmra.mrb[0].mxu0 %v369
        %v494 = vpop.f32.mrb[0].mxu0
        %v495 = vadd.f32 0.0, %v494
        %v496 = vpop.f32.mrb[0].mxu0
        %v497 = vadd.f32 0.0, %v496
        %498 = vmatprep.mubr.f32.mxu0 0.0
        %499 = vmatmul.mubr.f32.gmra.mrb[0].mxu0 %v372
        %v500 = vpop.f32.mrb[0].mxu0
        %v501 = vadd.f32 0.0, %v500
        %v502 = vpop.f32.mrb[0].mxu0
        %v503 = vadd.f32 0.0, %v502
        %504 = vmatprep.mubr.f32.mxu0 0.0
        %505 = vmatmul.mubr.f32.gmra.mrb[0].mxu0 %v375
        %v506 = vpop.f32.mrb[0].mxu0
        %v507 = vadd.f32 0.0, %v506
        %v508 = vpop.f32.mrb[0].mxu0
        %v509 = vadd.f32 0.0, %v508
        %510 = vmatprep.mubr.f32.mxu0 0.0
        %511 = vmatmul.mubr.f32.gmra.mrb[0].mxu0 %v378
        %v512 = vpop.f32.mrb[0].mxu0
        %v513 = vadd.f32 0.0, %v512
        %v514 = vpop.f32.mrb[0].mxu0
        %v515 = vadd.f32 0.0, %v514
        %516 = vmatprep.mubr.f32.mxu0 0.0
        %517 = vmatmul.mubr.f32.gmra.mrb[0].mxu0 %v381
        %v518 = vpop.f32.mrb[0].mxu0
        %v519 = vadd.f32 0.0, %v518
        %v520 = vpop.f32.mrb[0].mxu0
        %v521 = vadd.f32 0.0, %v520
        %522 = vmatprep.mubr.f32.mxu0 0.0
        %523 = vmatmul.mubr.f32.gmra.mrb[0].mxu0 %v384
        %v524 = vpop.f32.mrb[0].mxu0
        %v525 = vadd.f32 0.0, %v524
        %v526 = vpop.f32.mrb[0].mxu0
        %v527 = vadd.f32 0.0, %v526
        %528 = vmatprep.mubr.f32.mxu0 0.0
        %529 = vmatmul.mubr.f32.gmra.mrb[0].mxu0 %v387
        %v530 = vpop.f32.mrb[0].mxu0
        %v531 = vadd.f32 0.0, %v530
        %v532 = vpop.f32.mrb[0].mxu0
        %v533 = vadd.f32 0.0, %v532
        %534 = vmatprep.mubr.f32.mxu0 0.0
        %535 = vmatmul.mubr.f32.gmra.mrb[0].mxu0 %v390
        %v536 = vpop.f32.mrb[0].mxu0
        %v537 = vadd.f32 0.0, %v536
        %v538 = vpop.f32.mrb[0].mxu0
        %v539 = vadd.f32 0.0, %v538
        %540 = vmatprep.mubr.f32.mxu0 0.0
        %541 = vmatmul.mubr.f32.gmra.mrb[0].mxu0 %v393
        %v542 = vpop.f32.mrb[0].mxu0
        %v543 = vadd.f32 0.0, %v542
        %v544 = vpop.f32.mrb[0].mxu0
        %v545 = vadd.f32 0.0, %v544
        %546 = vmatprep.mubr.f32.mxu0 0.0
        %547 = vmatmul.mubr.f32.gmra.mrb[0].mxu0 %v396
        %v548 = vpop.f32.mrb[0].mxu0
        %v549 = vadd.f32 0.0, %v548
        %v550 = vpop.f32.mrb[0].mxu0
        %v551 = vadd.f32 0.0, %v550
        %552 = vmatprep.mubr.f32.mxu0 0.0
        %553 = vmatmul.mubr.f32.gmra.mrb[0].mxu0 %v399
        %v554 = vpop.f32.mrb[0].mxu0
        %v555 = vadd.f32 0.0, %v554
        %v556 = vpop.f32.mrb[0].mxu0
        %v557 = vadd.f32 0.0, %v556
        %558 = vmatprep.mubr.f32.mxu0 0.0
        %559 = vmatmul.mubr.f32.gmra.mrb[0].mxu0 %v402
        %v560 = vpop.f32.mrb[0].mxu0
        %v561 = vadd.f32 0.0, %v560
        %v562 = vpop.f32.mrb[0].mxu0
        %v563 = vadd.f32 0.0, %v562
        %564 = vdwg.mxu0
        %565 = vmatprep.subr.mxu0 %v301
        %566 = vmatpush1.msra.mxu0 %v300
        %567 = vmatprep.subr.mxu0 %v305
        %568 = vmatpush1.msra.mxu0 %v304
        %569 = vmatprep.subr.mxu0 %v309
        %570 = vmatpush1.msra.mxu0 %v308
        %571 = vmatprep.subr.mxu0 %v313
        %572 = vmatpush1.msra.mxu0 %v312
        %573 = vmatprep.subr.mxu0 %v318
        %574 = vmatpush1.msra.mxu0 %v318
        %575 = vmatprep.subr.mxu0 0.0
        %576 = vmatpush1.msra.mxu0 0.0
        %577 = vmatprep.subr.mxu0 0.0
        %578 = vmatpush1.msra.mxu0 0.0
        %579 = vmatprep.subr.mxu0 0.0
        %580 = vmatpush1.msra.mxu0 0.0
        %581 = vmatprep.subr.mxu0 0.0
        %582 = vmatpush1.msra.mxu0 0.0
        %583 = vmatprep.subr.mxu0 0.0
        %584 = vmatpush1.msra.mxu0 0.0
        %585 = vmatprep.subr.mxu0 0.0
        %586 = vmatpush1.msra.mxu0 0.0
        %587 = vmatprep.subr.mxu0 0.0
        %588 = vmatpush1.msra.mxu0 0.0
        %589 = vmatprep.subr.mxu0 0.0
        %590 = vmatpush1.msra.mxu0 0.0
        %591 = vmatprep.subr.mxu0 0.0
        %592 = vmatpush1.msra.mxu0 0.0
        %593 = vmatprep.subr.mxu0 0.0
        %594 = vmatpush1.msra.mxu0 0.0
        %595 = vmatprep.subr.mxu0 0.0
        %596 = vmatpush1.msra.mxu0 0.0
        %597 = vmatprep.subr.mxu0 0.0
        %598 = vmatpush1.msra.mxu0 0.0
        %599 = vmatprep.subr.mxu0 0.0
        %600 = vmatpush1.msra.mxu0 0.0
        %601 = vmatprep.subr.mxu0 0.0
        %602 = vmatpush1.msra.mxu0 0.0
        %603 = vmatprep.subr.mxu0 0.0
        %604 = vmatpush1.msra.mxu0 0.0
        %605 = vmatprep.subr.mxu0 0.0
        %606 = vmatpush1.msra.mxu0 0.0
        %607 = vmatprep.subr.mxu0 0.0
        %608 = vmatpush1.msra.mxu0 0.0
        %609 = vmatprep.subr.mxu0 0.0
        %610 = vmatpush1.msra.mxu0 0.0
        %611 = vmatprep.subr.mxu0 0.0
        %612 = vmatpush1.msra.mxu0 0.0
        %613 = vmatprep.subr.mxu0 0.0
        %614 = vmatpush1.msra.mxu0 0.0
        %615 = vmatprep.subr.mxu0 0.0
        %616 = vmatpush1.msra.mxu0 0.0
        %617 = vmatprep.subr.mxu0 0.0
        %618 = vmatpush1.msra.mxu0 0.0
        %619 = vmatprep.subr.mxu0 0.0
        %620 = vmatpush1.msra.mxu0 0.0
        %621 = vmatprep.subr.mxu0 0.0
        %622 = vmatpush1.msra.mxu0 0.0
        %623 = vmatprep.subr.mxu0 0.0
        %624 = vmatpush1.msra.mxu0 0.0
        %625 = vmatprep.subr.mxu0 0.0
        %626 = vmatpush1.msra.mxu0 0.0
        %627 = vmatprep.subr.mxu0 0.0
        %628 = vmatpush1.msra.mxu0 0.0
        %629 = vmatprep.mubr.f32.mxu0 0.0
        %630 = vmatmul.mubr.f32.gmra.mrb[0].mxu0 %v357
        %v631 = vpop.f32.mrb[0].mxu0
        %v632 = vadd.f32 0.0, %v631
        %v633 = vpop.f32.mrb[0].mxu0
        %v634 = vadd.f32 0.0, %v633
        %635 = vmatprep.mubr.f32.mxu0 0.0
        %636 = vmatmul.mubr.f32.gmra.mrb[0].mxu0 %v360
        %v637 = vpop.f32.mrb[0].mxu0
        %v638 = vadd.f32 0.0, %v637
        %v639 = vpop.f32.mrb[0].mxu0
        %v640 = vadd.f32 0.0, %v639
        %641 = vmatprep.mubr.f32.mxu0 0.0
        %642 = vmatmul.mubr.f32.gmra.mrb[0].mxu0 %v363
        %v643 = vpop.f32.mrb[0].mxu0
        %v644 = vadd.f32 0.0, %v643
        %v645 = vpop.f32.mrb[0].mxu0
        %v646 = vadd.f32 0.0, %v645
        %647 = vmatprep.mubr.f32.mxu0 0.0
        %648 = vmatmul.mubr.f32.gmra.mrb[0].mxu0 %v366
        %v649 = vpop.f32.mrb[0].mxu0
        %v650 = vadd.f32 0.0, %v649
        %v651 = vpop.f32.mrb[0].mxu0
        %v652 = vadd.f32 0.0, %v651
        %653 = vmatprep.mubr.f32.mxu0 0.0
        %654 = vmatmul.mubr.f32.gmra.mrb[0].mxu0 %v369
        %v655 = vpop.f32.mrb[0].mxu0
        %v656 = vadd.f32 0.0, %v655
        %v657 = vpop.f32.mrb[0].mxu0
        %v658 = vadd.f32 0.0, %v657
        %659 = vmatprep.mubr.f32.mxu0 0.0
        %660 = vmatmul.mubr.f32.gmra.mrb[0].mxu0 %v372
        %v661 = vpop.f32.mrb[0].mxu0
        %v662 = vadd.f32 0.0, %v661
        %v663 = vpop.f32.mrb[0].mxu0
        %v664 = vadd.f32 0.0, %v663
        %665 = vmatprep.mubr.f32.mxu0 0.0
        %666 = vmatmul.mubr.f32.gmra.mrb[0].mxu0 %v375
        %v667 = vpop.f32.mrb[0].mxu0
        %v668 = vadd.f32 0.0, %v667
        %v669 = vpop.f32.mrb[0].mxu0
        %v670 = vadd.f32 0.0, %v669
        %671 = vmatprep.mubr.f32.mxu0 0.0
        %672 = vmatmul.mubr.f32.gmra.mrb[0].mxu0 %v378
        %v673 = vpop.f32.mrb[0].mxu0
        %v674 = vadd.f32 0.0, %v673
        %v675 = vpop.f32.mrb[0].mxu0
        %v676 = vadd.f32 0.0, %v675
        %677 = vmatprep.mubr.f32.mxu0 0.0
        %678 = vmatmul.mubr.f32.gmra.mrb[0].mxu0 %v381
        %v679 = vpop.f32.mrb[0].mxu0
        %v680 = vadd.f32 0.0, %v679
        %v681 = vpop.f32.mrb[0].mxu0
        %v682 = vadd.f32 0.0, %v681
        %683 = vmatprep.mubr.f32.mxu0 0.0
        %684 = vmatmul.mubr.f32.gmra.mrb[0].mxu0 %v384
        %v685 = vpop.f32.mrb[0].mxu0
        %v686 = vadd.f32 0.0, %v685
        %v687 = vpop.f32.mrb[0].mxu0
        %v688 = vadd.f32 0.0, %v687
        %689 = vmatprep.mubr.f32.mxu0 0.0
        %690 = vmatmul.mubr.f32.gmra.mrb[0].mxu0 %v387
        %v691 = vpop.f32.mrb[0].mxu0
        %v692 = vadd.f32 0.0, %v691
        %v693 = vpop.f32.mrb[0].mxu0
        %v694 = vadd.f32 0.0, %v693
        %695 = vmatprep.mubr.f32.mxu0 0.0
        %696 = vmatmul.mubr.f32.gmra.mrb[0].mxu0 %v390
        %v697 = vpop.f32.mrb[0].mxu0
        %v698 = vadd.f32 0.0, %v697
        %v699 = vpop.f32.mrb[0].mxu0
        %v700 = vadd.f32 0.0, %v699
        %701 = vmatprep.mubr.f32.mxu0 0.0
        %702 = vmatmul.mubr.f32.gmra.mrb[0].mxu0 %v393
        %v703 = vpop.f32.mrb[0].mxu0
        %v704 = vadd.f32 0.0, %v703
        %v705 = vpop.f32.mrb[0].mxu0
        %v706 = vadd.f32 0.0, %v705
        %707 = vmatprep.mubr.f32.mxu0 0.0
        %708 = vmatmul.mubr.f32.gmra.mrb[0].mxu0 %v396
        %v709 = vpop.f32.mrb[0].mxu0
        %v710 = vadd.f32 0.0, %v709
        %v711 = vpop.f32.mrb[0].mxu0
        %v712 = vadd.f32 0.0, %v711
        %713 = vmatprep.mubr.f32.mxu0 0.0
        %714 = vmatmul.mubr.f32.gmra.mrb[0].mxu0 %v399
        %v715 = vpop.f32.mrb[0].mxu0
        %v716 = vadd.f32 0.0, %v715
        %v717 = vpop.f32.mrb[0].mxu0
        %v718 = vadd.f32 0.0, %v717
        %719 = vmatprep.mubr.f32.mxu0 0.0
        %720 = vmatmul.mubr.f32.gmra.mrb[0].mxu0 %v402
        %v721 = vpop.f32.mrb[0].mxu0
        %v722 = vadd.f32 0.0, %v721
        %v723 = vpop.f32.mrb[0].mxu0
        %v724 = vadd.f32 0.0, %v723
        %725 = vdwg.mxu0
        %v726 = vmin.f32 %v471, %v477
        %v727 = vmin.f32 %v726, %v483
        %v728 = vmin.f32 %v727, %v489
        %v729 = vmin.f32 %v728, %v495
        %v730 = vmin.f32 %v729, %v501
        %v731 = vmin.f32 %v730, %v507
        %v732 = vmin.f32 %v731, %v513
        %v733 = vmin.f32 %v732, %v519
        %v734 = vmin.f32 %v733, %v525
        %v735 = vmin.f32 %v734, %v531
        %v736 = vmin.f32 %v735, %v537
        %v737 = vmin.f32 %v736, %v543
        %v738 = vmin.f32 %v737, %v549
        %v739 = vmin.f32 %v738, %v555
        %v740 = vmin.f32 %v739, %v561
        %v741 = vrot.slane %v740, 4
        %v742 = vmin.f32 %v740, %v741
        %v743 = vrot.slane %v742, 2
        %v744 = vmin.f32 %v742, %v743
        %v745 = vrot.slane %v744, 1
        %v746 = vmin.f32 %v744, %v745
        %v747 = vmin.f32 %v473, %v479
        %v748 = vmin.f32 %v747, %v485
        %v749 = vmin.f32 %v748, %v491
        %v750 = vmin.f32 %v749, %v497
        %v751 = vmin.f32 %v750, %v503
        %v752 = vmin.f32 %v751, %v509
        %v753 = vmin.f32 %v752, %v515
        %v754 = vmin.f32 %v753, %v521
        %v755 = vmin.f32 %v754, %v527
        %v756 = vmin.f32 %v755, %v533
        %v757 = vmin.f32 %v756, %v539
        %v758 = vmin.f32 %v757, %v545
        %v759 = vmin.f32 %v758, %v551
        %v760 = vmin.f32 %v759, %v557
        %v761 = vmin.f32 %v760, %v563
        %v762 = vrot.slane %v761, 4
        %v763 = vmin.f32 %v761, %v762
        %v764 = vrot.slane %v763, 2
        %v765 = vmin.f32 %v763, %v764
        %v766 = vrot.slane %v765, 1
        %v767 = vmin.f32 %v765, %v766
        %v768 = vmin.f32 %v632, %v638
        %v769 = vmin.f32 %v768, %v644
        %v770 = vmin.f32 %v769, %v650
        %v771 = vmin.f32 %v770, %v656
        %v772 = vmin.f32 %v771, %v662
        %v773 = vmin.f32 %v772, %v668
        %v774 = vmin.f32 %v773, %v674
        %v775 = vmin.f32 %v774, %v680
        %v776 = vmin.f32 %v775, %v686
        %v777 = vmin.f32 %v776, %v692
        %v778 = vmin.f32 %v777, %v698
        %v779 = vmin.f32 %v778, %v704
        %v780 = vmin.f32 %v779, %v710
        %v781 = vmin.f32 %v780, %v716
        %v782 = vmin.f32 %v781, %v722
        %v783 = vrot.slane %v782, 4
        %v784 = vmin.f32 %v782, %v783
        %v785 = vrot.slane %v784, 2
        %v786 = vmin.f32 %v784, %v785
        %v787 = vrot.slane %v786, 1
        %v788 = vmin.f32 %v786, %v787
        %v789 = vmin.f32 %v634, %v640
        %v790 = vmin.f32 %v789, %v646
        %v791 = vmin.f32 %v790, %v652
        %v792 = vmin.f32 %v791, %v658
        %v793 = vmin.f32 %v792, %v664
        %v794 = vmin.f32 %v793, %v670
        %v795 = vmin.f32 %v794, %v676
        %v796 = vmin.f32 %v795, %v682
        %v797 = vmin.f32 %v796, %v688
        %v798 = vmin.f32 %v797, %v694
        %v799 = vmin.f32 %v798, %v700
        %v800 = vmin.f32 %v799, %v706
        %v801 = vmin.f32 %v800, %v712
        %v802 = vmin.f32 %v801, %v718
        %v803 = vmin.f32 %v802, %v724
        %v804 = vrot.slane %v803, 4
        %v805 = vmin.f32 %v803, %v804
        %v806 = vrot.slane %v805, 2
        %v807 = vmin.f32 %v805, %v806
        %v808 = vrot.slane %v807, 1
        %v809 = vmin.f32 %v807, %v808
        %vm810 = vcmp.eq.f32.partialorder %v471, %v746
        %vm811 = vcmp.eq.f32.partialorder %v473, %v767
        %vm812 = vcmp.eq.f32.partialorder %v632, %v788
        %vm813 = vcmp.eq.f32.partialorder %v634, %v809
        %vm814 = vcmp.eq.f32.partialorder %v477, %v746
        %vm815 = vcmp.eq.f32.partialorder %v479, %v767
        %vm816 = vcmp.eq.f32.partialorder %v638, %v788
        %vm817 = vcmp.eq.f32.partialorder %v640, %v809
        %vm818 = vcmp.eq.f32.partialorder %v483, %v746
        %vm819 = vcmp.eq.f32.partialorder %v485, %v767
        %vm820 = vcmp.eq.f32.partialorder %v644, %v788
        %vm821 = vcmp.eq.f32.partialorder %v646, %v809
        %vm822 = vcmp.eq.f32.partialorder %v489, %v746
        %vm823 = vcmp.eq.f32.partialorder %v491, %v767
        %vm824 = vcmp.eq.f32.partialorder %v650, %v788
        %vm825 = vcmp.eq.f32.partialorder %v652, %v809
        %vm826 = vcmp.eq.f32.partialorder %v495, %v746
        %vm827 = vcmp.eq.f32.partialorder %v497, %v767
        %vm828 = vcmp.eq.f32.partialorder %v656, %v788
        %vm829 = vcmp.eq.f32.partialorder %v658, %v809
        %vm830 = vcmp.eq.f32.partialorder %v501, %v746
        %vm831 = vcmp.eq.f32.partialorder %v503, %v767
        %vm832 = vcmp.eq.f32.partialorder %v662, %v788
        %vm833 = vcmp.eq.f32.partialorder %v664, %v809
        %vm834 = vcmp.eq.f32.partialorder %v507, %v746
        %vm835 = vcmp.eq.f32.partialorder %v509, %v767
        %vm836 = vcmp.eq.f32.partialorder %v668, %v788
        %vm837 = vcmp.eq.f32.partialorder %v670, %v809
        %vm838 = vcmp.eq.f32.partialorder %v513, %v746
        %vm839 = vcmp.eq.f32.partialorder %v515, %v767
        %vm840 = vcmp.eq.f32.partialorder %v674, %v788
        %vm841 = vcmp.eq.f32.partialorder %v676, %v809
        %vm842 = vcmp.eq.f32.partialorder %v519, %v746
        %vm843 = vcmp.eq.f32.partialorder %v521, %v767
        %vm844 = vcmp.eq.f32.partialorder %v680, %v788
        %vm845 = vcmp.eq.f32.partialorder %v682, %v809
        %vm846 = vcmp.eq.f32.partialorder %v525, %v746
        %vm847 = vcmp.eq.f32.partialorder %v527, %v767
        %vm848 = vcmp.eq.f32.partialorder %v686, %v788
        %vm849 = vcmp.eq.f32.partialorder %v688, %v809
        %vm850 = vcmp.eq.f32.partialorder %v531, %v746
        %vm851 = vcmp.eq.f32.partialorder %v533, %v767
        %vm852 = vcmp.eq.f32.partialorder %v692, %v788
        %vm853 = vcmp.eq.f32.partialorder %v694, %v809
        %vm854 = vcmp.eq.f32.partialorder %v537, %v746
        %vm855 = vcmp.eq.f32.partialorder %v539, %v767
        %vm856 = vcmp.eq.f32.partialorder %v698, %v788
        %vm857 = vcmp.eq.f32.partialorder %v700, %v809
        %vm858 = vcmp.eq.f32.partialorder %v543, %v746
        %vm859 = vcmp.eq.f32.partialorder %v545, %v767
        %vm860 = vcmp.eq.f32.partialorder %v704, %v788
        %vm861 = vcmp.eq.f32.partialorder %v706, %v809
        %vm862 = vcmp.eq.f32.partialorder %v549, %v746
        %vm863 = vcmp.eq.f32.partialorder %v551, %v767
        %vm864 = vcmp.eq.f32.partialorder %v710, %v788
        %vm865 = vcmp.eq.f32.partialorder %v712, %v809
        %vm866 = vcmp.eq.f32.partialorder %v555, %v746
        %vm867 = vcmp.eq.f32.partialorder %v557, %v767
        %vm868 = vcmp.eq.f32.partialorder %v716, %v788
        %vm869 = vcmp.eq.f32.partialorder %v718, %v809
        %vm870 = vcmp.eq.f32.partialorder %v561, %v746
        %vm871 = vcmp.eq.f32.partialorder %v563, %v767
        %vm872 = vcmp.eq.f32.partialorder %v722, %v788
        %vm873 = vcmp.eq.f32.partialorder %v724, %v809
        %v874 = vsel %vm810, %v315, 128
        %v875 = vsel %vm811, %v315, 128
        %v876 = vsel %vm812, %v315, 128
        %v877 = vsel %vm813, %v315, 128
        %v878 = vsel %vm814, %v319, 128
        %v879 = vsel %vm815, %v319, 128
        %v880 = vsel %vm816, %v319, 128
        %v881 = vsel %vm817, %v319, 128
        %v882 = vsel %vm818, %v320, 128
        %v883 = vsel %vm819, %v320, 128
        %v884 = vsel %vm820, %v320, 128
        %v885 = vsel %vm821, %v320, 128
        %v886 = vsel %vm822, %v321, 128
        %v887 = vsel %vm823, %v321, 128
        %v888 = vsel %vm824, %v321, 128
        %v889 = vsel %vm825, %v321, 128
        %v890 = vsel %vm826, %v322, 128
        %v891 = vsel %vm827, %v322, 128
        %v892 = vsel %vm828, %v322, 128
        %v893 = vsel %vm829, %v322, 128
        %v894 = vsel %vm830, %v323, 128
        %v895 = vsel %vm831, %v323, 128
        %v896 = vsel %vm832, %v323, 128
        %v897 = vsel %vm833, %v323, 128
        %v898 = vsel %vm834, %v324, 128
        %v899 = vsel %vm835, %v324, 128
        %v900 = vsel %vm836, %v324, 128
        %v901 = vsel %vm837, %v324, 128
        %v902 = vsel %vm838, %v325, 128
        %v903 = vsel %vm839, %v325, 128
        %v904 = vsel %vm840, %v325, 128
        %v905 = vsel %vm841, %v325, 128
        %v906 = vsel %vm842, %v326, 128
        %v907 = vsel %vm843, %v326, 128
        %v908 = vsel %vm844, %v326, 128
        %v909 = vsel %vm845, %v326, 128
        %v910 = vsel %vm846, %v327, 128
        %v911 = vsel %vm847, %v327, 128
        %v912 = vsel %vm848, %v327, 128
        %v913 = vsel %vm849, %v327, 128
        %v914 = vsel %vm850, %v328, 128
        %v915 = vsel %vm851, %v328, 128
        %v916 = vsel %vm852, %v328, 128
        %v917 = vsel %vm853, %v328, 128
        %v918 = vsel %vm854, %v329, 128
        %v919 = vsel %vm855, %v329, 128
        %v920 = vsel %vm856, %v329, 128
        %v921 = vsel %vm857, %v329, 128
        %v922 = vsel %vm858, %v330, 128
        %v923 = vsel %vm859, %v330, 128
        %v924 = vsel %vm860, %v330, 128
        %v925 = vsel %vm861, %v330, 128
        %v926 = vsel %vm862, %v331, 128
        %v927 = vsel %vm863, %v331, 128
        %v928 = vsel %vm864, %v331, 128
        %v929 = vsel %vm865, %v331, 128
        %v930 = vsel %vm866, %v332, 128
        %v931 = vsel %vm867, %v332, 128
        %v932 = vsel %vm868, %v332, 128
        %v933 = vsel %vm869, %v332, 128
        %v934 = vsel %vm870, %v333, 128
        %v935 = vsel %vm871, %v333, 128
        %v936 = vsel %vm872, %v333, 128
        %v937 = vsel %vm873, %v333, 128
        %vm938 = vcmp.lt.s32.totalorder %v874, %v878
        %v939 = vsel %vm938, %v874, %v878
        %vm940 = vcmp.lt.s32.totalorder %v939, %v882
        %v941 = vsel %vm940, %v939, %v882
        %vm942 = vcmp.lt.s32.totalorder %v941, %v886
        %v943 = vsel %vm942, %v941, %v886
        %vm944 = vcmp.lt.s32.totalorder %v943, %v890
        %v945 = vsel %vm944, %v943, %v890
        %vm946 = vcmp.lt.s32.totalorder %v945, %v894
        %v947 = vsel %vm946, %v945, %v894
        %vm948 = vcmp.lt.s32.totalorder %v947, %v898
        %v949 = vsel %vm948, %v947, %v898
        %vm950 = vcmp.lt.s32.totalorder %v949, %v902
        %v951 = vsel %vm950, %v949, %v902
        %vm952 = vcmp.lt.s32.totalorder %v951, %v906
        %v953 = vsel %vm952, %v951, %v906
        %vm954 = vcmp.lt.s32.totalorder %v953, %v910
        %v955 = vsel %vm954, %v953, %v910
        %vm956 = vcmp.lt.s32.totalorder %v955, %v914
        %v957 = vsel %vm956, %v955, %v914
        %vm958 = vcmp.lt.s32.totalorder %v957, %v918
        %v959 = vsel %vm958, %v957, %v918
        %vm960 = vcmp.lt.s32.totalorder %v959, %v922
        %v961 = vsel %vm960, %v959, %v922
        %vm962 = vcmp.lt.s32.totalorder %v961, %v926
        %v963 = vsel %vm962, %v961, %v926
        %vm964 = vcmp.lt.s32.totalorder %v963, %v930
        %v965 = vsel %vm964, %v963, %v930
        %vm966 = vcmp.lt.s32.totalorder %v965, %v934
        %v967 = vsel %vm966, %v965, %v934
        %v968 = vrot.slane %v967, 4
        %vm969 = vcmp.lt.s32.totalorder %v967, %v968
        %v970 = vsel %vm969, %v967, %v968
        %v971 = vrot.slane %v970, 2
        %vm972 = vcmp.lt.s32.totalorder %v970, %v971
        %v973 = vsel %vm972, %v970, %v971
        %v974 = vrot.slane %v973, 1
        %vm975 = vcmp.lt.s32.totalorder %v973, %v974
        %v976 = vsel %vm975, %v973, %v974
        %vm977 = vcmp.lt.s32.totalorder %v875, %v879
        %v978 = vsel %vm977, %v875, %v879
        %vm979 = vcmp.lt.s32.totalorder %v978, %v883
        %v980 = vsel %vm979, %v978, %v883
        %vm981 = vcmp.lt.s32.totalorder %v980, %v887
        %v982 = vsel %vm981, %v980, %v887
        %vm983 = vcmp.lt.s32.totalorder %v982, %v891
        %v984 = vsel %vm983, %v982, %v891
        %vm985 = vcmp.lt.s32.totalorder %v984, %v895
        %v986 = vsel %vm985, %v984, %v895
        %vm987 = vcmp.lt.s32.totalorder %v986, %v899
        %v988 = vsel %vm987, %v986, %v899
        %vm989 = vcmp.lt.s32.totalorder %v988, %v903
        %v990 = vsel %vm989, %v988, %v903
        %vm991 = vcmp.lt.s32.totalorder %v990, %v907
        %v992 = vsel %vm991, %v990, %v907
        %vm993 = vcmp.lt.s32.totalorder %v992, %v911
        %v994 = vsel %vm993, %v992, %v911
        %vm995 = vcmp.lt.s32.totalorder %v994, %v915
        %v996 = vsel %vm995, %v994, %v915
        %vm997 = vcmp.lt.s32.totalorder %v996, %v919
        %v998 = vsel %vm997, %v996, %v919
        %vm999 = vcmp.lt.s32.totalorder %v998, %v923
        %v1000 = vsel %vm999, %v998, %v923
        %vm1001 = vcmp.lt.s32.totalorder %v1000, %v927
        %v1002 = vsel %vm1001, %v1000, %v927
        %vm1003 = vcmp.lt.s32.totalorder %v1002, %v931
        %v1004 = vsel %vm1003, %v1002, %v931
        %vm1005 = vcmp.lt.s32.totalorder %v1004, %v935
        %v1006 = vsel %vm1005, %v1004, %v935
        %v1007 = vrot.slane %v1006, 4
        %vm1008 = vcmp.lt.s32.totalorder %v1006, %v1007
        %v1009 = vsel %vm1008, %v1006, %v1007
        %v1010 = vrot.slane %v1009, 2
        %vm1011 = vcmp.lt.s32.totalorder %v1009, %v1010
        %v1012 = vsel %vm1011, %v1009, %v1010
        %v1013 = vrot.slane %v1012, 1
        %vm1014 = vcmp.lt.s32.totalorder %v1012, %v1013
        %v1015 = vsel %vm1014, %v1012, %v1013
        %vm1016 = vcmp.lt.s32.totalorder %v876, %v880
        %v1017 = vsel %vm1016, %v876, %v880
        %vm1018 = vcmp.lt.s32.totalorder %v1017, %v884
        %v1019 = vsel %vm1018, %v1017, %v884
        %vm1020 = vcmp.lt.s32.totalorder %v1019, %v888
        %v1021 = vsel %vm1020, %v1019, %v888
        %vm1022 = vcmp.lt.s32.totalorder %v1021, %v892
        %v1023 = vsel %vm1022, %v1021, %v892
        %vm1024 = vcmp.lt.s32.totalorder %v1023, %v896
        %v1025 = vsel %vm1024, %v1023, %v896
        %vm1026 = vcmp.lt.s32.totalorder %v1025, %v900
        %v1027 = vsel %vm1026, %v1025, %v900
        %vm1028 = vcmp.lt.s32.totalorder %v1027, %v904
        %v1029 = vsel %vm1028, %v1027, %v904
        %vm1030 = vcmp.lt.s32.totalorder %v1029, %v908
        %v1031 = vsel %vm1030, %v1029, %v908
        %vm1032 = vcmp.lt.s32.totalorder %v1031, %v912
        %v1033 = vsel %vm1032, %v1031, %v912
        %vm1034 = vcmp.lt.s32.totalorder %v1033, %v916
        %v1035 = vsel %vm1034, %v1033, %v916
        %vm1036 = vcmp.lt.s32.totalorder %v1035, %v920
        %v1037 = vsel %vm1036, %v1035, %v920
        %vm1038 = vcmp.lt.s32.totalorder %v1037, %v924
        %v1039 = vsel %vm1038, %v1037, %v924
        %vm1040 = vcmp.lt.s32.totalorder %v1039, %v928
        %v1041 = vsel %vm1040, %v1039, %v928
        %vm1042 = vcmp.lt.s32.totalorder %v1041, %v932
        %v1043 = vsel %vm1042, %v1041, %v932
        %vm1044 = vcmp.lt.s32.totalorder %v1043, %v936
        %v1045 = vsel %vm1044, %v1043, %v936
        %v1046 = vrot.slane %v1045, 4
        %vm1047 = vcmp.lt.s32.totalorder %v1045, %v1046
        %v1048 = vsel %vm1047, %v1045, %v1046
        %v1049 = vrot.slane %v1048, 2
        %vm1050 = vcmp.lt.s32.totalorder %v1048, %v1049
        %v1051 = vsel %vm1050, %v1048, %v1049
        %v1052 = vrot.slane %v1051, 1
        %vm1053 = vcmp.lt.s32.totalorder %v1051, %v1052
        %v1054 = vsel %vm1053, %v1051, %v1052
        %vm1055 = vcmp.lt.s32.totalorder %v877, %v881
        %v1056 = vsel %vm1055, %v877, %v881
        %vm1057 = vcmp.lt.s32.totalorder %v1056, %v885
        %v1058 = vsel %vm1057, %v1056, %v885
        %vm1059 = vcmp.lt.s32.totalorder %v1058, %v889
        %v1060 = vsel %vm1059, %v1058, %v889
        %vm1061 = vcmp.lt.s32.totalorder %v1060, %v893
        %v1062 = vsel %vm1061, %v1060, %v893
        %vm1063 = vcmp.lt.s32.totalorder %v1062, %v897
        %v1064 = vsel %vm1063, %v1062, %v897
        %vm1065 = vcmp.lt.s32.totalorder %v1064, %v901
        %v1066 = vsel %vm1065, %v1064, %v901
        %vm1067 = vcmp.lt.s32.totalorder %v1066, %v905
        %v1068 = vsel %vm1067, %v1066, %v905
        %vm1069 = vcmp.lt.s32.totalorder %v1068, %v909
        %v1070 = vsel %vm1069, %v1068, %v909
        %vm1071 = vcmp.lt.s32.totalorder %v1070, %v913
        %v1072 = vsel %vm1071, %v1070, %v913
        %vm1073 = vcmp.lt.s32.totalorder %v1072, %v917
        %v1074 = vsel %vm1073, %v1072, %v917
        %vm1075 = vcmp.lt.s32.totalorder %v1074, %v921
        %v1076 = vsel %vm1075, %v1074, %v921
        %vm1077 = vcmp.lt.s32.totalorder %v1076, %v925
        %v1078 = vsel %vm1077, %v1076, %v925
        %vm1079 = vcmp.lt.s32.totalorder %v1078, %v929
        %v1080 = vsel %vm1079, %v1078, %v929
        %vm1081 = vcmp.lt.s32.totalorder %v1080, %v933
        %v1082 = vsel %vm1081, %v1080, %v933
        %vm1083 = vcmp.lt.s32.totalorder %v1082, %v937
        %v1084 = vsel %vm1083, %v1082, %v937
        %v1085 = vrot.slane %v1084, 4
        %vm1086 = vcmp.lt.s32.totalorder %v1084, %v1085
        %v1087 = vsel %vm1086, %v1084, %v1085
        %v1088 = vrot.slane %v1087, 2
        %vm1089 = vcmp.lt.s32.totalorder %v1087, %v1088
        %v1090 = vsel %vm1089, %v1087, %v1088
        %v1091 = vrot.slane %v1090, 1
        %vm1092 = vcmp.lt.s32.totalorder %v1090, %v1091
        %v1093 = vsel %vm1092, %v1090, %v1091
        %vm1094 = vcmp.eq.s32.totalorder %v315, %v976
        %vm1095 = vcmp.eq.s32.totalorder %v315, %v1015
        %vm1096 = vcmp.eq.s32.totalorder %v315, %v1054
        %vm1097 = vcmp.eq.s32.totalorder %v315, %v1093
        %vm1098 = vcmp.eq.s32.totalorder %v319, %v976
        %vm1099 = vcmp.eq.s32.totalorder %v319, %v1015
        %vm1100 = vcmp.eq.s32.totalorder %v319, %v1054
        %vm1101 = vcmp.eq.s32.totalorder %v319, %v1093
        %vm1102 = vcmp.eq.s32.totalorder %v320, %v976
        %vm1103 = vcmp.eq.s32.totalorder %v320, %v1015
        %vm1104 = vcmp.eq.s32.totalorder %v320, %v1054
        %vm1105 = vcmp.eq.s32.totalorder %v320, %v1093
        %vm1106 = vcmp.eq.s32.totalorder %v321, %v976
        %vm1107 = vcmp.eq.s32.totalorder %v321, %v1015
        %vm1108 = vcmp.eq.s32.totalorder %v321, %v1054
        %vm1109 = vcmp.eq.s32.totalorder %v321, %v1093
        %vm1110 = vcmp.eq.s32.totalorder %v322, %v976
        %vm1111 = vcmp.eq.s32.totalorder %v322, %v1015
        %vm1112 = vcmp.eq.s32.totalorder %v322, %v1054
        %vm1113 = vcmp.eq.s32.totalorder %v322, %v1093
        %vm1114 = vcmp.eq.s32.totalorder %v323, %v976
        %vm1115 = vcmp.eq.s32.totalorder %v323, %v1015
        %vm1116 = vcmp.eq.s32.totalorder %v323, %v1054
        %vm1117 = vcmp.eq.s32.totalorder %v323, %v1093
        %vm1118 = vcmp.eq.s32.totalorder %v324, %v976
        %vm1119 = vcmp.eq.s32.totalorder %v324, %v1015
        %vm1120 = vcmp.eq.s32.totalorder %v324, %v1054
        %vm1121 = vcmp.eq.s32.totalorder %v324, %v1093
        %vm1122 = vcmp.eq.s32.totalorder %v325, %v976
        %vm1123 = vcmp.eq.s32.totalorder %v325, %v1015
        %vm1124 = vcmp.eq.s32.totalorder %v325, %v1054
        %vm1125 = vcmp.eq.s32.totalorder %v325, %v1093
        %vm1126 = vcmp.eq.s32.totalorder %v326, %v976
        %vm1127 = vcmp.eq.s32.totalorder %v326, %v1015
        %vm1128 = vcmp.eq.s32.totalorder %v326, %v1054
        %vm1129 = vcmp.eq.s32.totalorder %v326, %v1093
        %vm1130 = vcmp.eq.s32.totalorder %v327, %v976
        %vm1131 = vcmp.eq.s32.totalorder %v327, %v1015
        %vm1132 = vcmp.eq.s32.totalorder %v327, %v1054
        %vm1133 = vcmp.eq.s32.totalorder %v327, %v1093
        %vm1134 = vcmp.eq.s32.totalorder %v328, %v976
        %vm1135 = vcmp.eq.s32.totalorder %v328, %v1015
        %vm1136 = vcmp.eq.s32.totalorder %v328, %v1054
        %vm1137 = vcmp.eq.s32.totalorder %v328, %v1093
        %vm1138 = vcmp.eq.s32.totalorder %v329, %v976
        %vm1139 = vcmp.eq.s32.totalorder %v329, %v1015
        %vm1140 = vcmp.eq.s32.totalorder %v329, %v1054
        %vm1141 = vcmp.eq.s32.totalorder %v329, %v1093
        %vm1142 = vcmp.eq.s32.totalorder %v330, %v976
        %vm1143 = vcmp.eq.s32.totalorder %v330, %v1015
        %vm1144 = vcmp.eq.s32.totalorder %v330, %v1054
        %vm1145 = vcmp.eq.s32.totalorder %v330, %v1093
        %vm1146 = vcmp.eq.s32.totalorder %v331, %v976
        %vm1147 = vcmp.eq.s32.totalorder %v331, %v1015
        %vm1148 = vcmp.eq.s32.totalorder %v331, %v1054
        %vm1149 = vcmp.eq.s32.totalorder %v331, %v1093
        %vm1150 = vcmp.eq.s32.totalorder %v332, %v976
        %vm1151 = vcmp.eq.s32.totalorder %v332, %v1015
        %vm1152 = vcmp.eq.s32.totalorder %v332, %v1054
        %vm1153 = vcmp.eq.s32.totalorder %v332, %v1093
        %vm1154 = vcmp.eq.s32.totalorder %v333, %v976
        %vm1155 = vcmp.eq.s32.totalorder %v333, %v1015
        %vm1156 = vcmp.eq.s32.totalorder %v333, %v1054
        %vm1157 = vcmp.eq.s32.totalorder %v333, %v1093
        %v1158 = vsel %vm1094, 1, 0
        %v1159 = vsel %vm1095, 1, 0
        %v1160 = vsel %vm1096, 1, 0
        %v1161 = vsel %vm1097, 1, 0
        %v1162 = vsel %vm1098, 1, 0
        %v1163 = vsel %vm1099, 1, 0
        %v1164 = vsel %vm1100, 1, 0
        %v1165 = vsel %vm1101, 1, 0
        %v1166 = vsel %vm1102, 1, 0
        %v1167 = vsel %vm1103, 1, 0
        %v1168 = vsel %vm1104, 1, 0
        %v1169 = vsel %vm1105, 1, 0
        %v1170 = vsel %vm1106, 1, 0
        %v1171 = vsel %vm1107, 1, 0
        %v1172 = vsel %vm1108, 1, 0
        %v1173 = vsel %vm1109, 1, 0
        %v1174 = vsel %vm1110, 1, 0
        %v1175 = vsel %vm1111, 1, 0
        %v1176 = vsel %vm1112, 1, 0
        %v1177 = vsel %vm1113, 1, 0
        %v1178 = vsel %vm1114, 1, 0
        %v1179 = vsel %vm1115, 1, 0
        %v1180 = vsel %vm1116, 1, 0
        %v1181 = vsel %vm1117, 1, 0
        %v1182 = vsel %vm1118, 1, 0
        %v1183 = vsel %vm1119, 1, 0
        %v1184 = vsel %vm1120, 1, 0
        %v1185 = vsel %vm1121, 1, 0
        %v1186 = vsel %vm1122, 1, 0
        %v1187 = vsel %vm1123, 1, 0
        %v1188 = vsel %vm1124, 1, 0
        %v1189 = vsel %vm1125, 1, 0
        %v1190 = vsel %vm1126, 1, 0
        %v1191 = vsel %vm1127, 1, 0
        %v1192 = vsel %vm1128, 1, 0
        %v1193 = vsel %vm1129, 1, 0
        %v1194 = vsel %vm1130, 1, 0
        %v1195 = vsel %vm1131, 1, 0
        %v1196 = vsel %vm1132, 1, 0
        %v1197 = vsel %vm1133, 1, 0
        %v1198 = vsel %vm1134, 1, 0
        %v1199 = vsel %vm1135, 1, 0
        %v1200 = vsel %vm1136, 1, 0
        %v1201 = vsel %vm1137, 1, 0
        %v1202 = vsel %vm1138, 1, 0
        %v1203 = vsel %vm1139, 1, 0
        %v1204 = vsel %vm1140, 1, 0
        %v1205 = vsel %vm1141, 1, 0
        %v1206 = vsel %vm1142, 1, 0
        %v1207 = vsel %vm1143, 1, 0
        %v1208 = vsel %vm1144, 1, 0
        %v1209 = vsel %vm1145, 1, 0
        %v1210 = vsel %vm1146, 1, 0
        %v1211 = vsel %vm1147, 1, 0
        %v1212 = vsel %vm1148, 1, 0
        %v1213 = vsel %vm1149, 1, 0
        %v1214 = vsel %vm1150, 1, 0
        %v1215 = vsel %vm1151, 1, 0
        %v1216 = vsel %vm1152, 1, 0
        %v1217 = vsel %vm1153, 1, 0
        %v1218 = vsel %vm1154, 1, 0
        %v1219 = vsel %vm1155, 1, 0
        %v1220 = vsel %vm1156, 1, 0
        %v1221 = vsel %vm1157, 1, 0
        %v1222 = vcvt.s32.f32 %v1158
        %v1223 = vcvt.s32.f32 %v1159
        %v1224 = vcvt.s32.f32 %v1160
        %v1225 = vcvt.s32.f32 %v1161
        %v1226 = vcvt.s32.f32 %v1162
        %v1227 = vcvt.s32.f32 %v1163
        %v1228 = vcvt.s32.f32 %v1164
        %v1229 = vcvt.s32.f32 %v1165
        %v1230 = vcvt.s32.f32 %v1166
        %v1231 = vcvt.s32.f32 %v1167
        %v1232 = vcvt.s32.f32 %v1168
        %v1233 = vcvt.s32.f32 %v1169
        %v1234 = vcvt.s32.f32 %v1170
        %v1235 = vcvt.s32.f32 %v1171
        %v1236 = vcvt.s32.f32 %v1172
        %v1237 = vcvt.s32.f32 %v1173
        %v1238 = vcvt.s32.f32 %v1174
        %v1239 = vcvt.s32.f32 %v1175
        %v1240 = vcvt.s32.f32 %v1176
        %v1241 = vcvt.s32.f32 %v1177
        %v1242 = vcvt.s32.f32 %v1178
        %v1243 = vcvt.s32.f32 %v1179
        %v1244 = vcvt.s32.f32 %v1180
        %v1245 = vcvt.s32.f32 %v1181
        %v1246 = vcvt.s32.f32 %v1182
        %v1247 = vcvt.s32.f32 %v1183
        %v1248 = vcvt.s32.f32 %v1184
        %v1249 = vcvt.s32.f32 %v1185
        %v1250 = vcvt.s32.f32 %v1186
        %v1251 = vcvt.s32.f32 %v1187
        %v1252 = vcvt.s32.f32 %v1188
        %v1253 = vcvt.s32.f32 %v1189
        %v1254 = vcvt.s32.f32 %v1190
        %v1255 = vcvt.s32.f32 %v1191
        %v1256 = vcvt.s32.f32 %v1192
        %v1257 = vcvt.s32.f32 %v1193
        %v1258 = vcvt.s32.f32 %v1194
        %v1259 = vcvt.s32.f32 %v1195
        %v1260 = vcvt.s32.f32 %v1196
        %v1261 = vcvt.s32.f32 %v1197
        %v1262 = vcvt.s32.f32 %v1198
        %v1263 = vcvt.s32.f32 %v1199
        %v1264 = vcvt.s32.f32 %v1200
        %v1265 = vcvt.s32.f32 %v1201
        %v1266 = vcvt.s32.f32 %v1202
        %v1267 = vcvt.s32.f32 %v1203
        %v1268 = vcvt.s32.f32 %v1204
        %v1269 = vcvt.s32.f32 %v1205
        %v1270 = vcvt.s32.f32 %v1206
        %v1271 = vcvt.s32.f32 %v1207
        %v1272 = vcvt.s32.f32 %v1208
        %v1273 = vcvt.s32.f32 %v1209
        %v1274 = vcvt.s32.f32 %v1210
        %v1275 = vcvt.s32.f32 %v1211
        %v1276 = vcvt.s32.f32 %v1212
        %v1277 = vcvt.s32.f32 %v1213
        %v1278 = vcvt.s32.f32 %v1214
        %v1279 = vcvt.s32.f32 %v1215
        %v1280 = vcvt.s32.f32 %v1216
        %v1281 = vcvt.s32.f32 %v1217
        %v1282 = vcvt.s32.f32 %v1218
        %v1283 = vcvt.s32.f32 %v1219
        %v1284 = vcvt.s32.f32 %v1220
        %v1285 = vcvt.s32.f32 %v1221
        %1286 = vmatprep.subr.mxu0 %v1223
        %1287 = vmatpush1.msra.mxu0 %v1222
        %1288 = vmatprep.subr.mxu0 %v1227
        %1289 = vmatpush1.msra.mxu0 %v1226
        %1290 = vmatprep.subr.mxu0 %v1231
        %1291 = vmatpush1.msra.mxu0 %v1230
        %1292 = vmatprep.subr.mxu0 %v1235
        %1293 = vmatpush1.msra.mxu0 %v1234
        %1294 = vmatprep.subr.mxu0 %v1239
        %1295 = vmatpush1.msra.mxu0 %v1238
        %1296 = vmatprep.subr.mxu0 %v1243
        %1297 = vmatpush1.msra.mxu0 %v1242
        %1298 = vmatprep.subr.mxu0 %v1247
        %1299 = vmatpush1.msra.mxu0 %v1246
        %1300 = vmatprep.subr.mxu0 %v1251
        %1301 = vmatpush1.msra.mxu0 %v1250
        %1302 = vmatprep.subr.mxu0 %v1255
        %1303 = vmatpush1.msra.mxu0 %v1254
        %1304 = vmatprep.subr.mxu0 %v1259
        %1305 = vmatpush1.msra.mxu0 %v1258
        %1306 = vmatprep.subr.mxu0 %v1263
        %1307 = vmatpush1.msra.mxu0 %v1262
        %1308 = vmatprep.subr.mxu0 %v1267
        %1309 = vmatpush1.msra.mxu0 %v1266
        %1310 = vmatprep.subr.mxu0 %v1271
        %1311 = vmatpush1.msra.mxu0 %v1270
        %1312 = vmatprep.subr.mxu0 %v1275
        %1313 = vmatpush1.msra.mxu0 %v1274
        %1314 = vmatprep.subr.mxu0 %v1279
        %1315 = vmatpush1.msra.mxu0 %v1278
        %1316 = vmatprep.subr.mxu0 %v1283
        %1317 = vmatpush1.msra.mxu0 %v1282
        %1318 = vmatprep.subr.mxu0 0.0
        %1319 = vmatpush1.msra.mxu0 0.0
        %1320 = vmatprep.subr.mxu0 0.0
        %1321 = vmatpush1.msra.mxu0 0.0
        %1322 = vmatprep.subr.mxu0 0.0
        %1323 = vmatpush1.msra.mxu0 0.0
        %1324 = vmatprep.subr.mxu0 0.0
        %1325 = vmatpush1.msra.mxu0 0.0
        %1326 = vmatprep.subr.mxu0 0.0
        %1327 = vmatpush1.msra.mxu0 0.0
        %1328 = vmatprep.subr.mxu0 0.0
        %1329 = vmatpush1.msra.mxu0 0.0
        %1330 = vmatprep.subr.mxu0 0.0
        %1331 = vmatpush1.msra.mxu0 0.0
        %1332 = vmatprep.subr.mxu0 0.0
        %1333 = vmatpush1.msra.mxu0 0.0
        %1334 = vmatprep.subr.mxu0 0.0
        %1335 = vmatpush1.msra.mxu0 0.0
        %1336 = vmatprep.subr.mxu0 0.0
        %1337 = vmatpush1.msra.mxu0 0.0
        %1338 = vmatprep.subr.mxu0 0.0
        %1339 = vmatpush1.msra.mxu0 0.0
        %1340 = vmatprep.subr.mxu0 0.0
        %1341 = vmatpush1.msra.mxu0 0.0
        %1342 = vmatprep.subr.mxu0 0.0
        %1343 = vmatpush1.msra.mxu0 0.0
        %1344 = vmatprep.subr.mxu0 0.0
        %1345 = vmatpush1.msra.mxu0 0.0
        %1346 = vmatprep.subr.mxu0 0.0
        %1347 = vmatpush1.msra.mxu0 0.0
        %1348 = vmatprep.subr.mxu0 0.0
        %1349 = vmatpush1.msra.mxu0 0.0
        %1350 = vmatprep.mubr.f32.mxu0 0.0
        %1351 = vmatmul.mubr.f32.gmra.mrb[0].mxu0 %v350
        %v1352 = vpop.f32.mrb[0].mxu0
        %v1353 = vadd.f32 0.0, %v1352
        %v1354 = vpop.f32.mrb[0].mxu0
        %v1355 = vadd.f32 0.0, %v1354
        %1356 = vmatprep.mubr.f32.mxu0 0.0
        %1357 = vmatmul.mubr.f32.gmra.mrb[0].mxu0 %v351
        %v1358 = vpop.f32.mrb[0].mxu0
        %v1359 = vadd.f32 0.0, %v1358
        %v1360 = vpop.f32.mrb[0].mxu0
        %v1361 = vadd.f32 0.0, %v1360
        %1362 = vmatprep.mubr.f32.mxu0 0.0
        %1363 = vmatmul.mubr.f32.gmra.mrb[0].mxu0 %v352
        %v1364 = vpop.f32.mrb[0].mxu0
        %v1365 = vadd.f32 0.0, %v1364
        %v1366 = vpop.f32.mrb[0].mxu0
        %v1367 = vadd.f32 0.0, %v1366
        %1368 = vmatprep.mubr.f32.mxu0 0.0
        %1369 = vmatmul.mubr.f32.gmra.mrb[0].mxu0 %v353
        %v1370 = vpop.f32.mrb[0].mxu0
        %v1371 = vadd.f32 0.0, %v1370
        %v1372 = vpop.f32.mrb[0].mxu0
        %v1373 = vadd.f32 0.0, %v1372
        %1374 = vmatprep.mubr.f32.mxu0 0.0
        %1375 = vmatmul.mubr.f32.gmra.mrb[0].mxu0 %v354
        %v1376 = vpop.f32.mrb[0].mxu0
        %v1377 = vadd.f32 0.0, %v1376
        %v1378 = vpop.f32.mrb[0].mxu0
        %v1379 = vadd.f32 0.0, %v1378
        %1380 = vdwg.mxu0
        %1381 = vmatprep.subr.mxu0 %v1225
        %1382 = vmatpush1.msra.mxu0 %v1224
        %1383 = vmatprep.subr.mxu0 %v1229
        %1384 = vmatpush1.msra.mxu0 %v1228
        %1385 = vmatprep.subr.mxu0 %v1233
        %1386 = vmatpush1.msra.mxu0 %v1232
        %1387 = vmatprep.subr.mxu0 %v1237
        %1388 = vmatpush1.msra.mxu0 %v1236
        %1389 = vmatprep.subr.mxu0 %v1241
        %1390 = vmatpush1.msra.mxu0 %v1240
        %1391 = vmatprep.subr.mxu0 %v1245
        %1392 = vmatpush1.msra.mxu0 %v1244
        %1393 = vmatprep.subr.mxu0 %v1249
        %1394 = vmatpush1.msra.mxu0 %v1248
        %1395 = vmatprep.subr.mxu0 %v1253
        %1396 = vmatpush1.msra.mxu0 %v1252
        %1397 = vmatprep.subr.mxu0 %v1257
        %1398 = vmatpush1.msra.mxu0 %v1256
        %1399 = vmatprep.subr.mxu0 %v1261
        %1400 = vmatpush1.msra.mxu0 %v1260
        %1401 = vmatprep.subr.mxu0 %v1265
        %1402 = vmatpush1.msra.mxu0 %v1264
        %1403 = vmatprep.subr.mxu0 %v1269
        %1404 = vmatpush1.msra.mxu0 %v1268
        %1405 = vmatprep.subr.mxu0 %v1273
        %1406 = vmatpush1.msra.mxu0 %v1272
        %1407 = vmatprep.subr.mxu0 %v1277
        %1408 = vmatpush1.msra.mxu0 %v1276
        %1409 = vmatprep.subr.mxu0 %v1281
        %1410 = vmatpush1.msra.mxu0 %v1280
        %1411 = vmatprep.subr.mxu0 %v1285
        %1412 = vmatpush1.msra.mxu0 %v1284
        %1413 = vmatprep.subr.mxu0 0.0
        %1414 = vmatpush1.msra.mxu0 0.0
        %1415 = vmatprep.subr.mxu0 0.0
        %1416 = vmatpush1.msra.mxu0 0.0
        %1417 = vmatprep.subr.mxu0 0.0
        %1418 = vmatpush1.msra.mxu0 0.0
        %1419 = vmatprep.subr.mxu0 0.0
        %1420 = vmatpush1.msra.mxu0 0.0
        %1421 = vmatprep.subr.mxu0 0.0
        %1422 = vmatpush1.msra.mxu0 0.0
        %1423 = vmatprep.subr.mxu0 0.0
        %1424 = vmatpush1.msra.mxu0 0.0
        %1425 = vmatprep.subr.mxu0 0.0
        %1426 = vmatpush1.msra.mxu0 0.0
        %1427 = vmatprep.subr.mxu0 0.0
        %1428 = vmatpush1.msra.mxu0 0.0
        %1429 = vmatprep.subr.mxu0 0.0
        %1430 = vmatpush1.msra.mxu0 0.0
        %1431 = vmatprep.subr.mxu0 0.0
        %1432 = vmatpush1.msra.mxu0 0.0
        %1433 = vmatprep.subr.mxu0 0.0
        %1434 = vmatpush1.msra.mxu0 0.0
        %1435 = vmatprep.subr.mxu0 0.0
        %1436 = vmatpush1.msra.mxu0 0.0
        %1437 = vmatprep.subr.mxu0 0.0
        %1438 = vmatpush1.msra.mxu0 0.0
        %1439 = vmatprep.subr.mxu0 0.0
        %1440 = vmatpush1.msra.mxu0 0.0
        %1441 = vmatprep.subr.mxu0 0.0
        %1442 = vmatpush1.msra.mxu0 0.0
        %1443 = vmatprep.subr.mxu0 0.0
        %1444 = vmatpush1.msra.mxu0 0.0
        %1445 = vmatprep.mubr.f32.mxu0 0.0
        %1446 = vmatmul.mubr.f32.gmra.mrb[0].mxu0 %v350
        %v1447 = vpop.f32.mrb[0].mxu0
        %v1448 = vadd.f32 0.0, %v1447
        %v1449 = vpop.f32.mrb[0].mxu0
        %v1450 = vadd.f32 0.0, %v1449
        %1451 = vmatprep.mubr.f32.mxu0 0.0
        %1452 = vmatmul.mubr.f32.gmra.mrb[0].mxu0 %v351
        %v1453 = vpop.f32.mrb[0].mxu0
        %v1454 = vadd.f32 0.0, %v1453
        %v1455 = vpop.f32.mrb[0].mxu0
        %v1456 = vadd.f32 0.0, %v1455
        %1457 = vmatprep.mubr.f32.mxu0 0.0
        %1458 = vmatmul.mubr.f32.gmra.mrb[0].mxu0 %v352
        %v1459 = vpop.f32.mrb[0].mxu0
        %v1460 = vadd.f32 0.0, %v1459
        %v1461 = vpop.f32.mrb[0].mxu0
        %v1462 = vadd.f32 0.0, %v1461
        %1463 = vmatprep.mubr.f32.mxu0 0.0
        %1464 = vmatmul.mubr.f32.gmra.mrb[0].mxu0 %v353
        %v1465 = vpop.f32.mrb[0].mxu0
        %v1466 = vadd.f32 0.0, %v1465
        %v1467 = vpop.f32.mrb[0].mxu0
        %v1468 = vadd.f32 0.0, %v1467
        %1469 = vmatprep.mubr.f32.mxu0 0.0
        %1470 = vmatmul.mubr.f32.gmra.mrb[0].mxu0 %v354
        %v1471 = vpop.f32.mrb[0].mxu0
        %v1472 = vadd.f32 0.0, %v1471
        %v1473 = vpop.f32.mrb[0].mxu0
        %v1474 = vadd.f32 0.0, %v1473
        %1475 = vdwg.mxu0
        %v1476 = vsub.f32 %v298, %v1353
        %v1477 = vsub.f32 %v299, %v1355
        %v1478 = vsub.f32 %v300, %v1448
        %v1479 = vsub.f32 %v301, %v1450
        %v1480 = vsub.f32 %v302, %v1359
        %v1481 = vsub.f32 %v303, %v1361
        %v1482 = vsub.f32 %v304, %v1454
        %v1483 = vsub.f32 %v305, %v1456
        %v1484 = vsub.f32 %v306, %v1365
        %v1485 = vsub.f32 %v307, %v1367
        %v1486 = vsub.f32 %v308, %v1460
        %v1487 = vsub.f32 %v309, %v1462
        %v1488 = vsub.f32 %v310, %v1371
        %v1489 = vsub.f32 %v311, %v1373
        %v1490 = vsub.f32 %v312, %v1466
        %v1491 = vsub.f32 %v313, %v1468
        %v1492 = vsub.f32 %v318, %v1377
        %v1493 = vsub.f32 %v318, %v1379
        %v1494 = vsub.f32 %v318, %v1472
        %v1495 = vsub.f32 %v318, %v1474
        %v1496 = vmul.f32 %v1476, %v1476
        %v1497 = vmul.f32 %v1477, %v1477
        %v1498 = vmul.f32 %v1478, %v1478
        %v1499 = vmul.f32 %v1479, %v1479
        %v1500 = vmul.f32 %v1480, %v1480
        %v1501 = vmul.f32 %v1481, %v1481
        %v1502 = vmul.f32 %v1482, %v1482
        %v1503 = vmul.f32 %v1483, %v1483
        %v1504 = vmul.f32 %v1484, %v1484
        %v1505 = vmul.f32 %v1485, %v1485
        %v1506 = vmul.f32 %v1486, %v1486
        %v1507 = vmul.f32 %v1487, %v1487
        %v1508 = vmul.f32 %v1488, %v1488
        %v1509 = vmul.f32 %v1489, %v1489
        %v1510 = vmul.f32 %v1490, %v1490
        %v1511 = vmul.f32 %v1491, %v1491
        %v1512 = vadd.f32 %v1496, %v1500
        %v1513 = vadd.f32 %v1512, %v1504
        %v1514 = vadd.f32 %v1513, %v1508
        %v1515 = vrot.slane %v1514, 4
        %v1516 = vadd.f32 %v1514, %v1515
        %v1517 = vrot.slane %v1516, 2
        %v1518 = vadd.f32 %v1516, %v1517
        %v1519 = vrot.slane %v1518, 1
        %v1520 = vadd.f32 %v1518, %v1519
        %v1521 = vadd.f32 %v1497, %v1501
        %v1522 = vadd.f32 %v1521, %v1505
        %v1523 = vadd.f32 %v1522, %v1509
        %v1524 = vrot.slane %v1523, 4
        %v1525 = vadd.f32 %v1523, %v1524
        %v1526 = vrot.slane %v1525, 2
        %v1527 = vadd.f32 %v1525, %v1526
        %v1528 = vrot.slane %v1527, 1
        %v1529 = vadd.f32 %v1527, %v1528
        %v1530 = vadd.f32 %v1498, %v1502
        %v1531 = vadd.f32 %v1530, %v1506
        %v1532 = vadd.f32 %v1531, %v1510
        %v1533 = vrot.slane %v1532, 4
        %v1534 = vadd.f32 %v1532, %v1533
        %v1535 = vrot.slane %v1534, 2
        %v1536 = vadd.f32 %v1534, %v1535
        %v1537 = vrot.slane %v1536, 1
        %v1538 = vadd.f32 %v1536, %v1537
        %v1539 = vadd.f32 %v1499, %v1503
        %v1540 = vadd.f32 %v1539, %v1507
        %v1541 = vadd.f32 %v1540, %v1511
        %v1542 = vrot.slane %v1541, 4
        %v1543 = vadd.f32 %v1541, %v1542
        %v1544 = vrot.slane %v1543, 2
        %v1545 = vadd.f32 %v1543, %v1544
        %v1546 = vrot.slane %v1545, 1
        %v1547 = vadd.f32 %v1545, %v1546
        %v1548 = vcombine.low %v976, %v1015
        %v1549 = vcombine.low %v1054, %v1093
        %v1551 = vunpack.c.l.s4 1966171168
        %v1552 = vunpack.c.0.s8 %v1551
        %v1553 = vlaneseq
        %v1554 = vshrl.u32 %v1553, 7
        %v1555 = vsub.s32 %v1552, %v1554
        %v1556 = vrot.slane %v1548, %v1555
        %v1558 = vunpack.c.l.s4 1966171168
        %v1559 = vunpack.c.0.s8 %v1558
        %v1560 = vlaneseq
        %v1561 = vshrl.u32 %v1560, 7
        %v1562 = vsub.s32 %v1559, %v1561
        %v1563 = vrot.slane %v1549, %v1562
        %v1564 = vcombine.low %v1556, %v1563
        %v1566 = vunpack.c.l.s4 1966171168
        %v1567 = vunpack.c.0.s8 %v1566
        %v1568 = vlaneseq
        %v1569 = vshrl.u32 %v1568, 7
        %v1570 = vsub.s32 %v1567, %v1569
        %v1571 = vrot.slane %v1564, %v1570
        %v1572 = vlaneseq
        %vm1573 = vcmp.ge.s32.totalorder %v1572, 0
        %vm1574 = vcmp.lt.s32.totalorder %v1572, 512
        %vm1575 = vmand %vm1573, %vm1574
        %1576 = vst.msk [vmem:[%s290] ss:$4 sm:$0xf] %vm1575, %v1571
        %v1581 = vcombine.low %v1520, %v1529
        %v1582 = vcombine.low %v1538, %v1547
        %v1584 = vunpack.c.l.s4 1966171168
        %v1585 = vunpack.c.0.s8 %v1584
        %v1586 = vlaneseq
        %v1587 = vshrl.u32 %v1586, 7
        %v1588 = vsub.s32 %v1585, %v1587
        %v1589 = vrot.slane %v1581, %v1588
        %v1591 = vunpack.c.l.s4 1966171168
        %v1592 = vunpack.c.0.s8 %v1591
        %v1593 = vlaneseq
        %v1594 = vshrl.u32 %v1593, 7
        %v1595 = vsub.s32 %v1592, %v1594
        %v1596 = vrot.slane %v1582, %v1595
        %v1597 = vcombine.low %v1589, %v1596
        %v1599 = vunpack.c.l.s4 1966171168
        %v1600 = vunpack.c.0.s8 %v1599
        %v1601 = vlaneseq
        %v1602 = vshrl.u32 %v1601, 7
        %v1603 = vsub.s32 %v1600, %v1602
        %v1604 = vrot.slane %v1597, %v1603
        %1606 = vst.msk [vmem:[%s296] ss:$4 sm:$0xf] %vm1575, %v1604
        %s1607 = scalar_lea.vmem %s1, 128
        %v1608 = vld [vmem:[%s1607] sm:$0xff]
        %v1609 = vld [vmem:[%s1607 + $0x8] sm:$0xff]
        %v1610 = vld [vmem:[%s1607 + $0x10] sm:$0xff]
        %v1611 = vld [vmem:[%s1607 + $0x18] sm:$0xff]
        %v1612 = vld [vmem:[%s1607 + $0x20] sm:$0xff]
        %v1613 = vld [vmem:[%s1607 + $0x28] sm:$0xff]
        %v1614 = vld [vmem:[%s1607 + $0x30] sm:$0xff]
        %v1615 = vld [vmem:[%s1607 + $0x38] sm:$0xff]
        %v1616 = vld [vmem:[%s1607 + $0x40] sm:$0xff]
        %v1617 = vld [vmem:[%s1607 + $0x48] sm:$0xff]
        %v1618 = vld [vmem:[%s1607 + $0x50] sm:$0xff]
        %v1619 = vld [vmem:[%s1607 + $0x58] sm:$0xff]
        %v1620 = vld [vmem:[%s1607 + $0x60] sm:$0xff]
        %v1621 = vld [vmem:[%s1607 + $0x68] sm:$0xff]
        %v1622 = vld [vmem:[%s1607 + $0x70] sm:$0xff]
        %v1623 = vld [vmem:[%s1607 + $0x78] sm:$0xff]
        %s1624 = scalar_lea.vmem %s2, 40
        %v1625 = vld [vmem:[%s1624] sm:$0xff]
        %v1626 = vld [vmem:[%s1624 + $0x8] sm:$0xff]
        %v1627 = vld [vmem:[%s1624 + $0x10] sm:$0xff]
        %v1628 = vld [vmem:[%s1624 + $0x18] sm:$0xff]
        %v1629 = vld [vmem:[%s1624 + $0x20] sm:$0xff]
        %v1631 = vsel %vm355, %v1608, 0
        %v1634 = vsel %vm355, %v1609, 0
        %v1637 = vsel %vm355, %v1610, 0
        %v1640 = vsel %vm355, %v1611, 0
        %v1643 = vsel %vm355, %v1612, 0
        %v1646 = vsel %vm355, %v1613, 0
        %v1649 = vsel %vm355, %v1614, 0
        %v1652 = vsel %vm355, %v1615, 0
        %v1655 = vsel %vm355, %v1616, 0
        %v1658 = vsel %vm355, %v1617, 0
        %v1661 = vsel %vm355, %v1618, 0
        %v1664 = vsel %vm355, %v1619, 0
        %v1667 = vsel %vm355, %v1620, 0
        %v1670 = vsel %vm355, %v1621, 0
        %v1673 = vsel %vm355, %v1622, 0
        %v1676 = vsel %vm355, %v1623, 0
        %1678 = vmatprep.subr.mxu0 %v1477
        %1679 = vmatpush1.msra.mxu0 %v1476
        %1680 = vmatprep.subr.mxu0 %v1481
        %1681 = vmatpush1.msra.mxu0 %v1480
        %1682 = vmatprep.subr.mxu0 %v1485
        %1683 = vmatpush1.msra.mxu0 %v1484
        %1684 = vmatprep.subr.mxu0 %v1489
        %1685 = vmatpush1.msra.mxu0 %v1488
        %1686 = vmatprep.subr.mxu0 %v1493
        %1687 = vmatpush1.msra.mxu0 %v1492
        %1688 = vmatprep.subr.mxu0 0.0
        %1689 = vmatpush1.msra.mxu0 0.0
        %1690 = vmatprep.subr.mxu0 0.0
        %1691 = vmatpush1.msra.mxu0 0.0
        %1692 = vmatprep.subr.mxu0 0.0
        %1693 = vmatpush1.msra.mxu0 0.0
        %1694 = vmatprep.subr.mxu0 0.0
        %1695 = vmatpush1.msra.mxu0 0.0
        %1696 = vmatprep.subr.mxu0 0.0
        %1697 = vmatpush1.msra.mxu0 0.0
        %1698 = vmatprep.subr.mxu0 0.0
        %1699 = vmatpush1.msra.mxu0 0.0
        %1700 = vmatprep.subr.mxu0 0.0
        %1701 = vmatpush1.msra.mxu0 0.0
        %1702 = vmatprep.subr.mxu0 0.0
        %1703 = vmatpush1.msra.mxu0 0.0
        %1704 = vmatprep.subr.mxu0 0.0
        %1705 = vmatpush1.msra.mxu0 0.0
        %1706 = vmatprep.subr.mxu0 0.0
        %1707 = vmatpush1.msra.mxu0 0.0
        %1708 = vmatprep.subr.mxu0 0.0
        %1709 = vmatpush1.msra.mxu0 0.0
        %1710 = vmatprep.subr.mxu0 0.0
        %1711 = vmatpush1.msra.mxu0 0.0
        %1712 = vmatprep.subr.mxu0 0.0
        %1713 = vmatpush1.msra.mxu0 0.0
        %1714 = vmatprep.subr.mxu0 0.0
        %1715 = vmatpush1.msra.mxu0 0.0
        %1716 = vmatprep.subr.mxu0 0.0
        %1717 = vmatpush1.msra.mxu0 0.0
        %1718 = vmatprep.subr.mxu0 0.0
        %1719 = vmatpush1.msra.mxu0 0.0
        %1720 = vmatprep.subr.mxu0 0.0
        %1721 = vmatpush1.msra.mxu0 0.0
        %1722 = vmatprep.subr.mxu0 0.0
        %1723 = vmatpush1.msra.mxu0 0.0
        %1724 = vmatprep.subr.mxu0 0.0
        %1725 = vmatpush1.msra.mxu0 0.0
        %1726 = vmatprep.subr.mxu0 0.0
        %1727 = vmatpush1.msra.mxu0 0.0
        %1728 = vmatprep.subr.mxu0 0.0
        %1729 = vmatpush1.msra.mxu0 0.0
        %1730 = vmatprep.subr.mxu0 0.0
        %1731 = vmatpush1.msra.mxu0 0.0
        %1732 = vmatprep.subr.mxu0 0.0
        %1733 = vmatpush1.msra.mxu0 0.0
        %1734 = vmatprep.subr.mxu0 0.0
        %1735 = vmatpush1.msra.mxu0 0.0
        %1736 = vmatprep.subr.mxu0 0.0
        %1737 = vmatpush1.msra.mxu0 0.0
        %1738 = vmatprep.subr.mxu0 0.0
        %1739 = vmatpush1.msra.mxu0 0.0
        %1740 = vmatprep.subr.mxu0 0.0
        %1741 = vmatpush1.msra.mxu0 0.0
        %1742 = vmatprep.mubr.f32.mxu0 0.0
        %1743 = vmatmul.mubr.f32.gmra.mrb[0].mxu0 %v1631
        %v1744 = vpop.f32.mrb[0].mxu0
        %v1745 = vadd.f32 0.0, %v1744
        %v1746 = vpop.f32.mrb[0].mxu0
        %v1747 = vadd.f32 0.0, %v1746
        %1748 = vmatprep.mubr.f32.mxu0 0.0
        %1749 = vmatmul.mubr.f32.gmra.mrb[0].mxu0 %v1634
        %v1750 = vpop.f32.mrb[0].mxu0
        %v1751 = vadd.f32 0.0, %v1750
        %v1752 = vpop.f32.mrb[0].mxu0
        %v1753 = vadd.f32 0.0, %v1752
        %1754 = vmatprep.mubr.f32.mxu0 0.0
        %1755 = vmatmul.mubr.f32.gmra.mrb[0].mxu0 %v1637
        %v1756 = vpop.f32.mrb[0].mxu0
        %v1757 = vadd.f32 0.0, %v1756
        %v1758 = vpop.f32.mrb[0].mxu0
        %v1759 = vadd.f32 0.0, %v1758
        %1760 = vmatprep.mubr.f32.mxu0 0.0
        %1761 = vmatmul.mubr.f32.gmra.mrb[0].mxu0 %v1640
        %v1762 = vpop.f32.mrb[0].mxu0
        %v1763 = vadd.f32 0.0, %v1762
        %v1764 = vpop.f32.mrb[0].mxu0
        %v1765 = vadd.f32 0.0, %v1764
        %1766 = vmatprep.mubr.f32.mxu0 0.0
        %1767 = vmatmul.mubr.f32.gmra.mrb[0].mxu0 %v1643
        %v1768 = vpop.f32.mrb[0].mxu0
        %v1769 = vadd.f32 0.0, %v1768
        %v1770 = vpop.f32.mrb[0].mxu0
        %v1771 = vadd.f32 0.0, %v1770
        %1772 = vmatprep.mubr.f32.mxu0 0.0
        %1773 = vmatmul.mubr.f32.gmra.mrb[0].mxu0 %v1646
        %v1774 = vpop.f32.mrb[0].mxu0
        %v1775 = vadd.f32 0.0, %v1774
        %v1776 = vpop.f32.mrb[0].mxu0
        %v1777 = vadd.f32 0.0, %v1776
        %1778 = vmatprep.mubr.f32.mxu0 0.0
        %1779 = vmatmul.mubr.f32.gmra.mrb[0].mxu0 %v1649
        %v1780 = vpop.f32.mrb[0].mxu0
        %v1781 = vadd.f32 0.0, %v1780
        %v1782 = vpop.f32.mrb[0].mxu0
        %v1783 = vadd.f32 0.0, %v1782
        %1784 = vmatprep.mubr.f32.mxu0 0.0
        %1785 = vmatmul.mubr.f32.gmra.mrb[0].mxu0 %v1652
        %v1786 = vpop.f32.mrb[0].mxu0
        %v1787 = vadd.f32 0.0, %v1786
        %v1788 = vpop.f32.mrb[0].mxu0
        %v1789 = vadd.f32 0.0, %v1788
        %1790 = vmatprep.mubr.f32.mxu0 0.0
        %1791 = vmatmul.mubr.f32.gmra.mrb[0].mxu0 %v1655
        %v1792 = vpop.f32.mrb[0].mxu0
        %v1793 = vadd.f32 0.0, %v1792
        %v1794 = vpop.f32.mrb[0].mxu0
        %v1795 = vadd.f32 0.0, %v1794
        %1796 = vmatprep.mubr.f32.mxu0 0.0
        %1797 = vmatmul.mubr.f32.gmra.mrb[0].mxu0 %v1658
        %v1798 = vpop.f32.mrb[0].mxu0
        %v1799 = vadd.f32 0.0, %v1798
        %v1800 = vpop.f32.mrb[0].mxu0
        %v1801 = vadd.f32 0.0, %v1800
        %1802 = vmatprep.mubr.f32.mxu0 0.0
        %1803 = vmatmul.mubr.f32.gmra.mrb[0].mxu0 %v1661
        %v1804 = vpop.f32.mrb[0].mxu0
        %v1805 = vadd.f32 0.0, %v1804
        %v1806 = vpop.f32.mrb[0].mxu0
        %v1807 = vadd.f32 0.0, %v1806
        %1808 = vmatprep.mubr.f32.mxu0 0.0
        %1809 = vmatmul.mubr.f32.gmra.mrb[0].mxu0 %v1664
        %v1810 = vpop.f32.mrb[0].mxu0
        %v1811 = vadd.f32 0.0, %v1810
        %v1812 = vpop.f32.mrb[0].mxu0
        %v1813 = vadd.f32 0.0, %v1812
        %1814 = vmatprep.mubr.f32.mxu0 0.0
        %1815 = vmatmul.mubr.f32.gmra.mrb[0].mxu0 %v1667
        %v1816 = vpop.f32.mrb[0].mxu0
        %v1817 = vadd.f32 0.0, %v1816
        %v1818 = vpop.f32.mrb[0].mxu0
        %v1819 = vadd.f32 0.0, %v1818
        %1820 = vmatprep.mubr.f32.mxu0 0.0
        %1821 = vmatmul.mubr.f32.gmra.mrb[0].mxu0 %v1670
        %v1822 = vpop.f32.mrb[0].mxu0
        %v1823 = vadd.f32 0.0, %v1822
        %v1824 = vpop.f32.mrb[0].mxu0
        %v1825 = vadd.f32 0.0, %v1824
        %1826 = vmatprep.mubr.f32.mxu0 0.0
        %1827 = vmatmul.mubr.f32.gmra.mrb[0].mxu0 %v1673
        %v1828 = vpop.f32.mrb[0].mxu0
        %v1829 = vadd.f32 0.0, %v1828
        %v1830 = vpop.f32.mrb[0].mxu0
        %v1831 = vadd.f32 0.0, %v1830
        %1832 = vmatprep.mubr.f32.mxu0 0.0
        %1833 = vmatmul.mubr.f32.gmra.mrb[0].mxu0 %v1676
        %v1834 = vpop.f32.mrb[0].mxu0
        %v1835 = vadd.f32 0.0, %v1834
        %v1836 = vpop.f32.mrb[0].mxu0
        %v1837 = vadd.f32 0.0, %v1836
        %1838 = vdwg.mxu0
        %1839 = vmatprep.subr.mxu0 %v1479
        %1840 = vmatpush1.msra.mxu0 %v1478
        %1841 = vmatprep.subr.mxu0 %v1483
        %1842 = vmatpush1.msra.mxu0 %v1482
        %1843 = vmatprep.subr.mxu0 %v1487
        %1844 = vmatpush1.msra.mxu0 %v1486
        %1845 = vmatprep.subr.mxu0 %v1491
        %1846 = vmatpush1.msra.mxu0 %v1490
        %1847 = vmatprep.subr.mxu0 %v1495
        %1848 = vmatpush1.msra.mxu0 %v1494
        %1849 = vmatprep.subr.mxu0 0.0
        %1850 = vmatpush1.msra.mxu0 0.0
        %1851 = vmatprep.subr.mxu0 0.0
        %1852 = vmatpush1.msra.mxu0 0.0
        %1853 = vmatprep.subr.mxu0 0.0
        %1854 = vmatpush1.msra.mxu0 0.0
        %1855 = vmatprep.subr.mxu0 0.0
        %1856 = vmatpush1.msra.mxu0 0.0
        %1857 = vmatprep.subr.mxu0 0.0
        %1858 = vmatpush1.msra.mxu0 0.0
        %1859 = vmatprep.subr.mxu0 0.0
        %1860 = vmatpush1.msra.mxu0 0.0
        %1861 = vmatprep.subr.mxu0 0.0
        %1862 = vmatpush1.msra.mxu0 0.0
        %1863 = vmatprep.subr.mxu0 0.0
        %1864 = vmatpush1.msra.mxu0 0.0
        %1865 = vmatprep.subr.mxu0 0.0
        %1866 = vmatpush1.msra.mxu0 0.0
        %1867 = vmatprep.subr.mxu0 0.0
        %1868 = vmatpush1.msra.mxu0 0.0
        %1869 = vmatprep.subr.mxu0 0.0
        %1870 = vmatpush1.msra.mxu0 0.0
        %1871 = vmatprep.subr.mxu0 0.0
        %1872 = vmatpush1.msra.mxu0 0.0
        %1873 = vmatprep.subr.mxu0 0.0
        %1874 = vmatpush1.msra.mxu0 0.0
        %1875 = vmatprep.subr.mxu0 0.0
        %1876 = vmatpush1.msra.mxu0 0.0
        %1877 = vmatprep.subr.mxu0 0.0
        %1878 = vmatpush1.msra.mxu0 0.0
        %1879 = vmatprep.subr.mxu0 0.0
        %1880 = vmatpush1.msra.mxu0 0.0
        %1881 = vmatprep.subr.mxu0 0.0
        %1882 = vmatpush1.msra.mxu0 0.0
        %1883 = vmatprep.subr.mxu0 0.0
        %1884 = vmatpush1.msra.mxu0 0.0
        %1885 = vmatprep.subr.mxu0 0.0
        %1886 = vmatpush1.msra.mxu0 0.0
        %1887 = vmatprep.subr.mxu0 0.0
        %1888 = vmatpush1.msra.mxu0 0.0
        %1889 = vmatprep.subr.mxu0 0.0
        %1890 = vmatpush1.msra.mxu0 0.0
        %1891 = vmatprep.subr.mxu0 0.0
        %1892 = vmatpush1.msra.mxu0 0.0
        %1893 = vmatprep.subr.mxu0 0.0
        %1894 = vmatpush1.msra.mxu0 0.0
        %1895 = vmatprep.subr.mxu0 0.0
        %1896 = vmatpush1.msra.mxu0 0.0
        %1897 = vmatprep.subr.mxu0 0.0
        %1898 = vmatpush1.msra.mxu0 0.0
        %1899 = vmatprep.subr.mxu0 0.0
        %1900 = vmatpush1.msra.mxu0 0.0
        %1901 = vmatprep.subr.mxu0 0.0
        %1902 = vmatpush1.msra.mxu0 0.0
        %1903 = vmatprep.mubr.f32.mxu0 0.0
        %1904 = vmatmul.mubr.f32.gmra.mrb[0].mxu0 %v1631
        %v1905 = vpop.f32.mrb[0].mxu0
        %v1906 = vadd.f32 0.0, %v1905
        %v1907 = vpop.f32.mrb[0].mxu0
        %v1908 = vadd.f32 0.0, %v1907
        %1909 = vmatprep.mubr.f32.mxu0 0.0
        %1910 = vmatmul.mubr.f32.gmra.mrb[0].mxu0 %v1634
        %v1911 = vpop.f32.mrb[0].mxu0
        %v1912 = vadd.f32 0.0, %v1911
        %v1913 = vpop.f32.mrb[0].mxu0
        %v1914 = vadd.f32 0.0, %v1913
        %1915 = vmatprep.mubr.f32.mxu0 0.0
        %1916 = vmatmul.mubr.f32.gmra.mrb[0].mxu0 %v1637
        %v1917 = vpop.f32.mrb[0].mxu0
        %v1918 = vadd.f32 0.0, %v1917
        %v1919 = vpop.f32.mrb[0].mxu0
        %v1920 = vadd.f32 0.0, %v1919
        %1921 = vmatprep.mubr.f32.mxu0 0.0
        %1922 = vmatmul.mubr.f32.gmra.mrb[0].mxu0 %v1640
        %v1923 = vpop.f32.mrb[0].mxu0
        %v1924 = vadd.f32 0.0, %v1923
        %v1925 = vpop.f32.mrb[0].mxu0
        %v1926 = vadd.f32 0.0, %v1925
        %1927 = vmatprep.mubr.f32.mxu0 0.0
        %1928 = vmatmul.mubr.f32.gmra.mrb[0].mxu0 %v1643
        %v1929 = vpop.f32.mrb[0].mxu0
        %v1930 = vadd.f32 0.0, %v1929
        %v1931 = vpop.f32.mrb[0].mxu0
        %v1932 = vadd.f32 0.0, %v1931
        %1933 = vmatprep.mubr.f32.mxu0 0.0
        %1934 = vmatmul.mubr.f32.gmra.mrb[0].mxu0 %v1646
        %v1935 = vpop.f32.mrb[0].mxu0
        %v1936 = vadd.f32 0.0, %v1935
        %v1937 = vpop.f32.mrb[0].mxu0
        %v1938 = vadd.f32 0.0, %v1937
        %1939 = vmatprep.mubr.f32.mxu0 0.0
        %1940 = vmatmul.mubr.f32.gmra.mrb[0].mxu0 %v1649
        %v1941 = vpop.f32.mrb[0].mxu0
        %v1942 = vadd.f32 0.0, %v1941
        %v1943 = vpop.f32.mrb[0].mxu0
        %v1944 = vadd.f32 0.0, %v1943
        %1945 = vmatprep.mubr.f32.mxu0 0.0
        %1946 = vmatmul.mubr.f32.gmra.mrb[0].mxu0 %v1652
        %v1947 = vpop.f32.mrb[0].mxu0
        %v1948 = vadd.f32 0.0, %v1947
        %v1949 = vpop.f32.mrb[0].mxu0
        %v1950 = vadd.f32 0.0, %v1949
        %1951 = vmatprep.mubr.f32.mxu0 0.0
        %1952 = vmatmul.mubr.f32.gmra.mrb[0].mxu0 %v1655
        %v1953 = vpop.f32.mrb[0].mxu0
        %v1954 = vadd.f32 0.0, %v1953
        %v1955 = vpop.f32.mrb[0].mxu0
        %v1956 = vadd.f32 0.0, %v1955
        %1957 = vmatprep.mubr.f32.mxu0 0.0
        %1958 = vmatmul.mubr.f32.gmra.mrb[0].mxu0 %v1658
        %v1959 = vpop.f32.mrb[0].mxu0
        %v1960 = vadd.f32 0.0, %v1959
        %v1961 = vpop.f32.mrb[0].mxu0
        %v1962 = vadd.f32 0.0, %v1961
        %1963 = vmatprep.mubr.f32.mxu0 0.0
        %1964 = vmatmul.mubr.f32.gmra.mrb[0].mxu0 %v1661
        %v1965 = vpop.f32.mrb[0].mxu0
        %v1966 = vadd.f32 0.0, %v1965
        %v1967 = vpop.f32.mrb[0].mxu0
        %v1968 = vadd.f32 0.0, %v1967
        %1969 = vmatprep.mubr.f32.mxu0 0.0
        %1970 = vmatmul.mubr.f32.gmra.mrb[0].mxu0 %v1664
        %v1971 = vpop.f32.mrb[0].mxu0
        %v1972 = vadd.f32 0.0, %v1971
        %v1973 = vpop.f32.mrb[0].mxu0
        %v1974 = vadd.f32 0.0, %v1973
        %1975 = vmatprep.mubr.f32.mxu0 0.0
        %1976 = vmatmul.mubr.f32.gmra.mrb[0].mxu0 %v1667
        %v1977 = vpop.f32.mrb[0].mxu0
        %v1978 = vadd.f32 0.0, %v1977
        %v1979 = vpop.f32.mrb[0].mxu0
        %v1980 = vadd.f32 0.0, %v1979
        %1981 = vmatprep.mubr.f32.mxu0 0.0
        %1982 = vmatmul.mubr.f32.gmra.mrb[0].mxu0 %v1670
        %v1983 = vpop.f32.mrb[0].mxu0
        %v1984 = vadd.f32 0.0, %v1983
        %v1985 = vpop.f32.mrb[0].mxu0
        %v1986 = vadd.f32 0.0, %v1985
        %1987 = vmatprep.mubr.f32.mxu0 0.0
        %1988 = vmatmul.mubr.f32.gmra.mrb[0].mxu0 %v1673
        %v1989 = vpop.f32.mrb[0].mxu0
        %v1990 = vadd.f32 0.0, %v1989
        %v1991 = vpop.f32.mrb[0].mxu0
        %v1992 = vadd.f32 0.0, %v1991
        %1993 = vmatprep.mubr.f32.mxu0 0.0
        %1994 = vmatmul.mubr.f32.gmra.mrb[0].mxu0 %v1676
        %v1995 = vpop.f32.mrb[0].mxu0
        %v1996 = vadd.f32 0.0, %v1995
        %v1997 = vpop.f32.mrb[0].mxu0
        %v1998 = vadd.f32 0.0, %v1997
        %1999 = vdwg.mxu0
        %v2000 = vmin.f32 %v1745, %v1751
        %v2001 = vmin.f32 %v2000, %v1757
        %v2002 = vmin.f32 %v2001, %v1763
        %v2003 = vmin.f32 %v2002, %v1769
        %v2004 = vmin.f32 %v2003, %v1775
        %v2005 = vmin.f32 %v2004, %v1781
        %v2006 = vmin.f32 %v2005, %v1787
        %v2007 = vmin.f32 %v2006, %v1793
        %v2008 = vmin.f32 %v2007, %v1799
        %v2009 = vmin.f32 %v2008, %v1805
        %v2010 = vmin.f32 %v2009, %v1811
        %v2011 = vmin.f32 %v2010, %v1817
        %v2012 = vmin.f32 %v2011, %v1823
        %v2013 = vmin.f32 %v2012, %v1829
        %v2014 = vmin.f32 %v2013, %v1835
        %v2015 = vrot.slane %v2014, 4
        %v2016 = vmin.f32 %v2014, %v2015
        %v2017 = vrot.slane %v2016, 2
        %v2018 = vmin.f32 %v2016, %v2017
        %v2019 = vrot.slane %v2018, 1
        %v2020 = vmin.f32 %v2018, %v2019
        %v2021 = vmin.f32 %v1747, %v1753
        %v2022 = vmin.f32 %v2021, %v1759
        %v2023 = vmin.f32 %v2022, %v1765
        %v2024 = vmin.f32 %v2023, %v1771
        %v2025 = vmin.f32 %v2024, %v1777
        %v2026 = vmin.f32 %v2025, %v1783
        %v2027 = vmin.f32 %v2026, %v1789
        %v2028 = vmin.f32 %v2027, %v1795
        %v2029 = vmin.f32 %v2028, %v1801
        %v2030 = vmin.f32 %v2029, %v1807
        %v2031 = vmin.f32 %v2030, %v1813
        %v2032 = vmin.f32 %v2031, %v1819
        %v2033 = vmin.f32 %v2032, %v1825
        %v2034 = vmin.f32 %v2033, %v1831
        %v2035 = vmin.f32 %v2034, %v1837
        %v2036 = vrot.slane %v2035, 4
        %v2037 = vmin.f32 %v2035, %v2036
        %v2038 = vrot.slane %v2037, 2
        %v2039 = vmin.f32 %v2037, %v2038
        %v2040 = vrot.slane %v2039, 1
        %v2041 = vmin.f32 %v2039, %v2040
        %v2042 = vmin.f32 %v1906, %v1912
        %v2043 = vmin.f32 %v2042, %v1918
        %v2044 = vmin.f32 %v2043, %v1924
        %v2045 = vmin.f32 %v2044, %v1930
        %v2046 = vmin.f32 %v2045, %v1936
        %v2047 = vmin.f32 %v2046, %v1942
        %v2048 = vmin.f32 %v2047, %v1948
        %v2049 = vmin.f32 %v2048, %v1954
        %v2050 = vmin.f32 %v2049, %v1960
        %v2051 = vmin.f32 %v2050, %v1966
        %v2052 = vmin.f32 %v2051, %v1972
        %v2053 = vmin.f32 %v2052, %v1978
        %v2054 = vmin.f32 %v2053, %v1984
        %v2055 = vmin.f32 %v2054, %v1990
        %v2056 = vmin.f32 %v2055, %v1996
        %v2057 = vrot.slane %v2056, 4
        %v2058 = vmin.f32 %v2056, %v2057
        %v2059 = vrot.slane %v2058, 2
        %v2060 = vmin.f32 %v2058, %v2059
        %v2061 = vrot.slane %v2060, 1
        %v2062 = vmin.f32 %v2060, %v2061
        %v2063 = vmin.f32 %v1908, %v1914
        %v2064 = vmin.f32 %v2063, %v1920
        %v2065 = vmin.f32 %v2064, %v1926
        %v2066 = vmin.f32 %v2065, %v1932
        %v2067 = vmin.f32 %v2066, %v1938
        %v2068 = vmin.f32 %v2067, %v1944
        %v2069 = vmin.f32 %v2068, %v1950
        %v2070 = vmin.f32 %v2069, %v1956
        %v2071 = vmin.f32 %v2070, %v1962
        %v2072 = vmin.f32 %v2071, %v1968
        %v2073 = vmin.f32 %v2072, %v1974
        %v2074 = vmin.f32 %v2073, %v1980
        %v2075 = vmin.f32 %v2074, %v1986
        %v2076 = vmin.f32 %v2075, %v1992
        %v2077 = vmin.f32 %v2076, %v1998
        %v2078 = vrot.slane %v2077, 4
        %v2079 = vmin.f32 %v2077, %v2078
        %v2080 = vrot.slane %v2079, 2
        %v2081 = vmin.f32 %v2079, %v2080
        %v2082 = vrot.slane %v2081, 1
        %v2083 = vmin.f32 %v2081, %v2082
        %vm2084 = vcmp.eq.f32.partialorder %v1745, %v2020
        %vm2085 = vcmp.eq.f32.partialorder %v1747, %v2041
        %vm2086 = vcmp.eq.f32.partialorder %v1906, %v2062
        %vm2087 = vcmp.eq.f32.partialorder %v1908, %v2083
        %vm2088 = vcmp.eq.f32.partialorder %v1751, %v2020
        %vm2089 = vcmp.eq.f32.partialorder %v1753, %v2041
        %vm2090 = vcmp.eq.f32.partialorder %v1912, %v2062
        %vm2091 = vcmp.eq.f32.partialorder %v1914, %v2083
        %vm2092 = vcmp.eq.f32.partialorder %v1757, %v2020
        %vm2093 = vcmp.eq.f32.partialorder %v1759, %v2041
        %vm2094 = vcmp.eq.f32.partialorder %v1918, %v2062
        %vm2095 = vcmp.eq.f32.partialorder %v1920, %v2083
        %vm2096 = vcmp.eq.f32.partialorder %v1763, %v2020
        %vm2097 = vcmp.eq.f32.partialorder %v1765, %v2041
        %vm2098 = vcmp.eq.f32.partialorder %v1924, %v2062
        %vm2099 = vcmp.eq.f32.partialorder %v1926, %v2083
        %vm2100 = vcmp.eq.f32.partialorder %v1769, %v2020
        %vm2101 = vcmp.eq.f32.partialorder %v1771, %v2041
        %vm2102 = vcmp.eq.f32.partialorder %v1930, %v2062
        %vm2103 = vcmp.eq.f32.partialorder %v1932, %v2083
        %vm2104 = vcmp.eq.f32.partialorder %v1775, %v2020
        %vm2105 = vcmp.eq.f32.partialorder %v1777, %v2041
        %vm2106 = vcmp.eq.f32.partialorder %v1936, %v2062
        %vm2107 = vcmp.eq.f32.partialorder %v1938, %v2083
        %vm2108 = vcmp.eq.f32.partialorder %v1781, %v2020
        %vm2109 = vcmp.eq.f32.partialorder %v1783, %v2041
        %vm2110 = vcmp.eq.f32.partialorder %v1942, %v2062
        %vm2111 = vcmp.eq.f32.partialorder %v1944, %v2083
        %vm2112 = vcmp.eq.f32.partialorder %v1787, %v2020
        %vm2113 = vcmp.eq.f32.partialorder %v1789, %v2041
        %vm2114 = vcmp.eq.f32.partialorder %v1948, %v2062
        %vm2115 = vcmp.eq.f32.partialorder %v1950, %v2083
        %vm2116 = vcmp.eq.f32.partialorder %v1793, %v2020
        %vm2117 = vcmp.eq.f32.partialorder %v1795, %v2041
        %vm2118 = vcmp.eq.f32.partialorder %v1954, %v2062
        %vm2119 = vcmp.eq.f32.partialorder %v1956, %v2083
        %vm2120 = vcmp.eq.f32.partialorder %v1799, %v2020
        %vm2121 = vcmp.eq.f32.partialorder %v1801, %v2041
        %vm2122 = vcmp.eq.f32.partialorder %v1960, %v2062
        %vm2123 = vcmp.eq.f32.partialorder %v1962, %v2083
        %vm2124 = vcmp.eq.f32.partialorder %v1805, %v2020
        %vm2125 = vcmp.eq.f32.partialorder %v1807, %v2041
        %vm2126 = vcmp.eq.f32.partialorder %v1966, %v2062
        %vm2127 = vcmp.eq.f32.partialorder %v1968, %v2083
        %vm2128 = vcmp.eq.f32.partialorder %v1811, %v2020
        %vm2129 = vcmp.eq.f32.partialorder %v1813, %v2041
        %vm2130 = vcmp.eq.f32.partialorder %v1972, %v2062
        %vm2131 = vcmp.eq.f32.partialorder %v1974, %v2083
        %vm2132 = vcmp.eq.f32.partialorder %v1817, %v2020
        %vm2133 = vcmp.eq.f32.partialorder %v1819, %v2041
        %vm2134 = vcmp.eq.f32.partialorder %v1978, %v2062
        %vm2135 = vcmp.eq.f32.partialorder %v1980, %v2083
        %vm2136 = vcmp.eq.f32.partialorder %v1823, %v2020
        %vm2137 = vcmp.eq.f32.partialorder %v1825, %v2041
        %vm2138 = vcmp.eq.f32.partialorder %v1984, %v2062
        %vm2139 = vcmp.eq.f32.partialorder %v1986, %v2083
        %vm2140 = vcmp.eq.f32.partialorder %v1829, %v2020
        %vm2141 = vcmp.eq.f32.partialorder %v1831, %v2041
        %vm2142 = vcmp.eq.f32.partialorder %v1990, %v2062
        %vm2143 = vcmp.eq.f32.partialorder %v1992, %v2083
        %vm2144 = vcmp.eq.f32.partialorder %v1835, %v2020
        %vm2145 = vcmp.eq.f32.partialorder %v1837, %v2041
        %vm2146 = vcmp.eq.f32.partialorder %v1996, %v2062
        %vm2147 = vcmp.eq.f32.partialorder %v1998, %v2083
        %v2148 = vsel %vm2084, %v315, 128
        %v2149 = vsel %vm2085, %v315, 128
        %v2150 = vsel %vm2086, %v315, 128
        %v2151 = vsel %vm2087, %v315, 128
        %v2152 = vsel %vm2088, %v319, 128
        %v2153 = vsel %vm2089, %v319, 128
        %v2154 = vsel %vm2090, %v319, 128
        %v2155 = vsel %vm2091, %v319, 128
        %v2156 = vsel %vm2092, %v320, 128
        %v2157 = vsel %vm2093, %v320, 128
        %v2158 = vsel %vm2094, %v320, 128
        %v2159 = vsel %vm2095, %v320, 128
        %v2160 = vsel %vm2096, %v321, 128
        %v2161 = vsel %vm2097, %v321, 128
        %v2162 = vsel %vm2098, %v321, 128
        %v2163 = vsel %vm2099, %v321, 128
        %v2164 = vsel %vm2100, %v322, 128
        %v2165 = vsel %vm2101, %v322, 128
        %v2166 = vsel %vm2102, %v322, 128
        %v2167 = vsel %vm2103, %v322, 128
        %v2168 = vsel %vm2104, %v323, 128
        %v2169 = vsel %vm2105, %v323, 128
        %v2170 = vsel %vm2106, %v323, 128
        %v2171 = vsel %vm2107, %v323, 128
        %v2172 = vsel %vm2108, %v324, 128
        %v2173 = vsel %vm2109, %v324, 128
        %v2174 = vsel %vm2110, %v324, 128
        %v2175 = vsel %vm2111, %v324, 128
        %v2176 = vsel %vm2112, %v325, 128
        %v2177 = vsel %vm2113, %v325, 128
        %v2178 = vsel %vm2114, %v325, 128
        %v2179 = vsel %vm2115, %v325, 128
        %v2180 = vsel %vm2116, %v326, 128
        %v2181 = vsel %vm2117, %v326, 128
        %v2182 = vsel %vm2118, %v326, 128
        %v2183 = vsel %vm2119, %v326, 128
        %v2184 = vsel %vm2120, %v327, 128
        %v2185 = vsel %vm2121, %v327, 128
        %v2186 = vsel %vm2122, %v327, 128
        %v2187 = vsel %vm2123, %v327, 128
        %v2188 = vsel %vm2124, %v328, 128
        %v2189 = vsel %vm2125, %v328, 128
        %v2190 = vsel %vm2126, %v328, 128
        %v2191 = vsel %vm2127, %v328, 128
        %v2192 = vsel %vm2128, %v329, 128
        %v2193 = vsel %vm2129, %v329, 128
        %v2194 = vsel %vm2130, %v329, 128
        %v2195 = vsel %vm2131, %v329, 128
        %v2196 = vsel %vm2132, %v330, 128
        %v2197 = vsel %vm2133, %v330, 128
        %v2198 = vsel %vm2134, %v330, 128
        %v2199 = vsel %vm2135, %v330, 128
        %v2200 = vsel %vm2136, %v331, 128
        %v2201 = vsel %vm2137, %v331, 128
        %v2202 = vsel %vm2138, %v331, 128
        %v2203 = vsel %vm2139, %v331, 128
        %v2204 = vsel %vm2140, %v332, 128
        %v2205 = vsel %vm2141, %v332, 128
        %v2206 = vsel %vm2142, %v332, 128
        %v2207 = vsel %vm2143, %v332, 128
        %v2208 = vsel %vm2144, %v333, 128
        %v2209 = vsel %vm2145, %v333, 128
        %v2210 = vsel %vm2146, %v333, 128
        %v2211 = vsel %vm2147, %v333, 128
        %vm2212 = vcmp.lt.s32.totalorder %v2148, %v2152
        %v2213 = vsel %vm2212, %v2148, %v2152
        %vm2214 = vcmp.lt.s32.totalorder %v2213, %v2156
        %v2215 = vsel %vm2214, %v2213, %v2156
        %vm2216 = vcmp.lt.s32.totalorder %v2215, %v2160
        %v2217 = vsel %vm2216, %v2215, %v2160
        %vm2218 = vcmp.lt.s32.totalorder %v2217, %v2164
        %v2219 = vsel %vm2218, %v2217, %v2164
        %vm2220 = vcmp.lt.s32.totalorder %v2219, %v2168
        %v2221 = vsel %vm2220, %v2219, %v2168
        %vm2222 = vcmp.lt.s32.totalorder %v2221, %v2172
        %v2223 = vsel %vm2222, %v2221, %v2172
        %vm2224 = vcmp.lt.s32.totalorder %v2223, %v2176
        %v2225 = vsel %vm2224, %v2223, %v2176
        %vm2226 = vcmp.lt.s32.totalorder %v2225, %v2180
        %v2227 = vsel %vm2226, %v2225, %v2180
        %vm2228 = vcmp.lt.s32.totalorder %v2227, %v2184
        %v2229 = vsel %vm2228, %v2227, %v2184
        %vm2230 = vcmp.lt.s32.totalorder %v2229, %v2188
        %v2231 = vsel %vm2230, %v2229, %v2188
        %vm2232 = vcmp.lt.s32.totalorder %v2231, %v2192
        %v2233 = vsel %vm2232, %v2231, %v2192
        %vm2234 = vcmp.lt.s32.totalorder %v2233, %v2196
        %v2235 = vsel %vm2234, %v2233, %v2196
        %vm2236 = vcmp.lt.s32.totalorder %v2235, %v2200
        %v2237 = vsel %vm2236, %v2235, %v2200
        %vm2238 = vcmp.lt.s32.totalorder %v2237, %v2204
        %v2239 = vsel %vm2238, %v2237, %v2204
        %vm2240 = vcmp.lt.s32.totalorder %v2239, %v2208
        %v2241 = vsel %vm2240, %v2239, %v2208
        %v2242 = vrot.slane %v2241, 4
        %vm2243 = vcmp.lt.s32.totalorder %v2241, %v2242
        %v2244 = vsel %vm2243, %v2241, %v2242
        %v2245 = vrot.slane %v2244, 2
        %vm2246 = vcmp.lt.s32.totalorder %v2244, %v2245
        %v2247 = vsel %vm2246, %v2244, %v2245
        %v2248 = vrot.slane %v2247, 1
        %vm2249 = vcmp.lt.s32.totalorder %v2247, %v2248
        %v2250 = vsel %vm2249, %v2247, %v2248
        %vm2251 = vcmp.lt.s32.totalorder %v2149, %v2153
        %v2252 = vsel %vm2251, %v2149, %v2153
        %vm2253 = vcmp.lt.s32.totalorder %v2252, %v2157
        %v2254 = vsel %vm2253, %v2252, %v2157
        %vm2255 = vcmp.lt.s32.totalorder %v2254, %v2161
        %v2256 = vsel %vm2255, %v2254, %v2161
        %vm2257 = vcmp.lt.s32.totalorder %v2256, %v2165
        %v2258 = vsel %vm2257, %v2256, %v2165
        %vm2259 = vcmp.lt.s32.totalorder %v2258, %v2169
        %v2260 = vsel %vm2259, %v2258, %v2169
        %vm2261 = vcmp.lt.s32.totalorder %v2260, %v2173
        %v2262 = vsel %vm2261, %v2260, %v2173
        %vm2263 = vcmp.lt.s32.totalorder %v2262, %v2177
        %v2264 = vsel %vm2263, %v2262, %v2177
        %vm2265 = vcmp.lt.s32.totalorder %v2264, %v2181
        %v2266 = vsel %vm2265, %v2264, %v2181
        %vm2267 = vcmp.lt.s32.totalorder %v2266, %v2185
        %v2268 = vsel %vm2267, %v2266, %v2185
        %vm2269 = vcmp.lt.s32.totalorder %v2268, %v2189
        %v2270 = vsel %vm2269, %v2268, %v2189
        %vm2271 = vcmp.lt.s32.totalorder %v2270, %v2193
        %v2272 = vsel %vm2271, %v2270, %v2193
        %vm2273 = vcmp.lt.s32.totalorder %v2272, %v2197
        %v2274 = vsel %vm2273, %v2272, %v2197
        %vm2275 = vcmp.lt.s32.totalorder %v2274, %v2201
        %v2276 = vsel %vm2275, %v2274, %v2201
        %vm2277 = vcmp.lt.s32.totalorder %v2276, %v2205
        %v2278 = vsel %vm2277, %v2276, %v2205
        %vm2279 = vcmp.lt.s32.totalorder %v2278, %v2209
        %v2280 = vsel %vm2279, %v2278, %v2209
        %v2281 = vrot.slane %v2280, 4
        %vm2282 = vcmp.lt.s32.totalorder %v2280, %v2281
        %v2283 = vsel %vm2282, %v2280, %v2281
        %v2284 = vrot.slane %v2283, 2
        %vm2285 = vcmp.lt.s32.totalorder %v2283, %v2284
        %v2286 = vsel %vm2285, %v2283, %v2284
        %v2287 = vrot.slane %v2286, 1
        %vm2288 = vcmp.lt.s32.totalorder %v2286, %v2287
        %v2289 = vsel %vm2288, %v2286, %v2287
        %vm2290 = vcmp.lt.s32.totalorder %v2150, %v2154
        %v2291 = vsel %vm2290, %v2150, %v2154
        %vm2292 = vcmp.lt.s32.totalorder %v2291, %v2158
        %v2293 = vsel %vm2292, %v2291, %v2158
        %vm2294 = vcmp.lt.s32.totalorder %v2293, %v2162
        %v2295 = vsel %vm2294, %v2293, %v2162
        %vm2296 = vcmp.lt.s32.totalorder %v2295, %v2166
        %v2297 = vsel %vm2296, %v2295, %v2166
        %vm2298 = vcmp.lt.s32.totalorder %v2297, %v2170
        %v2299 = vsel %vm2298, %v2297, %v2170
        %vm2300 = vcmp.lt.s32.totalorder %v2299, %v2174
        %v2301 = vsel %vm2300, %v2299, %v2174
        %vm2302 = vcmp.lt.s32.totalorder %v2301, %v2178
        %v2303 = vsel %vm2302, %v2301, %v2178
        %vm2304 = vcmp.lt.s32.totalorder %v2303, %v2182
        %v2305 = vsel %vm2304, %v2303, %v2182
        %vm2306 = vcmp.lt.s32.totalorder %v2305, %v2186
        %v2307 = vsel %vm2306, %v2305, %v2186
        %vm2308 = vcmp.lt.s32.totalorder %v2307, %v2190
        %v2309 = vsel %vm2308, %v2307, %v2190
        %vm2310 = vcmp.lt.s32.totalorder %v2309, %v2194
        %v2311 = vsel %vm2310, %v2309, %v2194
        %vm2312 = vcmp.lt.s32.totalorder %v2311, %v2198
        %v2313 = vsel %vm2312, %v2311, %v2198
        %vm2314 = vcmp.lt.s32.totalorder %v2313, %v2202
        %v2315 = vsel %vm2314, %v2313, %v2202
        %vm2316 = vcmp.lt.s32.totalorder %v2315, %v2206
        %v2317 = vsel %vm2316, %v2315, %v2206
        %vm2318 = vcmp.lt.s32.totalorder %v2317, %v2210
        %v2319 = vsel %vm2318, %v2317, %v2210
        %v2320 = vrot.slane %v2319, 4
        %vm2321 = vcmp.lt.s32.totalorder %v2319, %v2320
        %v2322 = vsel %vm2321, %v2319, %v2320
        %v2323 = vrot.slane %v2322, 2
        %vm2324 = vcmp.lt.s32.totalorder %v2322, %v2323
        %v2325 = vsel %vm2324, %v2322, %v2323
        %v2326 = vrot.slane %v2325, 1
        %vm2327 = vcmp.lt.s32.totalorder %v2325, %v2326
        %v2328 = vsel %vm2327, %v2325, %v2326
        %vm2329 = vcmp.lt.s32.totalorder %v2151, %v2155
        %v2330 = vsel %vm2329, %v2151, %v2155
        %vm2331 = vcmp.lt.s32.totalorder %v2330, %v2159
        %v2332 = vsel %vm2331, %v2330, %v2159
        %vm2333 = vcmp.lt.s32.totalorder %v2332, %v2163
        %v2334 = vsel %vm2333, %v2332, %v2163
        %vm2335 = vcmp.lt.s32.totalorder %v2334, %v2167
        %v2336 = vsel %vm2335, %v2334, %v2167
        %vm2337 = vcmp.lt.s32.totalorder %v2336, %v2171
        %v2338 = vsel %vm2337, %v2336, %v2171
        %vm2339 = vcmp.lt.s32.totalorder %v2338, %v2175
        %v2340 = vsel %vm2339, %v2338, %v2175
        %vm2341 = vcmp.lt.s32.totalorder %v2340, %v2179
        %v2342 = vsel %vm2341, %v2340, %v2179
        %vm2343 = vcmp.lt.s32.totalorder %v2342, %v2183
        %v2344 = vsel %vm2343, %v2342, %v2183
        %vm2345 = vcmp.lt.s32.totalorder %v2344, %v2187
        %v2346 = vsel %vm2345, %v2344, %v2187
        %vm2347 = vcmp.lt.s32.totalorder %v2346, %v2191
        %v2348 = vsel %vm2347, %v2346, %v2191
        %vm2349 = vcmp.lt.s32.totalorder %v2348, %v2195
        %v2350 = vsel %vm2349, %v2348, %v2195
        %vm2351 = vcmp.lt.s32.totalorder %v2350, %v2199
        %v2352 = vsel %vm2351, %v2350, %v2199
        %vm2353 = vcmp.lt.s32.totalorder %v2352, %v2203
        %v2354 = vsel %vm2353, %v2352, %v2203
        %vm2355 = vcmp.lt.s32.totalorder %v2354, %v2207
        %v2356 = vsel %vm2355, %v2354, %v2207
        %vm2357 = vcmp.lt.s32.totalorder %v2356, %v2211
        %v2358 = vsel %vm2357, %v2356, %v2211
        %v2359 = vrot.slane %v2358, 4
        %vm2360 = vcmp.lt.s32.totalorder %v2358, %v2359
        %v2361 = vsel %vm2360, %v2358, %v2359
        %v2362 = vrot.slane %v2361, 2
        %vm2363 = vcmp.lt.s32.totalorder %v2361, %v2362
        %v2364 = vsel %vm2363, %v2361, %v2362
        %v2365 = vrot.slane %v2364, 1
        %vm2366 = vcmp.lt.s32.totalorder %v2364, %v2365
        %v2367 = vsel %vm2366, %v2364, %v2365
        %vm2368 = vcmp.eq.s32.totalorder %v315, %v2250
        %vm2369 = vcmp.eq.s32.totalorder %v315, %v2289
        %vm2370 = vcmp.eq.s32.totalorder %v315, %v2328
        %vm2371 = vcmp.eq.s32.totalorder %v315, %v2367
        %vm2372 = vcmp.eq.s32.totalorder %v319, %v2250
        %vm2373 = vcmp.eq.s32.totalorder %v319, %v2289
        %vm2374 = vcmp.eq.s32.totalorder %v319, %v2328
        %vm2375 = vcmp.eq.s32.totalorder %v319, %v2367
        %vm2376 = vcmp.eq.s32.totalorder %v320, %v2250
        %vm2377 = vcmp.eq.s32.totalorder %v320, %v2289
        %vm2378 = vcmp.eq.s32.totalorder %v320, %v2328
        %vm2379 = vcmp.eq.s32.totalorder %v320, %v2367
        %vm2380 = vcmp.eq.s32.totalorder %v321, %v2250
        %vm2381 = vcmp.eq.s32.totalorder %v321, %v2289
        %vm2382 = vcmp.eq.s32.totalorder %v321, %v2328
        %vm2383 = vcmp.eq.s32.totalorder %v321, %v2367
        %vm2384 = vcmp.eq.s32.totalorder %v322, %v2250
        %vm2385 = vcmp.eq.s32.totalorder %v322, %v2289
        %vm2386 = vcmp.eq.s32.totalorder %v322, %v2328
        %vm2387 = vcmp.eq.s32.totalorder %v322, %v2367
        %vm2388 = vcmp.eq.s32.totalorder %v323, %v2250
        %vm2389 = vcmp.eq.s32.totalorder %v323, %v2289
        %vm2390 = vcmp.eq.s32.totalorder %v323, %v2328
        %vm2391 = vcmp.eq.s32.totalorder %v323, %v2367
        %vm2392 = vcmp.eq.s32.totalorder %v324, %v2250
        %vm2393 = vcmp.eq.s32.totalorder %v324, %v2289
        %vm2394 = vcmp.eq.s32.totalorder %v324, %v2328
        %vm2395 = vcmp.eq.s32.totalorder %v324, %v2367
        %vm2396 = vcmp.eq.s32.totalorder %v325, %v2250
        %vm2397 = vcmp.eq.s32.totalorder %v325, %v2289
        %vm2398 = vcmp.eq.s32.totalorder %v325, %v2328
        %vm2399 = vcmp.eq.s32.totalorder %v325, %v2367
        %vm2400 = vcmp.eq.s32.totalorder %v326, %v2250
        %vm2401 = vcmp.eq.s32.totalorder %v326, %v2289
        %vm2402 = vcmp.eq.s32.totalorder %v326, %v2328
        %vm2403 = vcmp.eq.s32.totalorder %v326, %v2367
        %vm2404 = vcmp.eq.s32.totalorder %v327, %v2250
        %vm2405 = vcmp.eq.s32.totalorder %v327, %v2289
        %vm2406 = vcmp.eq.s32.totalorder %v327, %v2328
        %vm2407 = vcmp.eq.s32.totalorder %v327, %v2367
        %vm2408 = vcmp.eq.s32.totalorder %v328, %v2250
        %vm2409 = vcmp.eq.s32.totalorder %v328, %v2289
        %vm2410 = vcmp.eq.s32.totalorder %v328, %v2328
        %vm2411 = vcmp.eq.s32.totalorder %v328, %v2367
        %vm2412 = vcmp.eq.s32.totalorder %v329, %v2250
        %vm2413 = vcmp.eq.s32.totalorder %v329, %v2289
        %vm2414 = vcmp.eq.s32.totalorder %v329, %v2328
        %vm2415 = vcmp.eq.s32.totalorder %v329, %v2367
        %vm2416 = vcmp.eq.s32.totalorder %v330, %v2250
        %vm2417 = vcmp.eq.s32.totalorder %v330, %v2289
        %vm2418 = vcmp.eq.s32.totalorder %v330, %v2328
        %vm2419 = vcmp.eq.s32.totalorder %v330, %v2367
        %vm2420 = vcmp.eq.s32.totalorder %v331, %v2250
        %vm2421 = vcmp.eq.s32.totalorder %v331, %v2289
        %vm2422 = vcmp.eq.s32.totalorder %v331, %v2328
        %vm2423 = vcmp.eq.s32.totalorder %v331, %v2367
        %vm2424 = vcmp.eq.s32.totalorder %v332, %v2250
        %vm2425 = vcmp.eq.s32.totalorder %v332, %v2289
        %vm2426 = vcmp.eq.s32.totalorder %v332, %v2328
        %vm2427 = vcmp.eq.s32.totalorder %v332, %v2367
        %vm2428 = vcmp.eq.s32.totalorder %v333, %v2250
        %vm2429 = vcmp.eq.s32.totalorder %v333, %v2289
        %vm2430 = vcmp.eq.s32.totalorder %v333, %v2328
        %vm2431 = vcmp.eq.s32.totalorder %v333, %v2367
        %v2432 = vsel %vm2368, 1, 0
        %v2433 = vsel %vm2369, 1, 0
        %v2434 = vsel %vm2370, 1, 0
        %v2435 = vsel %vm2371, 1, 0
        %v2436 = vsel %vm2372, 1, 0
        %v2437 = vsel %vm2373, 1, 0
        %v2438 = vsel %vm2374, 1, 0
        %v2439 = vsel %vm2375, 1, 0
        %v2440 = vsel %vm2376, 1, 0
        %v2441 = vsel %vm2377, 1, 0
        %v2442 = vsel %vm2378, 1, 0
        %v2443 = vsel %vm2379, 1, 0
        %v2444 = vsel %vm2380, 1, 0
        %v2445 = vsel %vm2381, 1, 0
        %v2446 = vsel %vm2382, 1, 0
        %v2447 = vsel %vm2383, 1, 0
        %v2448 = vsel %vm2384, 1, 0
        %v2449 = vsel %vm2385, 1, 0
        %v2450 = vsel %vm2386, 1, 0
        %v2451 = vsel %vm2387, 1, 0
        %v2452 = vsel %vm2388, 1, 0
        %v2453 = vsel %vm2389, 1, 0
        %v2454 = vsel %vm2390, 1, 0
        %v2455 = vsel %vm2391, 1, 0
        %v2456 = vsel %vm2392, 1, 0
        %v2457 = vsel %vm2393, 1, 0
        %v2458 = vsel %vm2394, 1, 0
        %v2459 = vsel %vm2395, 1, 0
        %v2460 = vsel %vm2396, 1, 0
        %v2461 = vsel %vm2397, 1, 0
        %v2462 = vsel %vm2398, 1, 0
        %v2463 = vsel %vm2399, 1, 0
        %v2464 = vsel %vm2400, 1, 0
        %v2465 = vsel %vm2401, 1, 0
        %v2466 = vsel %vm2402, 1, 0
        %v2467 = vsel %vm2403, 1, 0
        %v2468 = vsel %vm2404, 1, 0
        %v2469 = vsel %vm2405, 1, 0
        %v2470 = vsel %vm2406, 1, 0
        %v2471 = vsel %vm2407, 1, 0
        %v2472 = vsel %vm2408, 1, 0
        %v2473 = vsel %vm2409, 1, 0
        %v2474 = vsel %vm2410, 1, 0
        %v2475 = vsel %vm2411, 1, 0
        %v2476 = vsel %vm2412, 1, 0
        %v2477 = vsel %vm2413, 1, 0
        %v2478 = vsel %vm2414, 1, 0
        %v2479 = vsel %vm2415, 1, 0
        %v2480 = vsel %vm2416, 1, 0
        %v2481 = vsel %vm2417, 1, 0
        %v2482 = vsel %vm2418, 1, 0
        %v2483 = vsel %vm2419, 1, 0
        %v2484 = vsel %vm2420, 1, 0
        %v2485 = vsel %vm2421, 1, 0
        %v2486 = vsel %vm2422, 1, 0
        %v2487 = vsel %vm2423, 1, 0
        %v2488 = vsel %vm2424, 1, 0
        %v2489 = vsel %vm2425, 1, 0
        %v2490 = vsel %vm2426, 1, 0
        %v2491 = vsel %vm2427, 1, 0
        %v2492 = vsel %vm2428, 1, 0
        %v2493 = vsel %vm2429, 1, 0
        %v2494 = vsel %vm2430, 1, 0
        %v2495 = vsel %vm2431, 1, 0
        %v2496 = vcvt.s32.f32 %v2432
        %v2497 = vcvt.s32.f32 %v2433
        %v2498 = vcvt.s32.f32 %v2434
        %v2499 = vcvt.s32.f32 %v2435
        %v2500 = vcvt.s32.f32 %v2436
        %v2501 = vcvt.s32.f32 %v2437
        %v2502 = vcvt.s32.f32 %v2438
        %v2503 = vcvt.s32.f32 %v2439
        %v2504 = vcvt.s32.f32 %v2440
        %v2505 = vcvt.s32.f32 %v2441
        %v2506 = vcvt.s32.f32 %v2442
        %v2507 = vcvt.s32.f32 %v2443
        %v2508 = vcvt.s32.f32 %v2444
        %v2509 = vcvt.s32.f32 %v2445
        %v2510 = vcvt.s32.f32 %v2446
        %v2511 = vcvt.s32.f32 %v2447
        %v2512 = vcvt.s32.f32 %v2448
        %v2513 = vcvt.s32.f32 %v2449
        %v2514 = vcvt.s32.f32 %v2450
        %v2515 = vcvt.s32.f32 %v2451
        %v2516 = vcvt.s32.f32 %v2452
        %v2517 = vcvt.s32.f32 %v2453
        %v2518 = vcvt.s32.f32 %v2454
        %v2519 = vcvt.s32.f32 %v2455
        %v2520 = vcvt.s32.f32 %v2456
        %v2521 = vcvt.s32.f32 %v2457
        %v2522 = vcvt.s32.f32 %v2458
        %v2523 = vcvt.s32.f32 %v2459
        %v2524 = vcvt.s32.f32 %v2460
        %v2525 = vcvt.s32.f32 %v2461
        %v2526 = vcvt.s32.f32 %v2462
        %v2527 = vcvt.s32.f32 %v2463
        %v2528 = vcvt.s32.f32 %v2464
        %v2529 = vcvt.s32.f32 %v2465
        %v2530 = vcvt.s32.f32 %v2466
        %v2531 = vcvt.s32.f32 %v2467
        %v2532 = vcvt.s32.f32 %v2468
        %v2533 = vcvt.s32.f32 %v2469
        %v2534 = vcvt.s32.f32 %v2470
        %v2535 = vcvt.s32.f32 %v2471
        %v2536 = vcvt.s32.f32 %v2472
        %v2537 = vcvt.s32.f32 %v2473
        %v2538 = vcvt.s32.f32 %v2474
        %v2539 = vcvt.s32.f32 %v2475
        %v2540 = vcvt.s32.f32 %v2476
        %v2541 = vcvt.s32.f32 %v2477
        %v2542 = vcvt.s32.f32 %v2478
        %v2543 = vcvt.s32.f32 %v2479
        %v2544 = vcvt.s32.f32 %v2480
        %v2545 = vcvt.s32.f32 %v2481
        %v2546 = vcvt.s32.f32 %v2482
        %v2547 = vcvt.s32.f32 %v2483
        %v2548 = vcvt.s32.f32 %v2484
        %v2549 = vcvt.s32.f32 %v2485
        %v2550 = vcvt.s32.f32 %v2486
        %v2551 = vcvt.s32.f32 %v2487
        %v2552 = vcvt.s32.f32 %v2488
        %v2553 = vcvt.s32.f32 %v2489
        %v2554 = vcvt.s32.f32 %v2490
        %v2555 = vcvt.s32.f32 %v2491
        %v2556 = vcvt.s32.f32 %v2492
        %v2557 = vcvt.s32.f32 %v2493
        %v2558 = vcvt.s32.f32 %v2494
        %v2559 = vcvt.s32.f32 %v2495
        %2560 = vmatprep.subr.mxu0 %v2497
        %2561 = vmatpush1.msra.mxu0 %v2496
        %2562 = vmatprep.subr.mxu0 %v2501
        %2563 = vmatpush1.msra.mxu0 %v2500
        %2564 = vmatprep.subr.mxu0 %v2505
        %2565 = vmatpush1.msra.mxu0 %v2504
        %2566 = vmatprep.subr.mxu0 %v2509
        %2567 = vmatpush1.msra.mxu0 %v2508
        %2568 = vmatprep.subr.mxu0 %v2513
        %2569 = vmatpush1.msra.mxu0 %v2512
        %2570 = vmatprep.subr.mxu0 %v2517
        %2571 = vmatpush1.msra.mxu0 %v2516
        %2572 = vmatprep.subr.mxu0 %v2521
        %2573 = vmatpush1.msra.mxu0 %v2520
        %2574 = vmatprep.subr.mxu0 %v2525
        %2575 = vmatpush1.msra.mxu0 %v2524
        %2576 = vmatprep.subr.mxu0 %v2529
        %2577 = vmatpush1.msra.mxu0 %v2528
        %2578 = vmatprep.subr.mxu0 %v2533
        %2579 = vmatpush1.msra.mxu0 %v2532
        %2580 = vmatprep.subr.mxu0 %v2537
        %2581 = vmatpush1.msra.mxu0 %v2536
        %2582 = vmatprep.subr.mxu0 %v2541
        %2583 = vmatpush1.msra.mxu0 %v2540
        %2584 = vmatprep.subr.mxu0 %v2545
        %2585 = vmatpush1.msra.mxu0 %v2544
        %2586 = vmatprep.subr.mxu0 %v2549
        %2587 = vmatpush1.msra.mxu0 %v2548
        %2588 = vmatprep.subr.mxu0 %v2553
        %2589 = vmatpush1.msra.mxu0 %v2552
        %2590 = vmatprep.subr.mxu0 %v2557
        %2591 = vmatpush1.msra.mxu0 %v2556
        %2592 = vmatprep.subr.mxu0 0.0
        %2593 = vmatpush1.msra.mxu0 0.0
        %2594 = vmatprep.subr.mxu0 0.0
        %2595 = vmatpush1.msra.mxu0 0.0
        %2596 = vmatprep.subr.mxu0 0.0
        %2597 = vmatpush1.msra.mxu0 0.0
        %2598 = vmatprep.subr.mxu0 0.0
        %2599 = vmatpush1.msra.mxu0 0.0
        %2600 = vmatprep.subr.mxu0 0.0
        %2601 = vmatpush1.msra.mxu0 0.0
        %2602 = vmatprep.subr.mxu0 0.0
        %2603 = vmatpush1.msra.mxu0 0.0
        %2604 = vmatprep.subr.mxu0 0.0
        %2605 = vmatpush1.msra.mxu0 0.0
        %2606 = vmatprep.subr.mxu0 0.0
        %2607 = vmatpush1.msra.mxu0 0.0
        %2608 = vmatprep.subr.mxu0 0.0
        %2609 = vmatpush1.msra.mxu0 0.0
        %2610 = vmatprep.subr.mxu0 0.0
        %2611 = vmatpush1.msra.mxu0 0.0
        %2612 = vmatprep.subr.mxu0 0.0
        %2613 = vmatpush1.msra.mxu0 0.0
        %2614 = vmatprep.subr.mxu0 0.0
        %2615 = vmatpush1.msra.mxu0 0.0
        %2616 = vmatprep.subr.mxu0 0.0
        %2617 = vmatpush1.msra.mxu0 0.0
        %2618 = vmatprep.subr.mxu0 0.0
        %2619 = vmatpush1.msra.mxu0 0.0
        %2620 = vmatprep.subr.mxu0 0.0
        %2621 = vmatpush1.msra.mxu0 0.0
        %2622 = vmatprep.subr.mxu0 0.0
        %2623 = vmatpush1.msra.mxu0 0.0
        %2624 = vmatprep.mubr.f32.mxu0 0.0
        %2625 = vmatmul.mubr.f32.gmra.mrb[0].mxu0 %v1625
        %v2626 = vpop.f32.mrb[0].mxu0
        %v2627 = vadd.f32 0.0, %v2626
        %v2628 = vpop.f32.mrb[0].mxu0
        %v2629 = vadd.f32 0.0, %v2628
        %2630 = vmatprep.mubr.f32.mxu0 0.0
        %2631 = vmatmul.mubr.f32.gmra.mrb[0].mxu0 %v1626
        %v2632 = vpop.f32.mrb[0].mxu0
        %v2633 = vadd.f32 0.0, %v2632
        %v2634 = vpop.f32.mrb[0].mxu0
        %v2635 = vadd.f32 0.0, %v2634
        %2636 = vmatprep.mubr.f32.mxu0 0.0
        %2637 = vmatmul.mubr.f32.gmra.mrb[0].mxu0 %v1627
        %v2638 = vpop.f32.mrb[0].mxu0
        %v2639 = vadd.f32 0.0, %v2638
        %v2640 = vpop.f32.mrb[0].mxu0
        %v2641 = vadd.f32 0.0, %v2640
        %2642 = vmatprep.mubr.f32.mxu0 0.0
        %2643 = vmatmul.mubr.f32.gmra.mrb[0].mxu0 %v1628
        %v2644 = vpop.f32.mrb[0].mxu0
        %v2645 = vadd.f32 0.0, %v2644
        %v2646 = vpop.f32.mrb[0].mxu0
        %v2647 = vadd.f32 0.0, %v2646
        %2648 = vmatprep.mubr.f32.mxu0 0.0
        %2649 = vmatmul.mubr.f32.gmra.mrb[0].mxu0 %v1629
        %v2650 = vpop.f32.mrb[0].mxu0
        %v2651 = vadd.f32 0.0, %v2650
        %v2652 = vpop.f32.mrb[0].mxu0
        %v2653 = vadd.f32 0.0, %v2652
        %2654 = vdwg.mxu0
        %2655 = vmatprep.subr.mxu0 %v2499
        %2656 = vmatpush1.msra.mxu0 %v2498
        %2657 = vmatprep.subr.mxu0 %v2503
        %2658 = vmatpush1.msra.mxu0 %v2502
        %2659 = vmatprep.subr.mxu0 %v2507
        %2660 = vmatpush1.msra.mxu0 %v2506
        %2661 = vmatprep.subr.mxu0 %v2511
        %2662 = vmatpush1.msra.mxu0 %v2510
        %2663 = vmatprep.subr.mxu0 %v2515
        %2664 = vmatpush1.msra.mxu0 %v2514
        %2665 = vmatprep.subr.mxu0 %v2519
        %2666 = vmatpush1.msra.mxu0 %v2518
        %2667 = vmatprep.subr.mxu0 %v2523
        %2668 = vmatpush1.msra.mxu0 %v2522
        %2669 = vmatprep.subr.mxu0 %v2527
        %2670 = vmatpush1.msra.mxu0 %v2526
        %2671 = vmatprep.subr.mxu0 %v2531
        %2672 = vmatpush1.msra.mxu0 %v2530
        %2673 = vmatprep.subr.mxu0 %v2535
        %2674 = vmatpush1.msra.mxu0 %v2534
        %2675 = vmatprep.subr.mxu0 %v2539
        %2676 = vmatpush1.msra.mxu0 %v2538
        %2677 = vmatprep.subr.mxu0 %v2543
        %2678 = vmatpush1.msra.mxu0 %v2542
        %2679 = vmatprep.subr.mxu0 %v2547
        %2680 = vmatpush1.msra.mxu0 %v2546
        %2681 = vmatprep.subr.mxu0 %v2551
        %2682 = vmatpush1.msra.mxu0 %v2550
        %2683 = vmatprep.subr.mxu0 %v2555
        %2684 = vmatpush1.msra.mxu0 %v2554
        %2685 = vmatprep.subr.mxu0 %v2559
        %2686 = vmatpush1.msra.mxu0 %v2558
        %2687 = vmatprep.subr.mxu0 0.0
        %2688 = vmatpush1.msra.mxu0 0.0
        %2689 = vmatprep.subr.mxu0 0.0
        %2690 = vmatpush1.msra.mxu0 0.0
        %2691 = vmatprep.subr.mxu0 0.0
        %2692 = vmatpush1.msra.mxu0 0.0
        %2693 = vmatprep.subr.mxu0 0.0
        %2694 = vmatpush1.msra.mxu0 0.0
        %2695 = vmatprep.subr.mxu0 0.0
        %2696 = vmatpush1.msra.mxu0 0.0
        %2697 = vmatprep.subr.mxu0 0.0
        %2698 = vmatpush1.msra.mxu0 0.0
        %2699 = vmatprep.subr.mxu0 0.0
        %2700 = vmatpush1.msra.mxu0 0.0
        %2701 = vmatprep.subr.mxu0 0.0
        %2702 = vmatpush1.msra.mxu0 0.0
        %2703 = vmatprep.subr.mxu0 0.0
        %2704 = vmatpush1.msra.mxu0 0.0
        %2705 = vmatprep.subr.mxu0 0.0
        %2706 = vmatpush1.msra.mxu0 0.0
        %2707 = vmatprep.subr.mxu0 0.0
        %2708 = vmatpush1.msra.mxu0 0.0
        %2709 = vmatprep.subr.mxu0 0.0
        %2710 = vmatpush1.msra.mxu0 0.0
        %2711 = vmatprep.subr.mxu0 0.0
        %2712 = vmatpush1.msra.mxu0 0.0
        %2713 = vmatprep.subr.mxu0 0.0
        %2714 = vmatpush1.msra.mxu0 0.0
        %2715 = vmatprep.subr.mxu0 0.0
        %2716 = vmatpush1.msra.mxu0 0.0
        %2717 = vmatprep.subr.mxu0 0.0
        %2718 = vmatpush1.msra.mxu0 0.0
        %2719 = vmatprep.mubr.f32.mxu0 0.0
        %2720 = vmatmul.mubr.f32.gmra.mrb[0].mxu0 %v1625
        %v2721 = vpop.f32.mrb[0].mxu0
        %v2722 = vadd.f32 0.0, %v2721
        %v2723 = vpop.f32.mrb[0].mxu0
        %v2724 = vadd.f32 0.0, %v2723
        %2725 = vmatprep.mubr.f32.mxu0 0.0
        %2726 = vmatmul.mubr.f32.gmra.mrb[0].mxu0 %v1626
        %v2727 = vpop.f32.mrb[0].mxu0
        %v2728 = vadd.f32 0.0, %v2727
        %v2729 = vpop.f32.mrb[0].mxu0
        %v2730 = vadd.f32 0.0, %v2729
        %2731 = vmatprep.mubr.f32.mxu0 0.0
        %2732 = vmatmul.mubr.f32.gmra.mrb[0].mxu0 %v1627
        %v2733 = vpop.f32.mrb[0].mxu0
        %v2734 = vadd.f32 0.0, %v2733
        %v2735 = vpop.f32.mrb[0].mxu0
        %v2736 = vadd.f32 0.0, %v2735
        %2737 = vmatprep.mubr.f32.mxu0 0.0
        %2738 = vmatmul.mubr.f32.gmra.mrb[0].mxu0 %v1628
        %v2739 = vpop.f32.mrb[0].mxu0
        %v2740 = vadd.f32 0.0, %v2739
        %v2741 = vpop.f32.mrb[0].mxu0
        %v2742 = vadd.f32 0.0, %v2741
        %2743 = vmatprep.mubr.f32.mxu0 0.0
        %2744 = vmatmul.mubr.f32.gmra.mrb[0].mxu0 %v1629
        %v2745 = vpop.f32.mrb[0].mxu0
        %v2746 = vadd.f32 0.0, %v2745
        %v2747 = vpop.f32.mrb[0].mxu0
        %v2748 = vadd.f32 0.0, %v2747
        %2749 = vdwg.mxu0
        %v2750 = vsub.f32 %v1476, %v2627
        %v2751 = vsub.f32 %v1477, %v2629
        %v2752 = vsub.f32 %v1478, %v2722
        %v2753 = vsub.f32 %v1479, %v2724
        %v2754 = vsub.f32 %v1480, %v2633
        %v2755 = vsub.f32 %v1481, %v2635
        %v2756 = vsub.f32 %v1482, %v2728
        %v2757 = vsub.f32 %v1483, %v2730
        %v2758 = vsub.f32 %v1484, %v2639
        %v2759 = vsub.f32 %v1485, %v2641
        %v2760 = vsub.f32 %v1486, %v2734
        %v2761 = vsub.f32 %v1487, %v2736
        %v2762 = vsub.f32 %v1488, %v2645
        %v2763 = vsub.f32 %v1489, %v2647
        %v2764 = vsub.f32 %v1490, %v2740
        %v2765 = vsub.f32 %v1491, %v2742
        %v2766 = vsub.f32 %v1492, %v2651
        %v2767 = vsub.f32 %v1493, %v2653
        %v2768 = vsub.f32 %v1494, %v2746
        %v2769 = vsub.f32 %v1495, %v2748
        %v2770 = vmul.f32 %v2750, %v2750
        %v2771 = vmul.f32 %v2751, %v2751
        %v2772 = vmul.f32 %v2752, %v2752
        %v2773 = vmul.f32 %v2753, %v2753
        %v2774 = vmul.f32 %v2754, %v2754
        %v2775 = vmul.f32 %v2755, %v2755
        %v2776 = vmul.f32 %v2756, %v2756
        %v2777 = vmul.f32 %v2757, %v2757
        %v2778 = vmul.f32 %v2758, %v2758
        %v2779 = vmul.f32 %v2759, %v2759
        %v2780 = vmul.f32 %v2760, %v2760
        %v2781 = vmul.f32 %v2761, %v2761
        %v2782 = vmul.f32 %v2762, %v2762
        %v2783 = vmul.f32 %v2763, %v2763
        %v2784 = vmul.f32 %v2764, %v2764
        %v2785 = vmul.f32 %v2765, %v2765
        %v2786 = vadd.f32 %v2770, %v2774
        %v2787 = vadd.f32 %v2786, %v2778
        %v2788 = vadd.f32 %v2787, %v2782
        %v2789 = vrot.slane %v2788, 4
        %v2790 = vadd.f32 %v2788, %v2789
        %v2791 = vrot.slane %v2790, 2
        %v2792 = vadd.f32 %v2790, %v2791
        %v2793 = vrot.slane %v2792, 1
        %v2794 = vadd.f32 %v2792, %v2793
        %v2795 = vadd.f32 %v2771, %v2775
        %v2796 = vadd.f32 %v2795, %v2779
        %v2797 = vadd.f32 %v2796, %v2783
        %v2798 = vrot.slane %v2797, 4
        %v2799 = vadd.f32 %v2797, %v2798
        %v2800 = vrot.slane %v2799, 2
        %v2801 = vadd.f32 %v2799, %v2800
        %v2802 = vrot.slane %v2801, 1
        %v2803 = vadd.f32 %v2801, %v2802
        %v2804 = vadd.f32 %v2772, %v2776
        %v2805 = vadd.f32 %v2804, %v2780
        %v2806 = vadd.f32 %v2805, %v2784
        %v2807 = vrot.slane %v2806, 4
        %v2808 = vadd.f32 %v2806, %v2807
        %v2809 = vrot.slane %v2808, 2
        %v2810 = vadd.f32 %v2808, %v2809
        %v2811 = vrot.slane %v2810, 1
        %v2812 = vadd.f32 %v2810, %v2811
        %v2813 = vadd.f32 %v2773, %v2777
        %v2814 = vadd.f32 %v2813, %v2781
        %v2815 = vadd.f32 %v2814, %v2785
        %v2816 = vrot.slane %v2815, 4
        %v2817 = vadd.f32 %v2815, %v2816
        %v2818 = vrot.slane %v2817, 2
        %v2819 = vadd.f32 %v2817, %v2818
        %v2820 = vrot.slane %v2819, 1
        %v2821 = vadd.f32 %v2819, %v2820
        %v2822 = vcombine.low %v2250, %v2289
        %v2823 = vcombine.low %v2328, %v2367
        %v2825 = vunpack.c.l.s4 1966171168
        %v2826 = vunpack.c.0.s8 %v2825
        %v2827 = vlaneseq
        %v2828 = vshrl.u32 %v2827, 7
        %v2829 = vsub.s32 %v2826, %v2828
        %v2830 = vrot.slane %v2822, %v2829
        %v2832 = vunpack.c.l.s4 1966171168
        %v2833 = vunpack.c.0.s8 %v2832
        %v2834 = vlaneseq
        %v2835 = vshrl.u32 %v2834, 7
        %v2836 = vsub.s32 %v2833, %v2835
        %v2837 = vrot.slane %v2823, %v2836
        %v2838 = vcombine.low %v2830, %v2837
        %v2840 = vunpack.c.l.s4 1966171168
        %v2841 = vunpack.c.0.s8 %v2840
        %v2842 = vlaneseq
        %v2843 = vshrl.u32 %v2842, 7
        %v2844 = vsub.s32 %v2841, %v2843
        %v2845 = vrot.slane %v2838, %v2844
        %s2846 = scalar_lea.vmem %s290, 1
        %2847 = vst.msk [vmem:[%s2846] ss:$4 sm:$0xf] %vm1575, %v2845
        %v2852 = vcombine.low %v2794, %v2803
        %v2853 = vcombine.low %v2812, %v2821
        %v2855 = vunpack.c.l.s4 1966171168
        %v2856 = vunpack.c.0.s8 %v2855
        %v2857 = vlaneseq
        %v2858 = vshrl.u32 %v2857, 7
        %v2859 = vsub.s32 %v2856, %v2858
        %v2860 = vrot.slane %v2852, %v2859
        %v2862 = vunpack.c.l.s4 1966171168
        %v2863 = vunpack.c.0.s8 %v2862
        %v2864 = vlaneseq
        %v2865 = vshrl.u32 %v2864, 7
        %v2866 = vsub.s32 %v2863, %v2865
        %v2867 = vrot.slane %v2853, %v2866
        %v2868 = vcombine.low %v2860, %v2867
        %v2870 = vunpack.c.l.s4 1966171168
        %v2871 = vunpack.c.0.s8 %v2870
        %v2872 = vlaneseq
        %v2873 = vshrl.u32 %v2872, 7
        %v2874 = vsub.s32 %v2871, %v2873
        %v2875 = vrot.slane %v2868, %v2874
        %s2877 = scalar_lea.vmem %s296, 1
        %2878 = vst.msk [vmem:[%s2877] ss:$4 sm:$0xf] %vm1575, %v2875
        %s2879 = scalar_lea.vmem %s1, 256
        %v2880 = vld [vmem:[%s2879] sm:$0xff]
        %v2881 = vld [vmem:[%s2879 + $0x8] sm:$0xff]
        %v2882 = vld [vmem:[%s2879 + $0x10] sm:$0xff]
        %v2883 = vld [vmem:[%s2879 + $0x18] sm:$0xff]
        %v2884 = vld [vmem:[%s2879 + $0x20] sm:$0xff]
        %v2885 = vld [vmem:[%s2879 + $0x28] sm:$0xff]
        %v2886 = vld [vmem:[%s2879 + $0x30] sm:$0xff]
        %v2887 = vld [vmem:[%s2879 + $0x38] sm:$0xff]
        %v2888 = vld [vmem:[%s2879 + $0x40] sm:$0xff]
        %v2889 = vld [vmem:[%s2879 + $0x48] sm:$0xff]
        %v2890 = vld [vmem:[%s2879 + $0x50] sm:$0xff]
        %v2891 = vld [vmem:[%s2879 + $0x58] sm:$0xff]
        %v2892 = vld [vmem:[%s2879 + $0x60] sm:$0xff]
        %v2893 = vld [vmem:[%s2879 + $0x68] sm:$0xff]
        %v2894 = vld [vmem:[%s2879 + $0x70] sm:$0xff]
        %v2895 = vld [vmem:[%s2879 + $0x78] sm:$0xff]
        %s2896 = scalar_lea.vmem %s2, 80
        %v2897 = vld [vmem:[%s2896] sm:$0xff]
        %v2898 = vld [vmem:[%s2896 + $0x8] sm:$0xff]
        %v2899 = vld [vmem:[%s2896 + $0x10] sm:$0xff]
        %v2900 = vld [vmem:[%s2896 + $0x18] sm:$0xff]
        %v2901 = vld [vmem:[%s2896 + $0x20] sm:$0xff]
        %v2903 = vsel %vm355, %v2880, 0
        %v2906 = vsel %vm355, %v2881, 0
        %v2909 = vsel %vm355, %v2882, 0
        %v2912 = vsel %vm355, %v2883, 0
        %v2915 = vsel %vm355, %v2884, 0
        %v2918 = vsel %vm355, %v2885, 0
        %v2921 = vsel %vm355, %v2886, 0
        %v2924 = vsel %vm355, %v2887, 0
        %v2927 = vsel %vm355, %v2888, 0
        %v2930 = vsel %vm355, %v2889, 0
        %v2933 = vsel %vm355, %v2890, 0
        %v2936 = vsel %vm355, %v2891, 0
        %v2939 = vsel %vm355, %v2892, 0
        %v2942 = vsel %vm355, %v2893, 0
        %v2945 = vsel %vm355, %v2894, 0
        %v2948 = vsel %vm355, %v2895, 0
        %2950 = vmatprep.subr.mxu0 %v2751
        %2951 = vmatpush1.msra.mxu0 %v2750
        %2952 = vmatprep.subr.mxu0 %v2755
        %2953 = vmatpush1.msra.mxu0 %v2754
        %2954 = vmatprep.subr.mxu0 %v2759
        %2955 = vmatpush1.msra.mxu0 %v2758
        %2956 = vmatprep.subr.mxu0 %v2763
        %2957 = vmatpush1.msra.mxu0 %v2762
        %2958 = vmatprep.subr.mxu0 %v2767
        %2959 = vmatpush1.msra.mxu0 %v2766
        %2960 = vmatprep.subr.mxu0 0.0
        %2961 = vmatpush1.msra.mxu0 0.0
        %2962 = vmatprep.subr.mxu0 0.0
        %2963 = vmatpush1.msra.mxu0 0.0
        %2964 = vmatprep.subr.mxu0 0.0
        %2965 = vmatpush1.msra.mxu0 0.0
        %2966 = vmatprep.subr.mxu0 0.0
        %2967 = vmatpush1.msra.mxu0 0.0
        %2968 = vmatprep.subr.mxu0 0.0
        %2969 = vmatpush1.msra.mxu0 0.0
        %2970 = vmatprep.subr.mxu0 0.0
        %2971 = vmatpush1.msra.mxu0 0.0
        %2972 = vmatprep.subr.mxu0 0.0
        %2973 = vmatpush1.msra.mxu0 0.0
        %2974 = vmatprep.subr.mxu0 0.0
        %2975 = vmatpush1.msra.mxu0 0.0
        %2976 = vmatprep.subr.mxu0 0.0
        %2977 = vmatpush1.msra.mxu0 0.0
        %2978 = vmatprep.subr.mxu0 0.0
        %2979 = vmatpush1.msra.mxu0 0.0
        %2980 = vmatprep.subr.mxu0 0.0
        %2981 = vmatpush1.msra.mxu0 0.0
        %2982 = vmatprep.subr.mxu0 0.0
        %2983 = vmatpush1.msra.mxu0 0.0
        %2984 = vmatprep.subr.mxu0 0.0
        %2985 = vmatpush1.msra.mxu0 0.0
        %2986 = vmatprep.subr.mxu0 0.0
        %2987 = vmatpush1.msra.mxu0 0.0
        %2988 = vmatprep.subr.mxu0 0.0
        %2989 = vmatpush1.msra.mxu0 0.0
        %2990 = vmatprep.subr.mxu0 0.0
        %2991 = vmatpush1.msra.mxu0 0.0
        %2992 = vmatprep.subr.mxu0 0.0
        %2993 = vmatpush1.msra.mxu0 0.0
        %2994 = vmatprep.subr.mxu0 0.0
        %2995 = vmatpush1.msra.mxu0 0.0
        %2996 = vmatprep.subr.mxu0 0.0
        %2997 = vmatpush1.msra.mxu0 0.0
        %2998 = vmatprep.subr.mxu0 0.0
        %2999 = vmatpush1.msra.mxu0 0.0
        %3000 = vmatprep.subr.mxu0 0.0
        %3001 = vmatpush1.msra.mxu0 0.0
        %3002 = vmatprep.subr.mxu0 0.0
        %3003 = vmatpush1.msra.mxu0 0.0
        %3004 = vmatprep.subr.mxu0 0.0
        %3005 = vmatpush1.msra.mxu0 0.0
        %3006 = vmatprep.subr.mxu0 0.0
        %3007 = vmatpush1.msra.mxu0 0.0
        %3008 = vmatprep.subr.mxu0 0.0
        %3009 = vmatpush1.msra.mxu0 0.0
        %3010 = vmatprep.subr.mxu0 0.0
        %3011 = vmatpush1.msra.mxu0 0.0
        %3012 = vmatprep.subr.mxu0 0.0
        %3013 = vmatpush1.msra.mxu0 0.0
        %3014 = vmatprep.mubr.f32.mxu0 0.0
        %3015 = vmatmul.mubr.f32.gmra.mrb[0].mxu0 %v2903
        %v3016 = vpop.f32.mrb[0].mxu0
        %v3017 = vadd.f32 0.0, %v3016
        %v3018 = vpop.f32.mrb[0].mxu0
        %v3019 = vadd.f32 0.0, %v3018
        %3020 = vmatprep.mubr.f32.mxu0 0.0
        %3021 = vmatmul.mubr.f32.gmra.mrb[0].mxu0 %v2906
        %v3022 = vpop.f32.mrb[0].mxu0
        %v3023 = vadd.f32 0.0, %v3022
        %v3024 = vpop.f32.mrb[0].mxu0
        %v3025 = vadd.f32 0.0, %v3024
        %3026 = vmatprep.mubr.f32.mxu0 0.0
        %3027 = vmatmul.mubr.f32.gmra.mrb[0].mxu0 %v2909
        %v3028 = vpop.f32.mrb[0].mxu0
        %v3029 = vadd.f32 0.0, %v3028
        %v3030 = vpop.f32.mrb[0].mxu0
        %v3031 = vadd.f32 0.0, %v3030
        %3032 = vmatprep.mubr.f32.mxu0 0.0
        %3033 = vmatmul.mubr.f32.gmra.mrb[0].mxu0 %v2912
        %v3034 = vpop.f32.mrb[0].mxu0
        %v3035 = vadd.f32 0.0, %v3034
        %v3036 = vpop.f32.mrb[0].mxu0
        %v3037 = vadd.f32 0.0, %v3036
        %3038 = vmatprep.mubr.f32.mxu0 0.0
        %3039 = vmatmul.mubr.f32.gmra.mrb[0].mxu0 %v2915
        %v3040 = vpop.f32.mrb[0].mxu0
        %v3041 = vadd.f32 0.0, %v3040
        %v3042 = vpop.f32.mrb[0].mxu0
        %v3043 = vadd.f32 0.0, %v3042
        %3044 = vmatprep.mubr.f32.mxu0 0.0
        %3045 = vmatmul.mubr.f32.gmra.mrb[0].mxu0 %v2918
        %v3046 = vpop.f32.mrb[0].mxu0
        %v3047 = vadd.f32 0.0, %v3046
        %v3048 = vpop.f32.mrb[0].mxu0
        %v3049 = vadd.f32 0.0, %v3048
        %3050 = vmatprep.mubr.f32.mxu0 0.0
        %3051 = vmatmul.mubr.f32.gmra.mrb[0].mxu0 %v2921
        %v3052 = vpop.f32.mrb[0].mxu0
        %v3053 = vadd.f32 0.0, %v3052
        %v3054 = vpop.f32.mrb[0].mxu0
        %v3055 = vadd.f32 0.0, %v3054
        %3056 = vmatprep.mubr.f32.mxu0 0.0
        %3057 = vmatmul.mubr.f32.gmra.mrb[0].mxu0 %v2924
        %v3058 = vpop.f32.mrb[0].mxu0
        %v3059 = vadd.f32 0.0, %v3058
        %v3060 = vpop.f32.mrb[0].mxu0
        %v3061 = vadd.f32 0.0, %v3060
        %3062 = vmatprep.mubr.f32.mxu0 0.0
        %3063 = vmatmul.mubr.f32.gmra.mrb[0].mxu0 %v2927
        %v3064 = vpop.f32.mrb[0].mxu0
        %v3065 = vadd.f32 0.0, %v3064
        %v3066 = vpop.f32.mrb[0].mxu0
        %v3067 = vadd.f32 0.0, %v3066
        %3068 = vmatprep.mubr.f32.mxu0 0.0
        %3069 = vmatmul.mubr.f32.gmra.mrb[0].mxu0 %v2930
        %v3070 = vpop.f32.mrb[0].mxu0
        %v3071 = vadd.f32 0.0, %v3070
        %v3072 = vpop.f32.mrb[0].mxu0
        %v3073 = vadd.f32 0.0, %v3072
        %3074 = vmatprep.mubr.f32.mxu0 0.0
        %3075 = vmatmul.mubr.f32.gmra.mrb[0].mxu0 %v2933
        %v3076 = vpop.f32.mrb[0].mxu0
        %v3077 = vadd.f32 0.0, %v3076
        %v3078 = vpop.f32.mrb[0].mxu0
        %v3079 = vadd.f32 0.0, %v3078
        %3080 = vmatprep.mubr.f32.mxu0 0.0
        %3081 = vmatmul.mubr.f32.gmra.mrb[0].mxu0 %v2936
        %v3082 = vpop.f32.mrb[0].mxu0
        %v3083 = vadd.f32 0.0, %v3082
        %v3084 = vpop.f32.mrb[0].mxu0
        %v3085 = vadd.f32 0.0, %v3084
        %3086 = vmatprep.mubr.f32.mxu0 0.0
        %3087 = vmatmul.mubr.f32.gmra.mrb[0].mxu0 %v2939
        %v3088 = vpop.f32.mrb[0].mxu0
        %v3089 = vadd.f32 0.0, %v3088
        %v3090 = vpop.f32.mrb[0].mxu0
        %v3091 = vadd.f32 0.0, %v3090
        %3092 = vmatprep.mubr.f32.mxu0 0.0
        %3093 = vmatmul.mubr.f32.gmra.mrb[0].mxu0 %v2942
        %v3094 = vpop.f32.mrb[0].mxu0
        %v3095 = vadd.f32 0.0, %v3094
        %v3096 = vpop.f32.mrb[0].mxu0
        %v3097 = vadd.f32 0.0, %v3096
        %3098 = vmatprep.mubr.f32.mxu0 0.0
        %3099 = vmatmul.mubr.f32.gmra.mrb[0].mxu0 %v2945
        %v3100 = vpop.f32.mrb[0].mxu0
        %v3101 = vadd.f32 0.0, %v3100
        %v3102 = vpop.f32.mrb[0].mxu0
        %v3103 = vadd.f32 0.0, %v3102
        %3104 = vmatprep.mubr.f32.mxu0 0.0
        %3105 = vmatmul.mubr.f32.gmra.mrb[0].mxu0 %v2948
        %v3106 = vpop.f32.mrb[0].mxu0
        %v3107 = vadd.f32 0.0, %v3106
        %v3108 = vpop.f32.mrb[0].mxu0
        %v3109 = vadd.f32 0.0, %v3108
        %3110 = vdwg.mxu0
        %3111 = vmatprep.subr.mxu0 %v2753
        %3112 = vmatpush1.msra.mxu0 %v2752
        %3113 = vmatprep.subr.mxu0 %v2757
        %3114 = vmatpush1.msra.mxu0 %v2756
        %3115 = vmatprep.subr.mxu0 %v2761
        %3116 = vmatpush1.msra.mxu0 %v2760
        %3117 = vmatprep.subr.mxu0 %v2765
        %3118 = vmatpush1.msra.mxu0 %v2764
        %3119 = vmatprep.subr.mxu0 %v2769
        %3120 = vmatpush1.msra.mxu0 %v2768
        %3121 = vmatprep.subr.mxu0 0.0
        %3122 = vmatpush1.msra.mxu0 0.0
        %3123 = vmatprep.subr.mxu0 0.0
        %3124 = vmatpush1.msra.mxu0 0.0
        %3125 = vmatprep.subr.mxu0 0.0
        %3126 = vmatpush1.msra.mxu0 0.0
        %3127 = vmatprep.subr.mxu0 0.0
        %3128 = vmatpush1.msra.mxu0 0.0
        %3129 = vmatprep.subr.mxu0 0.0
        %3130 = vmatpush1.msra.mxu0 0.0
        %3131 = vmatprep.subr.mxu0 0.0
        %3132 = vmatpush1.msra.mxu0 0.0
        %3133 = vmatprep.subr.mxu0 0.0
        %3134 = vmatpush1.msra.mxu0 0.0
        %3135 = vmatprep.subr.mxu0 0.0
        %3136 = vmatpush1.msra.mxu0 0.0
        %3137 = vmatprep.subr.mxu0 0.0
        %3138 = vmatpush1.msra.mxu0 0.0
        %3139 = vmatprep.subr.mxu0 0.0
        %3140 = vmatpush1.msra.mxu0 0.0
        %3141 = vmatprep.subr.mxu0 0.0
        %3142 = vmatpush1.msra.mxu0 0.0
        %3143 = vmatprep.subr.mxu0 0.0
        %3144 = vmatpush1.msra.mxu0 0.0
        %3145 = vmatprep.subr.mxu0 0.0
        %3146 = vmatpush1.msra.mxu0 0.0
        %3147 = vmatprep.subr.mxu0 0.0
        %3148 = vmatpush1.msra.mxu0 0.0
        %3149 = vmatprep.subr.mxu0 0.0
        %3150 = vmatpush1.msra.mxu0 0.0
        %3151 = vmatprep.subr.mxu0 0.0
        %3152 = vmatpush1.msra.mxu0 0.0
        %3153 = vmatprep.subr.mxu0 0.0
        %3154 = vmatpush1.msra.mxu0 0.0
        %3155 = vmatprep.subr.mxu0 0.0
        %3156 = vmatpush1.msra.mxu0 0.0
        %3157 = vmatprep.subr.mxu0 0.0
        %3158 = vmatpush1.msra.mxu0 0.0
        %3159 = vmatprep.subr.mxu0 0.0
        %3160 = vmatpush1.msra.mxu0 0.0
        %3161 = vmatprep.subr.mxu0 0.0
        %3162 = vmatpush1.msra.mxu0 0.0
        %3163 = vmatprep.subr.mxu0 0.0
        %3164 = vmatpush1.msra.mxu0 0.0
        %3165 = vmatprep.subr.mxu0 0.0
        %3166 = vmatpush1.msra.mxu0 0.0
        %3167 = vmatprep.subr.mxu0 0.0
        %3168 = vmatpush1.msra.mxu0 0.0
        %3169 = vmatprep.subr.mxu0 0.0
        %3170 = vmatpush1.msra.mxu0 0.0
        %3171 = vmatprep.subr.mxu0 0.0
        %3172 = vmatpush1.msra.mxu0 0.0
        %3173 = vmatprep.subr.mxu0 0.0
        %3174 = vmatpush1.msra.mxu0 0.0
        %3175 = vmatprep.mubr.f32.mxu0 0.0
        %3176 = vmatmul.mubr.f32.gmra.mrb[0].mxu0 %v2903
        %v3177 = vpop.f32.mrb[0].mxu0
        %v3178 = vadd.f32 0.0, %v3177
        %v3179 = vpop.f32.mrb[0].mxu0
        %v3180 = vadd.f32 0.0, %v3179
        %3181 = vmatprep.mubr.f32.mxu0 0.0
        %3182 = vmatmul.mubr.f32.gmra.mrb[0].mxu0 %v2906
        %v3183 = vpop.f32.mrb[0].mxu0
        %v3184 = vadd.f32 0.0, %v3183
        %v3185 = vpop.f32.mrb[0].mxu0
        %v3186 = vadd.f32 0.0, %v3185
        %3187 = vmatprep.mubr.f32.mxu0 0.0
        %3188 = vmatmul.mubr.f32.gmra.mrb[0].mxu0 %v2909
        %v3189 = vpop.f32.mrb[0].mxu0
        %v3190 = vadd.f32 0.0, %v3189
        %v3191 = vpop.f32.mrb[0].mxu0
        %v3192 = vadd.f32 0.0, %v3191
        %3193 = vmatprep.mubr.f32.mxu0 0.0
        %3194 = vmatmul.mubr.f32.gmra.mrb[0].mxu0 %v2912
        %v3195 = vpop.f32.mrb[0].mxu0
        %v3196 = vadd.f32 0.0, %v3195
        %v3197 = vpop.f32.mrb[0].mxu0
        %v3198 = vadd.f32 0.0, %v3197
        %3199 = vmatprep.mubr.f32.mxu0 0.0
        %3200 = vmatmul.mubr.f32.gmra.mrb[0].mxu0 %v2915
        %v3201 = vpop.f32.mrb[0].mxu0
        %v3202 = vadd.f32 0.0, %v3201
        %v3203 = vpop.f32.mrb[0].mxu0
        %v3204 = vadd.f32 0.0, %v3203
        %3205 = vmatprep.mubr.f32.mxu0 0.0
        %3206 = vmatmul.mubr.f32.gmra.mrb[0].mxu0 %v2918
        %v3207 = vpop.f32.mrb[0].mxu0
        %v3208 = vadd.f32 0.0, %v3207
        %v3209 = vpop.f32.mrb[0].mxu0
        %v3210 = vadd.f32 0.0, %v3209
        %3211 = vmatprep.mubr.f32.mxu0 0.0
        %3212 = vmatmul.mubr.f32.gmra.mrb[0].mxu0 %v2921
        %v3213 = vpop.f32.mrb[0].mxu0
        %v3214 = vadd.f32 0.0, %v3213
        %v3215 = vpop.f32.mrb[0].mxu0
        %v3216 = vadd.f32 0.0, %v3215
        %3217 = vmatprep.mubr.f32.mxu0 0.0
        %3218 = vmatmul.mubr.f32.gmra.mrb[0].mxu0 %v2924
        %v3219 = vpop.f32.mrb[0].mxu0
        %v3220 = vadd.f32 0.0, %v3219
        %v3221 = vpop.f32.mrb[0].mxu0
        %v3222 = vadd.f32 0.0, %v3221
        %3223 = vmatprep.mubr.f32.mxu0 0.0
        %3224 = vmatmul.mubr.f32.gmra.mrb[0].mxu0 %v2927
        %v3225 = vpop.f32.mrb[0].mxu0
        %v3226 = vadd.f32 0.0, %v3225
        %v3227 = vpop.f32.mrb[0].mxu0
        %v3228 = vadd.f32 0.0, %v3227
        %3229 = vmatprep.mubr.f32.mxu0 0.0
        %3230 = vmatmul.mubr.f32.gmra.mrb[0].mxu0 %v2930
        %v3231 = vpop.f32.mrb[0].mxu0
        %v3232 = vadd.f32 0.0, %v3231
        %v3233 = vpop.f32.mrb[0].mxu0
        %v3234 = vadd.f32 0.0, %v3233
        %3235 = vmatprep.mubr.f32.mxu0 0.0
        %3236 = vmatmul.mubr.f32.gmra.mrb[0].mxu0 %v2933
        %v3237 = vpop.f32.mrb[0].mxu0
        %v3238 = vadd.f32 0.0, %v3237
        %v3239 = vpop.f32.mrb[0].mxu0
        %v3240 = vadd.f32 0.0, %v3239
        %3241 = vmatprep.mubr.f32.mxu0 0.0
        %3242 = vmatmul.mubr.f32.gmra.mrb[0].mxu0 %v2936
        %v3243 = vpop.f32.mrb[0].mxu0
        %v3244 = vadd.f32 0.0, %v3243
        %v3245 = vpop.f32.mrb[0].mxu0
        %v3246 = vadd.f32 0.0, %v3245
        %3247 = vmatprep.mubr.f32.mxu0 0.0
        %3248 = vmatmul.mubr.f32.gmra.mrb[0].mxu0 %v2939
        %v3249 = vpop.f32.mrb[0].mxu0
        %v3250 = vadd.f32 0.0, %v3249
        %v3251 = vpop.f32.mrb[0].mxu0
        %v3252 = vadd.f32 0.0, %v3251
        %3253 = vmatprep.mubr.f32.mxu0 0.0
        %3254 = vmatmul.mubr.f32.gmra.mrb[0].mxu0 %v2942
        %v3255 = vpop.f32.mrb[0].mxu0
        %v3256 = vadd.f32 0.0, %v3255
        %v3257 = vpop.f32.mrb[0].mxu0
        %v3258 = vadd.f32 0.0, %v3257
        %3259 = vmatprep.mubr.f32.mxu0 0.0
        %3260 = vmatmul.mubr.f32.gmra.mrb[0].mxu0 %v2945
        %v3261 = vpop.f32.mrb[0].mxu0
        %v3262 = vadd.f32 0.0, %v3261
        %v3263 = vpop.f32.mrb[0].mxu0
        %v3264 = vadd.f32 0.0, %v3263
        %3265 = vmatprep.mubr.f32.mxu0 0.0
        %3266 = vmatmul.mubr.f32.gmra.mrb[0].mxu0 %v2948
        %v3267 = vpop.f32.mrb[0].mxu0
        %v3268 = vadd.f32 0.0, %v3267
        %v3269 = vpop.f32.mrb[0].mxu0
        %v3270 = vadd.f32 0.0, %v3269
        %3271 = vdwg.mxu0
        %v3272 = vmin.f32 %v3017, %v3023
        %v3273 = vmin.f32 %v3272, %v3029
        %v3274 = vmin.f32 %v3273, %v3035
        %v3275 = vmin.f32 %v3274, %v3041
        %v3276 = vmin.f32 %v3275, %v3047
        %v3277 = vmin.f32 %v3276, %v3053
        %v3278 = vmin.f32 %v3277, %v3059
        %v3279 = vmin.f32 %v3278, %v3065
        %v3280 = vmin.f32 %v3279, %v3071
        %v3281 = vmin.f32 %v3280, %v3077
        %v3282 = vmin.f32 %v3281, %v3083
        %v3283 = vmin.f32 %v3282, %v3089
        %v3284 = vmin.f32 %v3283, %v3095
        %v3285 = vmin.f32 %v3284, %v3101
        %v3286 = vmin.f32 %v3285, %v3107
        %v3287 = vrot.slane %v3286, 4
        %v3288 = vmin.f32 %v3286, %v3287
        %v3289 = vrot.slane %v3288, 2
        %v3290 = vmin.f32 %v3288, %v3289
        %v3291 = vrot.slane %v3290, 1
        %v3292 = vmin.f32 %v3290, %v3291
        %v3293 = vmin.f32 %v3019, %v3025
        %v3294 = vmin.f32 %v3293, %v3031
        %v3295 = vmin.f32 %v3294, %v3037
        %v3296 = vmin.f32 %v3295, %v3043
        %v3297 = vmin.f32 %v3296, %v3049
        %v3298 = vmin.f32 %v3297, %v3055
        %v3299 = vmin.f32 %v3298, %v3061
        %v3300 = vmin.f32 %v3299, %v3067
        %v3301 = vmin.f32 %v3300, %v3073
        %v3302 = vmin.f32 %v3301, %v3079
        %v3303 = vmin.f32 %v3302, %v3085
        %v3304 = vmin.f32 %v3303, %v3091
        %v3305 = vmin.f32 %v3304, %v3097
        %v3306 = vmin.f32 %v3305, %v3103
        %v3307 = vmin.f32 %v3306, %v3109
        %v3308 = vrot.slane %v3307, 4
        %v3309 = vmin.f32 %v3307, %v3308
        %v3310 = vrot.slane %v3309, 2
        %v3311 = vmin.f32 %v3309, %v3310
        %v3312 = vrot.slane %v3311, 1
        %v3313 = vmin.f32 %v3311, %v3312
        %v3314 = vmin.f32 %v3178, %v3184
        %v3315 = vmin.f32 %v3314, %v3190
        %v3316 = vmin.f32 %v3315, %v3196
        %v3317 = vmin.f32 %v3316, %v3202
        %v3318 = vmin.f32 %v3317, %v3208
        %v3319 = vmin.f32 %v3318, %v3214
        %v3320 = vmin.f32 %v3319, %v3220
        %v3321 = vmin.f32 %v3320, %v3226
        %v3322 = vmin.f32 %v3321, %v3232
        %v3323 = vmin.f32 %v3322, %v3238
        %v3324 = vmin.f32 %v3323, %v3244
        %v3325 = vmin.f32 %v3324, %v3250
        %v3326 = vmin.f32 %v3325, %v3256
        %v3327 = vmin.f32 %v3326, %v3262
        %v3328 = vmin.f32 %v3327, %v3268
        %v3329 = vrot.slane %v3328, 4
        %v3330 = vmin.f32 %v3328, %v3329
        %v3331 = vrot.slane %v3330, 2
        %v3332 = vmin.f32 %v3330, %v3331
        %v3333 = vrot.slane %v3332, 1
        %v3334 = vmin.f32 %v3332, %v3333
        %v3335 = vmin.f32 %v3180, %v3186
        %v3336 = vmin.f32 %v3335, %v3192
        %v3337 = vmin.f32 %v3336, %v3198
        %v3338 = vmin.f32 %v3337, %v3204
        %v3339 = vmin.f32 %v3338, %v3210
        %v3340 = vmin.f32 %v3339, %v3216
        %v3341 = vmin.f32 %v3340, %v3222
        %v3342 = vmin.f32 %v3341, %v3228
        %v3343 = vmin.f32 %v3342, %v3234
        %v3344 = vmin.f32 %v3343, %v3240
        %v3345 = vmin.f32 %v3344, %v3246
        %v3346 = vmin.f32 %v3345, %v3252
        %v3347 = vmin.f32 %v3346, %v3258
        %v3348 = vmin.f32 %v3347, %v3264
        %v3349 = vmin.f32 %v3348, %v3270
        %v3350 = vrot.slane %v3349, 4
        %v3351 = vmin.f32 %v3349, %v3350
        %v3352 = vrot.slane %v3351, 2
        %v3353 = vmin.f32 %v3351, %v3352
        %v3354 = vrot.slane %v3353, 1
        %v3355 = vmin.f32 %v3353, %v3354
        %vm3356 = vcmp.eq.f32.partialorder %v3017, %v3292
        %vm3357 = vcmp.eq.f32.partialorder %v3019, %v3313
        %vm3358 = vcmp.eq.f32.partialorder %v3178, %v3334
        %vm3359 = vcmp.eq.f32.partialorder %v3180, %v3355
        %vm3360 = vcmp.eq.f32.partialorder %v3023, %v3292
        %vm3361 = vcmp.eq.f32.partialorder %v3025, %v3313
        %vm3362 = vcmp.eq.f32.partialorder %v3184, %v3334
        %vm3363 = vcmp.eq.f32.partialorder %v3186, %v3355
        %vm3364 = vcmp.eq.f32.partialorder %v3029, %v3292
        %vm3365 = vcmp.eq.f32.partialorder %v3031, %v3313
        %vm3366 = vcmp.eq.f32.partialorder %v3190, %v3334
        %vm3367 = vcmp.eq.f32.partialorder %v3192, %v3355
        %vm3368 = vcmp.eq.f32.partialorder %v3035, %v3292
        %vm3369 = vcmp.eq.f32.partialorder %v3037, %v3313
        %vm3370 = vcmp.eq.f32.partialorder %v3196, %v3334
        %vm3371 = vcmp.eq.f32.partialorder %v3198, %v3355
        %vm3372 = vcmp.eq.f32.partialorder %v3041, %v3292
        %vm3373 = vcmp.eq.f32.partialorder %v3043, %v3313
        %vm3374 = vcmp.eq.f32.partialorder %v3202, %v3334
        %vm3375 = vcmp.eq.f32.partialorder %v3204, %v3355
        %vm3376 = vcmp.eq.f32.partialorder %v3047, %v3292
        %vm3377 = vcmp.eq.f32.partialorder %v3049, %v3313
        %vm3378 = vcmp.eq.f32.partialorder %v3208, %v3334
        %vm3379 = vcmp.eq.f32.partialorder %v3210, %v3355
        %vm3380 = vcmp.eq.f32.partialorder %v3053, %v3292
        %vm3381 = vcmp.eq.f32.partialorder %v3055, %v3313
        %vm3382 = vcmp.eq.f32.partialorder %v3214, %v3334
        %vm3383 = vcmp.eq.f32.partialorder %v3216, %v3355
        %vm3384 = vcmp.eq.f32.partialorder %v3059, %v3292
        %vm3385 = vcmp.eq.f32.partialorder %v3061, %v3313
        %vm3386 = vcmp.eq.f32.partialorder %v3220, %v3334
        %vm3387 = vcmp.eq.f32.partialorder %v3222, %v3355
        %vm3388 = vcmp.eq.f32.partialorder %v3065, %v3292
        %vm3389 = vcmp.eq.f32.partialorder %v3067, %v3313
        %vm3390 = vcmp.eq.f32.partialorder %v3226, %v3334
        %vm3391 = vcmp.eq.f32.partialorder %v3228, %v3355
        %vm3392 = vcmp.eq.f32.partialorder %v3071, %v3292
        %vm3393 = vcmp.eq.f32.partialorder %v3073, %v3313
        %vm3394 = vcmp.eq.f32.partialorder %v3232, %v3334
        %vm3395 = vcmp.eq.f32.partialorder %v3234, %v3355
        %vm3396 = vcmp.eq.f32.partialorder %v3077, %v3292
        %vm3397 = vcmp.eq.f32.partialorder %v3079, %v3313
        %vm3398 = vcmp.eq.f32.partialorder %v3238, %v3334
        %vm3399 = vcmp.eq.f32.partialorder %v3240, %v3355
        %vm3400 = vcmp.eq.f32.partialorder %v3083, %v3292
        %vm3401 = vcmp.eq.f32.partialorder %v3085, %v3313
        %vm3402 = vcmp.eq.f32.partialorder %v3244, %v3334
        %vm3403 = vcmp.eq.f32.partialorder %v3246, %v3355
        %vm3404 = vcmp.eq.f32.partialorder %v3089, %v3292
        %vm3405 = vcmp.eq.f32.partialorder %v3091, %v3313
        %vm3406 = vcmp.eq.f32.partialorder %v3250, %v3334
        %vm3407 = vcmp.eq.f32.partialorder %v3252, %v3355
        %vm3408 = vcmp.eq.f32.partialorder %v3095, %v3292
        %vm3409 = vcmp.eq.f32.partialorder %v3097, %v3313
        %vm3410 = vcmp.eq.f32.partialorder %v3256, %v3334
        %vm3411 = vcmp.eq.f32.partialorder %v3258, %v3355
        %vm3412 = vcmp.eq.f32.partialorder %v3101, %v3292
        %vm3413 = vcmp.eq.f32.partialorder %v3103, %v3313
        %vm3414 = vcmp.eq.f32.partialorder %v3262, %v3334
        %vm3415 = vcmp.eq.f32.partialorder %v3264, %v3355
        %vm3416 = vcmp.eq.f32.partialorder %v3107, %v3292
        %vm3417 = vcmp.eq.f32.partialorder %v3109, %v3313
        %vm3418 = vcmp.eq.f32.partialorder %v3268, %v3334
        %vm3419 = vcmp.eq.f32.partialorder %v3270, %v3355
        %v3420 = vsel %vm3356, %v315, 128
        %v3421 = vsel %vm3357, %v315, 128
        %v3422 = vsel %vm3358, %v315, 128
        %v3423 = vsel %vm3359, %v315, 128
        %v3424 = vsel %vm3360, %v319, 128
        %v3425 = vsel %vm3361, %v319, 128
        %v3426 = vsel %vm3362, %v319, 128
        %v3427 = vsel %vm3363, %v319, 128
        %v3428 = vsel %vm3364, %v320, 128
        %v3429 = vsel %vm3365, %v320, 128
        %v3430 = vsel %vm3366, %v320, 128
        %v3431 = vsel %vm3367, %v320, 128
        %v3432 = vsel %vm3368, %v321, 128
        %v3433 = vsel %vm3369, %v321, 128
        %v3434 = vsel %vm3370, %v321, 128
        %v3435 = vsel %vm3371, %v321, 128
        %v3436 = vsel %vm3372, %v322, 128
        %v3437 = vsel %vm3373, %v322, 128
        %v3438 = vsel %vm3374, %v322, 128
        %v3439 = vsel %vm3375, %v322, 128
        %v3440 = vsel %vm3376, %v323, 128
        %v3441 = vsel %vm3377, %v323, 128
        %v3442 = vsel %vm3378, %v323, 128
        %v3443 = vsel %vm3379, %v323, 128
        %v3444 = vsel %vm3380, %v324, 128
        %v3445 = vsel %vm3381, %v324, 128
        %v3446 = vsel %vm3382, %v324, 128
        %v3447 = vsel %vm3383, %v324, 128
        %v3448 = vsel %vm3384, %v325, 128
        %v3449 = vsel %vm3385, %v325, 128
        %v3450 = vsel %vm3386, %v325, 128
        %v3451 = vsel %vm3387, %v325, 128
        %v3452 = vsel %vm3388, %v326, 128
        %v3453 = vsel %vm3389, %v326, 128
        %v3454 = vsel %vm3390, %v326, 128
        %v3455 = vsel %vm3391, %v326, 128
        %v3456 = vsel %vm3392, %v327, 128
        %v3457 = vsel %vm3393, %v327, 128
        %v3458 = vsel %vm3394, %v327, 128
        %v3459 = vsel %vm3395, %v327, 128
        %v3460 = vsel %vm3396, %v328, 128
        %v3461 = vsel %vm3397, %v328, 128
        %v3462 = vsel %vm3398, %v328, 128
        %v3463 = vsel %vm3399, %v328, 128
        %v3464 = vsel %vm3400, %v329, 128
        %v3465 = vsel %vm3401, %v329, 128
        %v3466 = vsel %vm3402, %v329, 128
        %v3467 = vsel %vm3403, %v329, 128
        %v3468 = vsel %vm3404, %v330, 128
        %v3469 = vsel %vm3405, %v330, 128
        %v3470 = vsel %vm3406, %v330, 128
        %v3471 = vsel %vm3407, %v330, 128
        %v3472 = vsel %vm3408, %v331, 128
        %v3473 = vsel %vm3409, %v331, 128
        %v3474 = vsel %vm3410, %v331, 128
        %v3475 = vsel %vm3411, %v331, 128
        %v3476 = vsel %vm3412, %v332, 128
        %v3477 = vsel %vm3413, %v332, 128
        %v3478 = vsel %vm3414, %v332, 128
        %v3479 = vsel %vm3415, %v332, 128
        %v3480 = vsel %vm3416, %v333, 128
        %v3481 = vsel %vm3417, %v333, 128
        %v3482 = vsel %vm3418, %v333, 128
        %v3483 = vsel %vm3419, %v333, 128
        %vm3484 = vcmp.lt.s32.totalorder %v3420, %v3424
        %v3485 = vsel %vm3484, %v3420, %v3424
        %vm3486 = vcmp.lt.s32.totalorder %v3485, %v3428
        %v3487 = vsel %vm3486, %v3485, %v3428
        %vm3488 = vcmp.lt.s32.totalorder %v3487, %v3432
        %v3489 = vsel %vm3488, %v3487, %v3432
        %vm3490 = vcmp.lt.s32.totalorder %v3489, %v3436
        %v3491 = vsel %vm3490, %v3489, %v3436
        %vm3492 = vcmp.lt.s32.totalorder %v3491, %v3440
        %v3493 = vsel %vm3492, %v3491, %v3440
        %vm3494 = vcmp.lt.s32.totalorder %v3493, %v3444
        %v3495 = vsel %vm3494, %v3493, %v3444
        %vm3496 = vcmp.lt.s32.totalorder %v3495, %v3448
        %v3497 = vsel %vm3496, %v3495, %v3448
        %vm3498 = vcmp.lt.s32.totalorder %v3497, %v3452
        %v3499 = vsel %vm3498, %v3497, %v3452
        %vm3500 = vcmp.lt.s32.totalorder %v3499, %v3456
        %v3501 = vsel %vm3500, %v3499, %v3456
        %vm3502 = vcmp.lt.s32.totalorder %v3501, %v3460
        %v3503 = vsel %vm3502, %v3501, %v3460
        %vm3504 = vcmp.lt.s32.totalorder %v3503, %v3464
        %v3505 = vsel %vm3504, %v3503, %v3464
        %vm3506 = vcmp.lt.s32.totalorder %v3505, %v3468
        %v3507 = vsel %vm3506, %v3505, %v3468
        %vm3508 = vcmp.lt.s32.totalorder %v3507, %v3472
        %v3509 = vsel %vm3508, %v3507, %v3472
        %vm3510 = vcmp.lt.s32.totalorder %v3509, %v3476
        %v3511 = vsel %vm3510, %v3509, %v3476
        %vm3512 = vcmp.lt.s32.totalorder %v3511, %v3480
        %v3513 = vsel %vm3512, %v3511, %v3480
        %v3514 = vrot.slane %v3513, 4
        %vm3515 = vcmp.lt.s32.totalorder %v3513, %v3514
        %v3516 = vsel %vm3515, %v3513, %v3514
        %v3517 = vrot.slane %v3516, 2
        %vm3518 = vcmp.lt.s32.totalorder %v3516, %v3517
        %v3519 = vsel %vm3518, %v3516, %v3517
        %v3520 = vrot.slane %v3519, 1
        %vm3521 = vcmp.lt.s32.totalorder %v3519, %v3520
        %v3522 = vsel %vm3521, %v3519, %v3520
        %vm3523 = vcmp.lt.s32.totalorder %v3421, %v3425
        %v3524 = vsel %vm3523, %v3421, %v3425
        %vm3525 = vcmp.lt.s32.totalorder %v3524, %v3429
        %v3526 = vsel %vm3525, %v3524, %v3429
        %vm3527 = vcmp.lt.s32.totalorder %v3526, %v3433
        %v3528 = vsel %vm3527, %v3526, %v3433
        %vm3529 = vcmp.lt.s32.totalorder %v3528, %v3437
        %v3530 = vsel %vm3529, %v3528, %v3437
        %vm3531 = vcmp.lt.s32.totalorder %v3530, %v3441
        %v3532 = vsel %vm3531, %v3530, %v3441
        %vm3533 = vcmp.lt.s32.totalorder %v3532, %v3445
        %v3534 = vsel %vm3533, %v3532, %v3445
        %vm3535 = vcmp.lt.s32.totalorder %v3534, %v3449
        %v3536 = vsel %vm3535, %v3534, %v3449
        %vm3537 = vcmp.lt.s32.totalorder %v3536, %v3453
        %v3538 = vsel %vm3537, %v3536, %v3453
        %vm3539 = vcmp.lt.s32.totalorder %v3538, %v3457
        %v3540 = vsel %vm3539, %v3538, %v3457
        %vm3541 = vcmp.lt.s32.totalorder %v3540, %v3461
        %v3542 = vsel %vm3541, %v3540, %v3461
        %vm3543 = vcmp.lt.s32.totalorder %v3542, %v3465
        %v3544 = vsel %vm3543, %v3542, %v3465
        %vm3545 = vcmp.lt.s32.totalorder %v3544, %v3469
        %v3546 = vsel %vm3545, %v3544, %v3469
        %vm3547 = vcmp.lt.s32.totalorder %v3546, %v3473
        %v3548 = vsel %vm3547, %v3546, %v3473
        %vm3549 = vcmp.lt.s32.totalorder %v3548, %v3477
        %v3550 = vsel %vm3549, %v3548, %v3477
        %vm3551 = vcmp.lt.s32.totalorder %v3550, %v3481
        %v3552 = vsel %vm3551, %v3550, %v3481
        %v3553 = vrot.slane %v3552, 4
        %vm3554 = vcmp.lt.s32.totalorder %v3552, %v3553
        %v3555 = vsel %vm3554, %v3552, %v3553
        %v3556 = vrot.slane %v3555, 2
        %vm3557 = vcmp.lt.s32.totalorder %v3555, %v3556
        %v3558 = vsel %vm3557, %v3555, %v3556
        %v3559 = vrot.slane %v3558, 1
        %vm3560 = vcmp.lt.s32.totalorder %v3558, %v3559
        %v3561 = vsel %vm3560, %v3558, %v3559
        %vm3562 = vcmp.lt.s32.totalorder %v3422, %v3426
        %v3563 = vsel %vm3562, %v3422, %v3426
        %vm3564 = vcmp.lt.s32.totalorder %v3563, %v3430
        %v3565 = vsel %vm3564, %v3563, %v3430
        %vm3566 = vcmp.lt.s32.totalorder %v3565, %v3434
        %v3567 = vsel %vm3566, %v3565, %v3434
        %vm3568 = vcmp.lt.s32.totalorder %v3567, %v3438
        %v3569 = vsel %vm3568, %v3567, %v3438
        %vm3570 = vcmp.lt.s32.totalorder %v3569, %v3442
        %v3571 = vsel %vm3570, %v3569, %v3442
        %vm3572 = vcmp.lt.s32.totalorder %v3571, %v3446
        %v3573 = vsel %vm3572, %v3571, %v3446
        %vm3574 = vcmp.lt.s32.totalorder %v3573, %v3450
        %v3575 = vsel %vm3574, %v3573, %v3450
        %vm3576 = vcmp.lt.s32.totalorder %v3575, %v3454
        %v3577 = vsel %vm3576, %v3575, %v3454
        %vm3578 = vcmp.lt.s32.totalorder %v3577, %v3458
        %v3579 = vsel %vm3578, %v3577, %v3458
        %vm3580 = vcmp.lt.s32.totalorder %v3579, %v3462
        %v3581 = vsel %vm3580, %v3579, %v3462
        %vm3582 = vcmp.lt.s32.totalorder %v3581, %v3466
        %v3583 = vsel %vm3582, %v3581, %v3466
        %vm3584 = vcmp.lt.s32.totalorder %v3583, %v3470
        %v3585 = vsel %vm3584, %v3583, %v3470
        %vm3586 = vcmp.lt.s32.totalorder %v3585, %v3474
        %v3587 = vsel %vm3586, %v3585, %v3474
        %vm3588 = vcmp.lt.s32.totalorder %v3587, %v3478
        %v3589 = vsel %vm3588, %v3587, %v3478
        %vm3590 = vcmp.lt.s32.totalorder %v3589, %v3482
        %v3591 = vsel %vm3590, %v3589, %v3482
        %v3592 = vrot.slane %v3591, 4
        %vm3593 = vcmp.lt.s32.totalorder %v3591, %v3592
        %v3594 = vsel %vm3593, %v3591, %v3592
        %v3595 = vrot.slane %v3594, 2
        %vm3596 = vcmp.lt.s32.totalorder %v3594, %v3595
        %v3597 = vsel %vm3596, %v3594, %v3595
        %v3598 = vrot.slane %v3597, 1
        %vm3599 = vcmp.lt.s32.totalorder %v3597, %v3598
        %v3600 = vsel %vm3599, %v3597, %v3598
        %vm3601 = vcmp.lt.s32.totalorder %v3423, %v3427
        %v3602 = vsel %vm3601, %v3423, %v3427
        %vm3603 = vcmp.lt.s32.totalorder %v3602, %v3431
        %v3604 = vsel %vm3603, %v3602, %v3431
        %vm3605 = vcmp.lt.s32.totalorder %v3604, %v3435
        %v3606 = vsel %vm3605, %v3604, %v3435
        %vm3607 = vcmp.lt.s32.totalorder %v3606, %v3439
        %v3608 = vsel %vm3607, %v3606, %v3439
        %vm3609 = vcmp.lt.s32.totalorder %v3608, %v3443
        %v3610 = vsel %vm3609, %v3608, %v3443
        %vm3611 = vcmp.lt.s32.totalorder %v3610, %v3447
        %v3612 = vsel %vm3611, %v3610, %v3447
        %vm3613 = vcmp.lt.s32.totalorder %v3612, %v3451
        %v3614 = vsel %vm3613, %v3612, %v3451
        %vm3615 = vcmp.lt.s32.totalorder %v3614, %v3455
        %v3616 = vsel %vm3615, %v3614, %v3455
        %vm3617 = vcmp.lt.s32.totalorder %v3616, %v3459
        %v3618 = vsel %vm3617, %v3616, %v3459
        %vm3619 = vcmp.lt.s32.totalorder %v3618, %v3463
        %v3620 = vsel %vm3619, %v3618, %v3463
        %vm3621 = vcmp.lt.s32.totalorder %v3620, %v3467
        %v3622 = vsel %vm3621, %v3620, %v3467
        %vm3623 = vcmp.lt.s32.totalorder %v3622, %v3471
        %v3624 = vsel %vm3623, %v3622, %v3471
        %vm3625 = vcmp.lt.s32.totalorder %v3624, %v3475
        %v3626 = vsel %vm3625, %v3624, %v3475
        %vm3627 = vcmp.lt.s32.totalorder %v3626, %v3479
        %v3628 = vsel %vm3627, %v3626, %v3479
        %vm3629 = vcmp.lt.s32.totalorder %v3628, %v3483
        %v3630 = vsel %vm3629, %v3628, %v3483
        %v3631 = vrot.slane %v3630, 4
        %vm3632 = vcmp.lt.s32.totalorder %v3630, %v3631
        %v3633 = vsel %vm3632, %v3630, %v3631
        %v3634 = vrot.slane %v3633, 2
        %vm3635 = vcmp.lt.s32.totalorder %v3633, %v3634
        %v3636 = vsel %vm3635, %v3633, %v3634
        %v3637 = vrot.slane %v3636, 1
        %vm3638 = vcmp.lt.s32.totalorder %v3636, %v3637
        %v3639 = vsel %vm3638, %v3636, %v3637
        %vm3640 = vcmp.eq.s32.totalorder %v315, %v3522
        %vm3641 = vcmp.eq.s32.totalorder %v315, %v3561
        %vm3642 = vcmp.eq.s32.totalorder %v315, %v3600
        %vm3643 = vcmp.eq.s32.totalorder %v315, %v3639
        %vm3644 = vcmp.eq.s32.totalorder %v319, %v3522
        %vm3645 = vcmp.eq.s32.totalorder %v319, %v3561
        %vm3646 = vcmp.eq.s32.totalorder %v319, %v3600
        %vm3647 = vcmp.eq.s32.totalorder %v319, %v3639
        %vm3648 = vcmp.eq.s32.totalorder %v320, %v3522
        %vm3649 = vcmp.eq.s32.totalorder %v320, %v3561
        %vm3650 = vcmp.eq.s32.totalorder %v320, %v3600
        %vm3651 = vcmp.eq.s32.totalorder %v320, %v3639
        %vm3652 = vcmp.eq.s32.totalorder %v321, %v3522
        %vm3653 = vcmp.eq.s32.totalorder %v321, %v3561
        %vm3654 = vcmp.eq.s32.totalorder %v321, %v3600
        %vm3655 = vcmp.eq.s32.totalorder %v321, %v3639
        %vm3656 = vcmp.eq.s32.totalorder %v322, %v3522
        %vm3657 = vcmp.eq.s32.totalorder %v322, %v3561
        %vm3658 = vcmp.eq.s32.totalorder %v322, %v3600
        %vm3659 = vcmp.eq.s32.totalorder %v322, %v3639
        %vm3660 = vcmp.eq.s32.totalorder %v323, %v3522
        %vm3661 = vcmp.eq.s32.totalorder %v323, %v3561
        %vm3662 = vcmp.eq.s32.totalorder %v323, %v3600
        %vm3663 = vcmp.eq.s32.totalorder %v323, %v3639
        %vm3664 = vcmp.eq.s32.totalorder %v324, %v3522
        %vm3665 = vcmp.eq.s32.totalorder %v324, %v3561
        %vm3666 = vcmp.eq.s32.totalorder %v324, %v3600
        %vm3667 = vcmp.eq.s32.totalorder %v324, %v3639
        %vm3668 = vcmp.eq.s32.totalorder %v325, %v3522
        %vm3669 = vcmp.eq.s32.totalorder %v325, %v3561
        %vm3670 = vcmp.eq.s32.totalorder %v325, %v3600
        %vm3671 = vcmp.eq.s32.totalorder %v325, %v3639
        %vm3672 = vcmp.eq.s32.totalorder %v326, %v3522
        %vm3673 = vcmp.eq.s32.totalorder %v326, %v3561
        %vm3674 = vcmp.eq.s32.totalorder %v326, %v3600
        %vm3675 = vcmp.eq.s32.totalorder %v326, %v3639
        %vm3676 = vcmp.eq.s32.totalorder %v327, %v3522
        %vm3677 = vcmp.eq.s32.totalorder %v327, %v3561
        %vm3678 = vcmp.eq.s32.totalorder %v327, %v3600
        %vm3679 = vcmp.eq.s32.totalorder %v327, %v3639
        %vm3680 = vcmp.eq.s32.totalorder %v328, %v3522
        %vm3681 = vcmp.eq.s32.totalorder %v328, %v3561
        %vm3682 = vcmp.eq.s32.totalorder %v328, %v3600
        %vm3683 = vcmp.eq.s32.totalorder %v328, %v3639
        %vm3684 = vcmp.eq.s32.totalorder %v329, %v3522
        %vm3685 = vcmp.eq.s32.totalorder %v329, %v3561
        %vm3686 = vcmp.eq.s32.totalorder %v329, %v3600
        %vm3687 = vcmp.eq.s32.totalorder %v329, %v3639
        %vm3688 = vcmp.eq.s32.totalorder %v330, %v3522
        %vm3689 = vcmp.eq.s32.totalorder %v330, %v3561
        %vm3690 = vcmp.eq.s32.totalorder %v330, %v3600
        %vm3691 = vcmp.eq.s32.totalorder %v330, %v3639
        %vm3692 = vcmp.eq.s32.totalorder %v331, %v3522
        %vm3693 = vcmp.eq.s32.totalorder %v331, %v3561
        %vm3694 = vcmp.eq.s32.totalorder %v331, %v3600
        %vm3695 = vcmp.eq.s32.totalorder %v331, %v3639
        %vm3696 = vcmp.eq.s32.totalorder %v332, %v3522
        %vm3697 = vcmp.eq.s32.totalorder %v332, %v3561
        %vm3698 = vcmp.eq.s32.totalorder %v332, %v3600
        %vm3699 = vcmp.eq.s32.totalorder %v332, %v3639
        %vm3700 = vcmp.eq.s32.totalorder %v333, %v3522
        %vm3701 = vcmp.eq.s32.totalorder %v333, %v3561
        %vm3702 = vcmp.eq.s32.totalorder %v333, %v3600
        %vm3703 = vcmp.eq.s32.totalorder %v333, %v3639
        %v3704 = vsel %vm3640, 1, 0
        %v3705 = vsel %vm3641, 1, 0
        %v3706 = vsel %vm3642, 1, 0
        %v3707 = vsel %vm3643, 1, 0
        %v3708 = vsel %vm3644, 1, 0
        %v3709 = vsel %vm3645, 1, 0
        %v3710 = vsel %vm3646, 1, 0
        %v3711 = vsel %vm3647, 1, 0
        %v3712 = vsel %vm3648, 1, 0
        %v3713 = vsel %vm3649, 1, 0
        %v3714 = vsel %vm3650, 1, 0
        %v3715 = vsel %vm3651, 1, 0
        %v3716 = vsel %vm3652, 1, 0
        %v3717 = vsel %vm3653, 1, 0
        %v3718 = vsel %vm3654, 1, 0
        %v3719 = vsel %vm3655, 1, 0
        %v3720 = vsel %vm3656, 1, 0
        %v3721 = vsel %vm3657, 1, 0
        %v3722 = vsel %vm3658, 1, 0
        %v3723 = vsel %vm3659, 1, 0
        %v3724 = vsel %vm3660, 1, 0
        %v3725 = vsel %vm3661, 1, 0
        %v3726 = vsel %vm3662, 1, 0
        %v3727 = vsel %vm3663, 1, 0
        %v3728 = vsel %vm3664, 1, 0
        %v3729 = vsel %vm3665, 1, 0
        %v3730 = vsel %vm3666, 1, 0
        %v3731 = vsel %vm3667, 1, 0
        %v3732 = vsel %vm3668, 1, 0
        %v3733 = vsel %vm3669, 1, 0
        %v3734 = vsel %vm3670, 1, 0
        %v3735 = vsel %vm3671, 1, 0
        %v3736 = vsel %vm3672, 1, 0
        %v3737 = vsel %vm3673, 1, 0
        %v3738 = vsel %vm3674, 1, 0
        %v3739 = vsel %vm3675, 1, 0
        %v3740 = vsel %vm3676, 1, 0
        %v3741 = vsel %vm3677, 1, 0
        %v3742 = vsel %vm3678, 1, 0
        %v3743 = vsel %vm3679, 1, 0
        %v3744 = vsel %vm3680, 1, 0
        %v3745 = vsel %vm3681, 1, 0
        %v3746 = vsel %vm3682, 1, 0
        %v3747 = vsel %vm3683, 1, 0
        %v3748 = vsel %vm3684, 1, 0
        %v3749 = vsel %vm3685, 1, 0
        %v3750 = vsel %vm3686, 1, 0
        %v3751 = vsel %vm3687, 1, 0
        %v3752 = vsel %vm3688, 1, 0
        %v3753 = vsel %vm3689, 1, 0
        %v3754 = vsel %vm3690, 1, 0
        %v3755 = vsel %vm3691, 1, 0
        %v3756 = vsel %vm3692, 1, 0
        %v3757 = vsel %vm3693, 1, 0
        %v3758 = vsel %vm3694, 1, 0
        %v3759 = vsel %vm3695, 1, 0
        %v3760 = vsel %vm3696, 1, 0
        %v3761 = vsel %vm3697, 1, 0
        %v3762 = vsel %vm3698, 1, 0
        %v3763 = vsel %vm3699, 1, 0
        %v3764 = vsel %vm3700, 1, 0
        %v3765 = vsel %vm3701, 1, 0
        %v3766 = vsel %vm3702, 1, 0
        %v3767 = vsel %vm3703, 1, 0
        %v3768 = vcvt.s32.f32 %v3704
        %v3769 = vcvt.s32.f32 %v3705
        %v3770 = vcvt.s32.f32 %v3706
        %v3771 = vcvt.s32.f32 %v3707
        %v3772 = vcvt.s32.f32 %v3708
        %v3773 = vcvt.s32.f32 %v3709
        %v3774 = vcvt.s32.f32 %v3710
        %v3775 = vcvt.s32.f32 %v3711
        %v3776 = vcvt.s32.f32 %v3712
        %v3777 = vcvt.s32.f32 %v3713
        %v3778 = vcvt.s32.f32 %v3714
        %v3779 = vcvt.s32.f32 %v3715
        %v3780 = vcvt.s32.f32 %v3716
        %v3781 = vcvt.s32.f32 %v3717
        %v3782 = vcvt.s32.f32 %v3718
        %v3783 = vcvt.s32.f32 %v3719
        %v3784 = vcvt.s32.f32 %v3720
        %v3785 = vcvt.s32.f32 %v3721
        %v3786 = vcvt.s32.f32 %v3722
        %v3787 = vcvt.s32.f32 %v3723
        %v3788 = vcvt.s32.f32 %v3724
        %v3789 = vcvt.s32.f32 %v3725
        %v3790 = vcvt.s32.f32 %v3726
        %v3791 = vcvt.s32.f32 %v3727
        %v3792 = vcvt.s32.f32 %v3728
        %v3793 = vcvt.s32.f32 %v3729
        %v3794 = vcvt.s32.f32 %v3730
        %v3795 = vcvt.s32.f32 %v3731
        %v3796 = vcvt.s32.f32 %v3732
        %v3797 = vcvt.s32.f32 %v3733
        %v3798 = vcvt.s32.f32 %v3734
        %v3799 = vcvt.s32.f32 %v3735
        %v3800 = vcvt.s32.f32 %v3736
        %v3801 = vcvt.s32.f32 %v3737
        %v3802 = vcvt.s32.f32 %v3738
        %v3803 = vcvt.s32.f32 %v3739
        %v3804 = vcvt.s32.f32 %v3740
        %v3805 = vcvt.s32.f32 %v3741
        %v3806 = vcvt.s32.f32 %v3742
        %v3807 = vcvt.s32.f32 %v3743
        %v3808 = vcvt.s32.f32 %v3744
        %v3809 = vcvt.s32.f32 %v3745
        %v3810 = vcvt.s32.f32 %v3746
        %v3811 = vcvt.s32.f32 %v3747
        %v3812 = vcvt.s32.f32 %v3748
        %v3813 = vcvt.s32.f32 %v3749
        %v3814 = vcvt.s32.f32 %v3750
        %v3815 = vcvt.s32.f32 %v3751
        %v3816 = vcvt.s32.f32 %v3752
        %v3817 = vcvt.s32.f32 %v3753
        %v3818 = vcvt.s32.f32 %v3754
        %v3819 = vcvt.s32.f32 %v3755
        %v3820 = vcvt.s32.f32 %v3756
        %v3821 = vcvt.s32.f32 %v3757
        %v3822 = vcvt.s32.f32 %v3758
        %v3823 = vcvt.s32.f32 %v3759
        %v3824 = vcvt.s32.f32 %v3760
        %v3825 = vcvt.s32.f32 %v3761
        %v3826 = vcvt.s32.f32 %v3762
        %v3827 = vcvt.s32.f32 %v3763
        %v3828 = vcvt.s32.f32 %v3764
        %v3829 = vcvt.s32.f32 %v3765
        %v3830 = vcvt.s32.f32 %v3766
        %v3831 = vcvt.s32.f32 %v3767
        %3832 = vmatprep.subr.mxu0 %v3769
        %3833 = vmatpush1.msra.mxu0 %v3768
        %3834 = vmatprep.subr.mxu0 %v3773
        %3835 = vmatpush1.msra.mxu0 %v3772
        %3836 = vmatprep.subr.mxu0 %v3777
        %3837 = vmatpush1.msra.mxu0 %v3776
        %3838 = vmatprep.subr.mxu0 %v3781
        %3839 = vmatpush1.msra.mxu0 %v3780
        %3840 = vmatprep.subr.mxu0 %v3785
        %3841 = vmatpush1.msra.mxu0 %v3784
        %3842 = vmatprep.subr.mxu0 %v3789
        %3843 = vmatpush1.msra.mxu0 %v3788
        %3844 = vmatprep.subr.mxu0 %v3793
        %3845 = vmatpush1.msra.mxu0 %v3792
        %3846 = vmatprep.subr.mxu0 %v3797
        %3847 = vmatpush1.msra.mxu0 %v3796
        %3848 = vmatprep.subr.mxu0 %v3801
        %3849 = vmatpush1.msra.mxu0 %v3800
        %3850 = vmatprep.subr.mxu0 %v3805
        %3851 = vmatpush1.msra.mxu0 %v3804
        %3852 = vmatprep.subr.mxu0 %v3809
        %3853 = vmatpush1.msra.mxu0 %v3808
        %3854 = vmatprep.subr.mxu0 %v3813
        %3855 = vmatpush1.msra.mxu0 %v3812
        %3856 = vmatprep.subr.mxu0 %v3817
        %3857 = vmatpush1.msra.mxu0 %v3816
        %3858 = vmatprep.subr.mxu0 %v3821
        %3859 = vmatpush1.msra.mxu0 %v3820
        %3860 = vmatprep.subr.mxu0 %v3825
        %3861 = vmatpush1.msra.mxu0 %v3824
        %3862 = vmatprep.subr.mxu0 %v3829
        %3863 = vmatpush1.msra.mxu0 %v3828
        %3864 = vmatprep.subr.mxu0 0.0
        %3865 = vmatpush1.msra.mxu0 0.0
        %3866 = vmatprep.subr.mxu0 0.0
        %3867 = vmatpush1.msra.mxu0 0.0
        %3868 = vmatprep.subr.mxu0 0.0
        %3869 = vmatpush1.msra.mxu0 0.0
        %3870 = vmatprep.subr.mxu0 0.0
        %3871 = vmatpush1.msra.mxu0 0.0
        %3872 = vmatprep.subr.mxu0 0.0
        %3873 = vmatpush1.msra.mxu0 0.0
        %3874 = vmatprep.subr.mxu0 0.0
        %3875 = vmatpush1.msra.mxu0 0.0
        %3876 = vmatprep.subr.mxu0 0.0
        %3877 = vmatpush1.msra.mxu0 0.0
        %3878 = vmatprep.subr.mxu0 0.0
        %3879 = vmatpush1.msra.mxu0 0.0
        %3880 = vmatprep.subr.mxu0 0.0
        %3881 = vmatpush1.msra.mxu0 0.0
        %3882 = vmatprep.subr.mxu0 0.0
        %3883 = vmatpush1.msra.mxu0 0.0
        %3884 = vmatprep.subr.mxu0 0.0
        %3885 = vmatpush1.msra.mxu0 0.0
        %3886 = vmatprep.subr.mxu0 0.0
        %3887 = vmatpush1.msra.mxu0 0.0
        %3888 = vmatprep.subr.mxu0 0.0
        %3889 = vmatpush1.msra.mxu0 0.0
        %3890 = vmatprep.subr.mxu0 0.0
        %3891 = vmatpush1.msra.mxu0 0.0
        %3892 = vmatprep.subr.mxu0 0.0
        %3893 = vmatpush1.msra.mxu0 0.0
        %3894 = vmatprep.subr.mxu0 0.0
        %3895 = vmatpush1.msra.mxu0 0.0
        %3896 = vmatprep.mubr.f32.mxu0 0.0
        %3897 = vmatmul.mubr.f32.gmra.mrb[0].mxu0 %v2897
        %v3898 = vpop.f32.mrb[0].mxu0
        %v3899 = vadd.f32 0.0, %v3898
        %v3900 = vpop.f32.mrb[0].mxu0
        %v3901 = vadd.f32 0.0, %v3900
        %3902 = vmatprep.mubr.f32.mxu0 0.0
        %3903 = vmatmul.mubr.f32.gmra.mrb[0].mxu0 %v2898
        %v3904 = vpop.f32.mrb[0].mxu0
        %v3905 = vadd.f32 0.0, %v3904
        %v3906 = vpop.f32.mrb[0].mxu0
        %v3907 = vadd.f32 0.0, %v3906
        %3908 = vmatprep.mubr.f32.mxu0 0.0
        %3909 = vmatmul.mubr.f32.gmra.mrb[0].mxu0 %v2899
        %v3910 = vpop.f32.mrb[0].mxu0
        %v3911 = vadd.f32 0.0, %v3910
        %v3912 = vpop.f32.mrb[0].mxu0
        %v3913 = vadd.f32 0.0, %v3912
        %3914 = vmatprep.mubr.f32.mxu0 0.0
        %3915 = vmatmul.mubr.f32.gmra.mrb[0].mxu0 %v2900
        %v3916 = vpop.f32.mrb[0].mxu0
        %v3917 = vadd.f32 0.0, %v3916
        %v3918 = vpop.f32.mrb[0].mxu0
        %v3919 = vadd.f32 0.0, %v3918
        %3920 = vmatprep.mubr.f32.mxu0 0.0
        %3921 = vmatmul.mubr.f32.gmra.mrb[0].mxu0 %v2901
        %v3922 = vpop.f32.mrb[0].mxu0
        %v3923 = vpop.f32.mrb[0].mxu0
        %3924 = vdwg.mxu0
        %3925 = vmatprep.subr.mxu0 %v3771
        %3926 = vmatpush1.msra.mxu0 %v3770
        %3927 = vmatprep.subr.mxu0 %v3775
        %3928 = vmatpush1.msra.mxu0 %v3774
        %3929 = vmatprep.subr.mxu0 %v3779
        %3930 = vmatpush1.msra.mxu0 %v3778
        %3931 = vmatprep.subr.mxu0 %v3783
        %3932 = vmatpush1.msra.mxu0 %v3782
        %3933 = vmatprep.subr.mxu0 %v3787
        %3934 = vmatpush1.msra.mxu0 %v3786
        %3935 = vmatprep.subr.mxu0 %v3791
        %3936 = vmatpush1.msra.mxu0 %v3790
        %3937 = vmatprep.subr.mxu0 %v3795
        %3938 = vmatpush1.msra.mxu0 %v3794
        %3939 = vmatprep.subr.mxu0 %v3799
        %3940 = vmatpush1.msra.mxu0 %v3798
        %3941 = vmatprep.subr.mxu0 %v3803
        %3942 = vmatpush1.msra.mxu0 %v3802
        %3943 = vmatprep.subr.mxu0 %v3807
        %3944 = vmatpush1.msra.mxu0 %v3806
        %3945 = vmatprep.subr.mxu0 %v3811
        %3946 = vmatpush1.msra.mxu0 %v3810
        %3947 = vmatprep.subr.mxu0 %v3815
        %3948 = vmatpush1.msra.mxu0 %v3814
        %3949 = vmatprep.subr.mxu0 %v3819
        %3950 = vmatpush1.msra.mxu0 %v3818
        %3951 = vmatprep.subr.mxu0 %v3823
        %3952 = vmatpush1.msra.mxu0 %v3822
        %3953 = vmatprep.subr.mxu0 %v3827
        %3954 = vmatpush1.msra.mxu0 %v3826
        %3955 = vmatprep.subr.mxu0 %v3831
        %3956 = vmatpush1.msra.mxu0 %v3830
        %3957 = vmatprep.subr.mxu0 0.0
        %3958 = vmatpush1.msra.mxu0 0.0
        %3959 = vmatprep.subr.mxu0 0.0
        %3960 = vmatpush1.msra.mxu0 0.0
        %3961 = vmatprep.subr.mxu0 0.0
        %3962 = vmatpush1.msra.mxu0 0.0
        %3963 = vmatprep.subr.mxu0 0.0
        %3964 = vmatpush1.msra.mxu0 0.0
        %3965 = vmatprep.subr.mxu0 0.0
        %3966 = vmatpush1.msra.mxu0 0.0
        %3967 = vmatprep.subr.mxu0 0.0
        %3968 = vmatpush1.msra.mxu0 0.0
        %3969 = vmatprep.subr.mxu0 0.0
        %3970 = vmatpush1.msra.mxu0 0.0
        %3971 = vmatprep.subr.mxu0 0.0
        %3972 = vmatpush1.msra.mxu0 0.0
        %3973 = vmatprep.subr.mxu0 0.0
        %3974 = vmatpush1.msra.mxu0 0.0
        %3975 = vmatprep.subr.mxu0 0.0
        %3976 = vmatpush1.msra.mxu0 0.0
        %3977 = vmatprep.subr.mxu0 0.0
        %3978 = vmatpush1.msra.mxu0 0.0
        %3979 = vmatprep.subr.mxu0 0.0
        %3980 = vmatpush1.msra.mxu0 0.0
        %3981 = vmatprep.subr.mxu0 0.0
        %3982 = vmatpush1.msra.mxu0 0.0
        %3983 = vmatprep.subr.mxu0 0.0
        %3984 = vmatpush1.msra.mxu0 0.0
        %3985 = vmatprep.subr.mxu0 0.0
        %3986 = vmatpush1.msra.mxu0 0.0
        %3987 = vmatprep.subr.mxu0 0.0
        %3988 = vmatpush1.msra.mxu0 0.0
        %3989 = vmatprep.mubr.f32.mxu0 0.0
        %3990 = vmatmul.mubr.f32.gmra.mrb[0].mxu0 %v2897
        %v3991 = vpop.f32.mrb[0].mxu0
        %v3992 = vadd.f32 0.0, %v3991
        %v3993 = vpop.f32.mrb[0].mxu0
        %v3994 = vadd.f32 0.0, %v3993
        %3995 = vmatprep.mubr.f32.mxu0 0.0
        %3996 = vmatmul.mubr.f32.gmra.mrb[0].mxu0 %v2898
        %v3997 = vpop.f32.mrb[0].mxu0
        %v3998 = vadd.f32 0.0, %v3997
        %v3999 = vpop.f32.mrb[0].mxu0
        %v4000 = vadd.f32 0.0, %v3999
        %4001 = vmatprep.mubr.f32.mxu0 0.0
        %4002 = vmatmul.mubr.f32.gmra.mrb[0].mxu0 %v2899
        %v4003 = vpop.f32.mrb[0].mxu0
        %v4004 = vadd.f32 0.0, %v4003
        %v4005 = vpop.f32.mrb[0].mxu0
        %v4006 = vadd.f32 0.0, %v4005
        %4007 = vmatprep.mubr.f32.mxu0 0.0
        %4008 = vmatmul.mubr.f32.gmra.mrb[0].mxu0 %v2900
        %v4009 = vpop.f32.mrb[0].mxu0
        %v4010 = vadd.f32 0.0, %v4009
        %v4011 = vpop.f32.mrb[0].mxu0
        %v4012 = vadd.f32 0.0, %v4011
        %4013 = vmatprep.mubr.f32.mxu0 0.0
        %4014 = vmatmul.mubr.f32.gmra.mrb[0].mxu0 %v2901
        %v4015 = vpop.f32.mrb[0].mxu0
        %v4016 = vpop.f32.mrb[0].mxu0
        %4017 = vdwg.mxu0
        %v4018 = vsub.f32 %v2750, %v3899
        %v4019 = vsub.f32 %v2751, %v3901
        %v4020 = vsub.f32 %v2752, %v3992
        %v4021 = vsub.f32 %v2753, %v3994
        %v4022 = vsub.f32 %v2754, %v3905
        %v4023 = vsub.f32 %v2755, %v3907
        %v4024 = vsub.f32 %v2756, %v3998
        %v4025 = vsub.f32 %v2757, %v4000
        %v4026 = vsub.f32 %v2758, %v3911
        %v4027 = vsub.f32 %v2759, %v3913
        %v4028 = vsub.f32 %v2760, %v4004
        %v4029 = vsub.f32 %v2761, %v4006
        %v4030 = vsub.f32 %v2762, %v3917
        %v4031 = vsub.f32 %v2763, %v3919
        %v4032 = vsub.f32 %v2764, %v4010
        %v4033 = vsub.f32 %v2765, %v4012
        %v4034 = vmul.f32 %v4018, %v4018
        %v4035 = vmul.f32 %v4019, %v4019
        %v4036 = vmul.f32 %v4020, %v4020
        %v4037 = vmul.f32 %v4021, %v4021
        %v4038 = vmul.f32 %v4022, %v4022
        %v4039 = vmul.f32 %v4023, %v4023
        %v4040 = vmul.f32 %v4024, %v4024
        %v4041 = vmul.f32 %v4025, %v4025
        %v4042 = vmul.f32 %v4026, %v4026
        %v4043 = vmul.f32 %v4027, %v4027
        %v4044 = vmul.f32 %v4028, %v4028
        %v4045 = vmul.f32 %v4029, %v4029
        %v4046 = vmul.f32 %v4030, %v4030
        %v4047 = vmul.f32 %v4031, %v4031
        %v4048 = vmul.f32 %v4032, %v4032
        %v4049 = vmul.f32 %v4033, %v4033
        %v4050 = vadd.f32 %v4034, %v4038
        %v4051 = vadd.f32 %v4050, %v4042
        %v4052 = vadd.f32 %v4051, %v4046
        %v4053 = vrot.slane %v4052, 4
        %v4054 = vadd.f32 %v4052, %v4053
        %v4055 = vrot.slane %v4054, 2
        %v4056 = vadd.f32 %v4054, %v4055
        %v4057 = vrot.slane %v4056, 1
        %v4058 = vadd.f32 %v4056, %v4057
        %v4059 = vadd.f32 %v4035, %v4039
        %v4060 = vadd.f32 %v4059, %v4043
        %v4061 = vadd.f32 %v4060, %v4047
        %v4062 = vrot.slane %v4061, 4
        %v4063 = vadd.f32 %v4061, %v4062
        %v4064 = vrot.slane %v4063, 2
        %v4065 = vadd.f32 %v4063, %v4064
        %v4066 = vrot.slane %v4065, 1
        %v4067 = vadd.f32 %v4065, %v4066
        %v4068 = vadd.f32 %v4036, %v4040
        %v4069 = vadd.f32 %v4068, %v4044
        %v4070 = vadd.f32 %v4069, %v4048
        %v4071 = vrot.slane %v4070, 4
        %v4072 = vadd.f32 %v4070, %v4071
        %v4073 = vrot.slane %v4072, 2
        %v4074 = vadd.f32 %v4072, %v4073
        %v4075 = vrot.slane %v4074, 1
        %v4076 = vadd.f32 %v4074, %v4075
        %v4077 = vadd.f32 %v4037, %v4041
        %v4078 = vadd.f32 %v4077, %v4045
        %v4079 = vadd.f32 %v4078, %v4049
        %v4080 = vrot.slane %v4079, 4
        %v4081 = vadd.f32 %v4079, %v4080
        %v4082 = vrot.slane %v4081, 2
        %v4083 = vadd.f32 %v4081, %v4082
        %v4084 = vrot.slane %v4083, 1
        %v4085 = vadd.f32 %v4083, %v4084
        %v4086 = vcombine.low %v3522, %v3561
        %v4087 = vcombine.low %v3600, %v3639
        %v4089 = vunpack.c.l.s4 1966171168
        %v4090 = vunpack.c.0.s8 %v4089
        %v4091 = vlaneseq
        %v4092 = vshrl.u32 %v4091, 7
        %v4093 = vsub.s32 %v4090, %v4092
        %v4094 = vrot.slane %v4086, %v4093
        %v4096 = vunpack.c.l.s4 1966171168
        %v4097 = vunpack.c.0.s8 %v4096
        %v4098 = vlaneseq
        %v4099 = vshrl.u32 %v4098, 7
        %v4100 = vsub.s32 %v4097, %v4099
        %v4101 = vrot.slane %v4087, %v4100
        %v4102 = vcombine.low %v4094, %v4101
        %v4104 = vunpack.c.l.s4 1966171168
        %v4105 = vunpack.c.0.s8 %v4104
        %v4106 = vlaneseq
        %v4107 = vshrl.u32 %v4106, 7
        %v4108 = vsub.s32 %v4105, %v4107
        %v4109 = vrot.slane %v4102, %v4108
        %s4110 = scalar_lea.vmem %s290, 2
        %4111 = vst.msk [vmem:[%s4110] ss:$4 sm:$0xf] %vm1575, %v4109
        %v4116 = vcombine.low %v4058, %v4067
        %v4117 = vcombine.low %v4076, %v4085
        %v4119 = vunpack.c.l.s4 1966171168
        %v4120 = vunpack.c.0.s8 %v4119
        %v4121 = vlaneseq
        %v4122 = vshrl.u32 %v4121, 7
        %v4123 = vsub.s32 %v4120, %v4122
        %v4124 = vrot.slane %v4116, %v4123
        %v4126 = vunpack.c.l.s4 1966171168
        %v4127 = vunpack.c.0.s8 %v4126
        %v4128 = vlaneseq
        %v4129 = vshrl.u32 %v4128, 7
        %v4130 = vsub.s32 %v4127, %v4129
        %v4131 = vrot.slane %v4117, %v4130
        %v4132 = vcombine.low %v4124, %v4131
        %v4134 = vunpack.c.l.s4 1966171168
        %v4135 = vunpack.c.0.s8 %v4134
        %v4136 = vlaneseq
        %v4137 = vshrl.u32 %v4136, 7
        %v4138 = vsub.s32 %v4135, %v4137
        %v4139 = vrot.slane %v4132, %v4138
        %s4141 = scalar_lea.vmem %s296, 2
        %4142 = vst.msk [vmem:[%s4141] ss:$4 sm:$0xf] %vm1575, %v4139
        %v4143 = vsub.f32 %v298, %v4018
        %v4144 = vsub.f32 %v299, %v4019
        %v4145 = vsub.f32 %v300, %v4020
        %v4146 = vsub.f32 %v301, %v4021
        %v4147 = vsub.f32 %v302, %v4022
        %v4148 = vsub.f32 %v303, %v4023
        %v4149 = vsub.f32 %v304, %v4024
        %v4150 = vsub.f32 %v305, %v4025
        %v4151 = vsub.f32 %v306, %v4026
        %v4152 = vsub.f32 %v307, %v4027
        %v4153 = vsub.f32 %v308, %v4028
        %v4154 = vsub.f32 %v309, %v4029
        %v4155 = vsub.f32 %v310, %v4030
        %v4156 = vsub.f32 %v311, %v4031
        %v4157 = vsub.f32 %v312, %v4032
        %v4158 = vsub.f32 %v313, %v4033
        %4159 = vst [vmem:[%s269] sm:$0xff] %v4143
        %4160 = vst [vmem:[%s269 + $0x8] sm:$0xff] %v4144
        %4161 = vst [vmem:[%s269 + $0x10] sm:$0xff] %v4145
        %4162 = vst [vmem:[%s269 + $0x18] sm:$0xff] %v4146
        %4163 = vst [vmem:[%s269 + $0x20] sm:$0xff] %v4147
        %4164 = vst [vmem:[%s269 + $0x28] sm:$0xff] %v4148
        %4165 = vst [vmem:[%s269 + $0x30] sm:$0xff] %v4149
        %4166 = vst [vmem:[%s269 + $0x38] sm:$0xff] %v4150
        %4167 = vst [vmem:[%s269 + $0x40] sm:$0xff] %v4151
        %4168 = vst [vmem:[%s269 + $0x48] sm:$0xff] %v4152
        %4169 = vst [vmem:[%s269 + $0x50] sm:$0xff] %v4153
        %4170 = vst [vmem:[%s269 + $0x58] sm:$0xff] %v4154
        %4171 = vst [vmem:[%s269 + $0x60] sm:$0xff] %v4155
        %4172 = vst [vmem:[%s269 + $0x68] sm:$0xff] %v4156
        %4173 = vst [vmem:[%s269 + $0x70] sm:$0xff] %v4157
        %4174 = vst [vmem:[%s269 + $0x78] sm:$0xff] %v4158
        %s4175 = sand.u32 %s93, 1
        %s4176 = sand.u32 %s93, 1
        %s4177 = smul.addr %s4176, 128
        %s4178 = scalar_lea.vmem [#allocation3], %s4177
        %s4179 = smul.u32 4, %s17
        %p4180 = scmp.lt.s32.totalorder %s4179, 7
        %s4181 = scalar_select %p4180, %s4179, 7
        %s4182 = smul.addr %s4181, 4
        %s4183 = scalar_lea.vmem %s4, %s4182
        %s4184 = smul.u32 4, %s17
        %p4185 = scmp.lt.s32.totalorder %s4184, 7
        %s4186 = scalar_select %p4185, %s4184, 7
        %s4187 = smul.addr %s4186, 4
        %s4188 = scalar_lea.vmem %s5, %s4187
        // Predicated region
        $region56: #{rvq_forward.1} parent=50 // pred_check
          %p4189 = pneg %p103
        $region57: #{rvq_forward.1} parent=50 // pred_check_branch
          %4191 = sbr.rel (%p4189) target = $region59
        $region58: #{rvq_forward.1} parent=50 // pred_region
          %s4192 = smul.u32 4, %s17
          %s4193 = smul.addr %s4192, 8
          %s4194 = scalar_lea.vmem %s3, %s4193
          // Predicated region
          $region60: #{rvq_forward.1} parent=58 // pred_check
            _
          $region61: #{rvq_forward.1} parent=58 // pred_check_branch
            %4196 = sbr.rel (0) target = $region63
          $region62: #{rvq_forward.1} parent=58 // pred_region
            // Predicated region
            $region64: #{rvq_forward.1} parent=62 // pred_check
              _
            $region65: #{rvq_forward.1} parent=62 // pred_check_branch
              %4198 = sbr.rel (0) target = $region67
            $region66: #{rvq_forward.1} parent=62 // pred_region
              loop: start=0, step=1, limit=1
              $region68: #{rvq_forward.1} parent=66 // loop_pre_header
                _
              $region69: #{rvq_forward.1} parent=66 // loop_header
                %s4200 = sphi 0, %s4204
                %p4201 = scmp.ge.s32.totalorder %s4200, 1
                %s4205 = sphi %s4178, %s4178
                %s4206 = sphi %s4194, %s4194
              $region70: #{rvq_forward.1} parent=66 // loop_header_branch
                %4203 = sbr.rel (%p4201) target = $region74
              $region71: #{rvq_forward.1} parent=66 // loop_body
                %v4207 = vld [vmem:[%s4205] sm:$0xff]
                %4208 = vst [vmem:[%s4206] sm:$0xff] %v4207
                %v4209 = vld [vmem:[%s4205 + $0x8] sm:$0xff]
                %4210 = vst [vmem:[%s4206 + $0x8] sm:$0xff] %v4209
                %v4211 = vld [vmem:[%s4205 + $0x10] sm:$0xff]
                %4212 = vst [vmem:[%s4206 + $0x10] sm:$0xff] %v4211
                %v4213 = vld [vmem:[%s4205 + $0x18] sm:$0xff]
                %4214 = vst [vmem:[%s4206 + $0x18] sm:$0xff] %v4213
                %v4215 = vld [vmem:[%s4205 + $0x20] sm:$0xff]
                %4216 = vst [vmem:[%s4206 + $0x40] sm:$0xff] %v4215
                %v4217 = vld [vmem:[%s4205 + $0x28] sm:$0xff]
                %4218 = vst [vmem:[%s4206 + $0x48] sm:$0xff] %v4217
                %v4219 = vld [vmem:[%s4205 + $0x30] sm:$0xff]
                %4220 = vst [vmem:[%s4206 + $0x50] sm:$0xff] %v4219
                %v4221 = vld [vmem:[%s4205 + $0x38] sm:$0xff]
                %4222 = vst [vmem:[%s4206 + $0x58] sm:$0xff] %v4221
                %v4223 = vld [vmem:[%s4205 + $0x40] sm:$0xff]
                %4224 = vst [vmem:[%s4206 + $0x80] sm:$0xff] %v4223
                %v4225 = vld [vmem:[%s4205 + $0x48] sm:$0xff]
                %4226 = vst [vmem:[%s4206 + $0x88] sm:$0xff] %v4225
                %v4227 = vld [vmem:[%s4205 + $0x50] sm:$0xff]
                %4228 = vst [vmem:[%s4206 + $0x90] sm:$0xff] %v4227
                %v4229 = vld [vmem:[%s4205 + $0x58] sm:$0xff]
                %4230 = vst [vmem:[%s4206 + $0x98] sm:$0xff] %v4229
                %v4231 = vld [vmem:[%s4205 + $0x60] sm:$0xff]
                %4232 = vst [vmem:[%s4206 + $0xc0] sm:$0xff] %v4231
                %v4233 = vld [vmem:[%s4205 + $0x68] sm:$0xff]
                %4234 = vst [vmem:[%s4206 + $0xc8] sm:$0xff] %v4233
                %v4235 = vld [vmem:[%s4205 + $0x70] sm:$0xff]
                %4236 = vst [vmem:[%s4206 + $0xd0] sm:$0xff] %v4235
                %v4237 = vld [vmem:[%s4205 + $0x78] sm:$0xff]
                %4238 = vst [vmem:[%s4206 + $0xd8] sm:$0xff] %v4237
              $region72: #{rvq_forward.1} parent=66 // loop_footer
                %s4204 = sadd.s32 1, %s4200
              $region73: #{rvq_forward.1} parent=66 // loop_footer_branch
                %4199 = sbr.rel target = $region69
              $region74: #{rvq_forward.1} parent=66 // loop_exit
                _
            $region67: #{rvq_forward.1} parent=62 // pred_fallthru
              _
            // Predicated region
            $region75: #{rvq_forward.1} parent=62 // pred_check
              _
            $region76: #{rvq_forward.1} parent=62 // pred_check_branch
              %4240 = sbr.rel target = $region78
            $region77: #{rvq_forward.1} parent=62 // pred_region
              _
            $region78: #{rvq_forward.1} parent=62 // pred_fallthru
              _
          $region63: #{rvq_forward.1} parent=58 // pred_fallthru
            _
          %4241 = vnop
        $region59: #{rvq_forward.1} parent=50 // pred_fallthru
          _
        // Predicated region
        $region79: #{rvq_forward.1} parent=50 // pred_check
          %p4242 = pneg %p129
        $region80: #{rvq_forward.1} parent=50 // pred_check_branch
          %4244 = sbr.rel (%p4242) target = $region82
        $region81: #{rvq_forward.1} parent=50 // pred_region
          %s4245 = smul.u32 4, %s17
        $region82: #{rvq_forward.1} parent=50 // pred_fallthru
          _
        // Predicated region
        $region83: #{rvq_forward.1} parent=50 // pred_check
          %p4246 = pneg %p155
        $region84: #{rvq_forward.1} parent=50 // pred_check_branch
          %4248 = sbr.rel (%p4246) target = $region86
        $region85: #{rvq_forward.1} parent=50 // pred_region
          %s4249 = smul.u32 4, %s17
        $region86: #{rvq_forward.1} parent=50 // pred_fallthru
          _
      $region51: #{rvq_forward.1} parent=5 // pred_fallthru
        _
      %p4250 = scmp.le.s32.totalorder 2, %s12
      // Predicated region
      $region87: #{rvq_forward.1} parent=5 // pred_check
        %p4251 = pneg %p4250
      $region88: #{rvq_forward.1} parent=5 // pred_check_branch
        %4253 = sbr.rel (%p4251) target = $region90
      $region89: #{rvq_forward.1} parent=5 // pred_region
        %s4254 = ssub.s32 %s12, 2
        // Predicated region
        $region91: #{rvq_forward.1} parent=89 // pred_check
          %p4255 = pneg %p109
        $region92: #{rvq_forward.1} parent=89 // pred_check_branch
          %4257 = sbr.rel (%p4255) target = $region94
        $region93: #{rvq_forward.1} parent=89 // pred_region
          %s4258 = sand.u32 %s94, 1
          %s4259 = sand.u32 %s94, 1
          %s4260 = smul.addr %s4259, 128
          %s4261 = scalar_lea.vmem [#allocation3], %s4260
        $region94: #{rvq_forward.1} parent=89 // pred_fallthru
          _
        // Predicated region
        $region95: #{rvq_forward.1} parent=89 // pred_check
          %p4262 = pneg %p135
        $region96: #{rvq_forward.1} parent=89 // pred_check_branch
          %4264 = sbr.rel (%p4262) target = $region98
        $region97: #{rvq_forward.1} parent=89 // pred_region
          %s4265 = smul.u32 4, %s18
          %p4266 = scmp.lt.s32.totalorder %s4265, 7
          %s4267 = scalar_select %p4266, %s4265, 7
          %s4268 = smul.addr %s4267, 4
          %s4269 = scalar_lea.vmem %s4, %s4268
        $region98: #{rvq_forward.1} parent=89 // pred_fallthru
          _
        // Predicated region
        $region99: #{rvq_forward.1} parent=89 // pred_check
          %p4270 = pneg %p161
        $region100: #{rvq_forward.1} parent=89 // pred_check_branch
          %4272 = sbr.rel (%p4270) target = $region102
        $region101: #{rvq_forward.1} parent=89 // pred_region
          %s4273 = smul.u32 4, %s18
          %p4274 = scmp.lt.s32.totalorder %s4273, 7
          %s4275 = scalar_select %p4274, %s4273, 7
          %s4276 = smul.addr %s4275, 4
          %s4277 = scalar_lea.vmem %s5, %s4276
        $region102: #{rvq_forward.1} parent=89 // pred_fallthru
          _
      $region90: #{rvq_forward.1} parent=5 // pred_fallthru
        _
    $region6: #{rvq_forward.1} parent=1 // loop_footer
      %s16 = sadd.s32 1, %s12
    $region7: #{rvq_forward.1} parent=1 // loop_footer_branch
      %11 = sbr.rel target = $region3
    $region8: #{rvq_forward.1} parent=1 // loop_exit
      _

</llo_original>
